<compile_context>
chip_gen: v5e
topology: v5e:2x2
jax: 0.10.0
libtpu: 0.0.40
codegen_flags: <defaults>
</compile_context>

<pallas_src>
import functools
import math

import jax
import jax.numpy as jnp
from jax.experimental import pallas as pl
from jax.experimental.pallas import tpu as pltpu


def _round_up(x, m):
    return ((x + m - 1) // m) * m


def _layernorm(v, g, b, eps=1e-5):
    mu = jnp.mean(v, axis=-1, keepdims=True)
    var = jnp.mean((v - mu) ** 2, axis=-1, keepdims=True)
    return (v - mu) * jax.lax.rsqrt(var + eps) * g + b


# ------------------------------ fused ViT kernel ------------------------------

def _vit_kernel(patch_ref, pw_ref, emb_ref,
                wqkv_ref, wo_ref, w1_ref, w2_ref, vec_ref,
                lng_ref, lnb_ref, hw_ref, hb_ref,
                o_ref, tok_ref, *, num_heads, seq_len):
    """grid = (batch_block, layer).

    Tokens live in the VMEM scratch `tok_ref` across the (arbitrary) layer axis;
    the patch embedding initialises it at layer 0 and the head consumes its CLS
    row at the last layer.  Matmul operands are bf16 with f32 accumulation;
    LayerNorm / softmax / residuals stay in f32.
    """
    layer = pl.program_id(1)
    Bb, Tp, D = tok_ref.shape
    M = Bb * Tp
    Dh = w1_ref.shape[2]
    hd = D // num_heads
    scale = 1.0 / math.sqrt(hd)

    # ---- layer-0 prologue: patch embedding + CLS token + positional embedding ----
    @pl.when(layer == 0)
    def _():
        p = patch_ref[...].astype(jnp.bfloat16).reshape(M, -1)          # (M, Kp)
        emb = jnp.dot(p, pw_ref[...], preferred_element_type=jnp.float32)
        # emb_ref folds cls (row 0) + patch bias (real patch rows) + pos; its
        # padded rows are zero, and padded patch rows are zero-input, so padded
        # tokens start at exactly zero.
        tok_ref[...] = emb.reshape(Bb, Tp, D) + emb_ref[...]

    x2 = tok_ref[...].reshape(M, D)                                     # f32

    vec = vec_ref[0]                         # (8, Vmax) packed per-layer vectors
    ln1_g, ln1_b = vec[0:1, :D], vec[1:2, :D]
    bqkv = vec[2:3, :3 * D]
    bo = vec[3:4, :D]
    ln2_g, ln2_b = vec[4:5, :D], vec[5:6, :D]
    b1 = vec[6:7, :Dh]
    b2 = vec[7:8, :D]

    # ---- multi-head self-attention ----
    h = _layernorm(x2, ln1_g, ln1_b)
    qkv = jnp.dot(h.astype(jnp.bfloat16), wqkv_ref[0],
                  preferred_element_type=jnp.float32) + bqkv            # (M, 3D)

    key_ok = jax.lax.broadcasted_iota(jnp.int32, (Bb, Tp, Tp), 2) < seq_len
    ctx_heads = []
    for hh in range(num_heads):   # static unroll; per-head lane slices, no transposes
        c0 = hh * hd
        qh = qkv[:, c0:c0 + hd].astype(jnp.bfloat16).reshape(Bb, Tp, hd)
        kh = qkv[:, D + c0:D + c0 + hd].astype(jnp.bfloat16).reshape(Bb, Tp, hd)
        vh = qkv[:, 2 * D + c0:2 * D + c0 + hd].astype(jnp.bfloat16).reshape(Bb, Tp, hd)
        s = jnp.einsum('bqd,bkd->bqk', qh, kh,
                       preferred_element_type=jnp.float32) * scale
        s = jnp.where(key_ok, s, -1e30)                 # mask padded key tokens
        s = s - jnp.max(s, axis=-1, keepdims=True)
        p = jnp.exp(s)
        p = p / jnp.sum(p, axis=-1, keepdims=True)      # exact softmax denominator
        ctx_heads.append(jnp.einsum('bqk,bkd->bqd', p.astype(jnp.bfloat16), vh,
                                    preferred_element_type=jnp.float32))
    ctx = jnp.concatenate(ctx_heads, axis=-1).reshape(M, D)

    attn = jnp.dot(ctx.astype(jnp.bfloat16), wo_ref[0],
                   preferred_element_type=jnp.float32) + bo
    x2 = x2 + attn                                      # residual

    # ---- MLP ----
    # TODO(synk): dropout(p=0.1) is identity in inference mode; not implemented.
    h2 = _layernorm(x2, ln2_g, ln2_b)
    m = jnp.dot(h2.astype(jnp.bfloat16), w1_ref[0],
                preferred_element_type=jnp.float32) + b1
    # TODO(synk): PyTorch nn.GELU default is exact erf; tanh approximation used here.
    m = jax.nn.gelu(m, approximate=True)
    m = jnp.dot(m.astype(jnp.bfloat16), w2_ref[0],
                preferred_element_type=jnp.float32) + b2
    x2 = x2 + m                                         # residual

    # NOTE: padded token rows become nonzero after layer 0 (LN beta / biases
    # propagate through them); they are masked as attention keys and never read
    # as outputs — re-mask if token pooling is ever added.
    tok_ref[...] = x2.reshape(Bb, Tp, D)

    # ---- last-layer epilogue: final LayerNorm + linear head on the CLS token ----
    @pl.when(layer == pl.num_programs(1) - 1)
    def _():
        cls = x2.reshape(Bb, Tp, D)[:, 0, :]            # (Bb, D)
        hc = _layernorm(cls, lng_ref[...], lnb_ref[...])
        o_ref[0] = (jnp.dot(hc.astype(jnp.bfloat16), hw_ref[...],
                            preferred_element_type=jnp.float32) + hb_ref[...])


# ------------------------------ wrapper / sizing ------------------------------

def _num_tensorcores():
    # v7x has two TensorCores per chip, each with its own HBM path, so splitting
    # the batch across them is free even in the weight-DMA-bound regime.  On
    # single-TC v5e/v6e (and shared-HBM megacore chips) we never split: each
    # extra batch block re-streams the full per-layer weight set.
    try:
        kind = jax.devices()[0].device_kind.lower()
    except Exception:
        return 1
    return 2 if 'v7' in kind else 1


def _pick_batch_block(B, Tp, n_cores, max_rows=512):
    # At most one batch block per TensorCore while below the weight-DMA
    # crossover; cap the block so activations stay comfortably inside VMEM
    # (by which point each block is past the MXU/DMA crossover anyway).
    Bb = max(1, B // max(n_cores, 1))
    Bb = max(1, min(Bb, max(1, max_rows // Tp)))
    while B % Bb:
        Bb -= 1
    return Bb


def _vmem_limit_bytes(Bb, Tp, Kp, D, Dh, N, Vmax):
    # ~2x double-buffered per-layer weights + resident operands + activation
    # temporaries + headroom for Mosaic's internal scratch.  Never request the
    # full physical VMEM (64 MiB on v7x).
    M = Bb * Tp
    per_layer_w = (D * 3 * D + D * D + D * Dh + Dh * D) * 2 + 8 * Vmax * 4
    resident_in = (Bb * Tp * Kp * 4 + Kp * D * 2 + Tp * D * 4
                   + 2 * D * 4 + D * N * 2 + N * 4 + Bb * N * 4)
    activations = Bb * Tp * D * 4 + 4 * M * max(3 * D, Dh) * 4 + Bb * Tp * Tp * 4
    est = 2 * per_layer_w + 2 * resident_in + activations + (8 << 20)
    est = ((est + (1 << 20) - 1) >> 20) << 20
    return int(min(max(est, 16 << 20), 48 << 20))


def vit_fused_forward(patches, emb_const, params, cfg, *, seq_len):
    B, Tp, Kp = patches.shape
    bp = params['blocks']
    L, D, H3 = bp['wqkv'].shape
    Dh = bp['w1'].shape[2]
    N = params['head_w'].shape[1]
    Vmax = bp['vec'].shape[2]

    Bb = _pick_batch_block(B, Tp, _num_tensorcores())
    nb = B // Bb

    kernel = functools.partial(_vit_kernel, num_heads=cfg['num_heads'], seq_len=seq_len)

    def cspec(*dims):               # constant operand: resident, DMA'd once
        nd = len(dims)
        return pl.BlockSpec(dims, lambda b, l: (0,) * nd)

    def lspec(*dims):               # per-layer weights streamed along the inner axis
        nd = len(dims)
        return pl.BlockSpec((1,) + dims, lambda b, l: (l,) + (0,) * nd)

    out = pl.pallas_call(
        kernel,
        out_shape=jax.ShapeDtypeStruct((nb, Bb, N), jnp.float32),
        grid=(nb, L),
        in_specs=[
            pl.BlockSpec((Bb, Tp, Kp), lambda b, l: (b, 0, 0)),   # patches (CLS row 0 = zeros)
            cspec(Kp, D),                                         # patch embed weight (bf16)
            cspec(Tp, D),                                         # cls + pos + patch bias
            lspec(D, H3),                                         # wqkv (bf16)
            lspec(D, D),                                          # wo   (bf16)
            lspec(D, Dh),                                         # w1   (bf16)
            lspec(Dh, D),                                         # w2   (bf16)
            lspec(8, Vmax),                                       # packed per-layer vectors
            cspec(1, D), cspec(1, D),                             # final LN gamma / beta
            cspec(D, N), cspec(1, N),                             # head weight / bias
        ],
        out_specs=pl.BlockSpec((1, Bb, N), lambda b, l: (b, 0, 0)),
        scratch_shapes=[pltpu.VMEM((Bb, Tp, D), jnp.float32)],    # resident token tensor
        compiler_params=pltpu.CompilerParams(
            dimension_semantics=("parallel", "arbitrary"),
            vmem_limit_bytes=_vmem_limit_bytes(Bb, Tp, Kp, D, Dh, N, Vmax)),
    )(patches, params['patch_w'], emb_const,
      bp['wqkv'], bp['wo'], bp['w1'], bp['w2'], bp['vec'],
      params['ln_g'], params['ln_b'], params['head_w'], params['head_b'])
    return out.reshape(B, N)


# ------------------------------ model forward ------------------------------

def vit_feature_wrapper_forward(obs, params, cfg):
    """obs: (B, H, W, 3) or (H, W, 3) screen in [0, 255] (or dict with 'screen')."""
    if isinstance(obs, dict):
        obs = obs['screen']
    if obs.ndim == 3:
        obs = obs[None]
    x = obs.astype(jnp.float32) / 255.0
    # TODO(synk): torchvision antialiased bilinear resize has no clean Pallas
    # equivalent; inputs are assumed to already be at img_size (resize == identity).
    B, Himg, Wimg, C = x.shape
    ps = cfg['patch_size']
    gh, gw = Himg // ps, Wimg // ps
    P = gh * gw
    T = P + 1
    Tp = params['pos'].shape[0]
    K = ps * ps * C
    Kp = params['patch_w'].shape[0]

    # Patch unfold (stride-ps conv == unfold + matmul); matmul runs in Pallas.
    patches = x.reshape(B, gh, ps, gw, ps, C).transpose(0, 1, 3, 2, 4, 5).reshape(B, P, K)
    # Row 0 reserved for the CLS token (zero patch); pad rows to Tp, cols to Kp.
    patches = jnp.pad(patches, ((0, 0), (1, Tp - 1 - P), (0, Kp - K)))

    # Fold CLS token + positional embedding + patch bias into one (Tp, D) add;
    # padded rows stay exactly zero.
    row = jnp.arange(Tp)[:, None]
    emb_const = params['pos'] + jnp.where(row == 0, params['cls'],
                                          jnp.where(row < T, params['patch_b'], 0.0))

    out = vit_fused_forward(patches, emb_const, params, cfg, seq_len=T)

    # Mirror of `.squeeze(0)` in the PyTorch wrapper.
    return out[0] if out.shape[0] == 1 else out


def init_params(key, cfg):
    D = cfg['embed_dim']
    ps = cfg['patch_size']
    C = cfg['in_channels']
    Dh = int(D * cfg['mlp_ratio'])
    ncls = cfg['num_classes']
    L = cfg['num_blocks']
    gh = cfg['img_size'][0] // ps
    gw = cfg['img_size'][1] // ps
    P = gh * gw
    T = P + 1
    Tp = _round_up(T, 16)               # multiple of 16 so bf16 rows pack into (16,128) vregs
    K = ps * ps * C
    Kp = _round_up(K, 128)
    Vmax = max(3 * D, Dh, 128)

    keys = jax.random.split(key, 8)

    def nrm(k, shape, std=0.02):
        return (std * jax.random.normal(k, shape)).astype(jnp.float32)

    patch_w = jnp.zeros((Kp, D), jnp.float32).at[:K].set(nrm(keys[0], (K, D)))
    pos = jnp.zeros((Tp, D), jnp.float32).at[:T].set(nrm(keys[2], (T, D)))

    # The 8 small per-layer vectors packed into one (L, 8, Vmax) array:
    # rows = [ln1_g, ln1_b, bqkv, bo, ln2_g, ln2_b, b1, b2]  -> one DMA per layer.
    vec = jnp.zeros((L, 8, Vmax), jnp.float32)
    vec = vec.at[:, 0, :D].set(1.0)     # ln1 gamma
    vec = vec.at[:, 4, :D].set(1.0)     # ln2 gamma

    return dict(
        patch_w=patch_w.astype(jnp.bfloat16),
        patch_b=jnp.zeros((1, D), jnp.float32),
        cls=nrm(keys[1], (1, D)),
        pos=pos,
        ln_g=jnp.ones((1, D), jnp.float32),
        ln_b=jnp.zeros((1, D), jnp.float32),
        head_w=nrm(keys[3], (D, ncls)).astype(jnp.bfloat16),
        head_b=jnp.zeros((1, ncls), jnp.float32),
        blocks=dict(   # per-layer weights stacked on a leading L axis
            wqkv=nrm(keys[4], (L, D, 3 * D)).astype(jnp.bfloat16),
            wo=nrm(keys[5], (L, D, D)).astype(jnp.bfloat16),
            w1=nrm(keys[6], (L, D, Dh)).astype(jnp.bfloat16),
            w2=nrm(keys[7], (L, Dh, D)).astype(jnp.bfloat16),
            vec=vec,
        ),
    )


if __name__ == "__main__":
    # Scaled-down config consistent with the module's structure
    # (full model: img 84x84, patch 14, embed 512, 6 blocks, 4 heads, mlp_ratio 2.0).
    cfg = dict(img_size=(28, 28), patch_size=14, in_channels=3,
               num_classes=128, embed_dim=128, num_blocks=2, num_heads=4, mlp_ratio=2.0)

    key = jax.random.PRNGKey(0)
    kobs, kparam = jax.random.split(key)

    B = 2
    obs = jax.random.uniform(kobs, (B, cfg['img_size'][0], cfg['img_size'][1], 3),
                             jnp.float32, 0.0, 255.0)
    params = init_params(kparam, cfg)

    fwd = jax.jit(functools.partial(vit_feature_wrapper_forward, cfg=cfg))
    out = jax.block_until_ready(fwd(obs, params))

    assert out.shape == (B, cfg['num_classes']), out.shape
    assert bool(jnp.all(jnp.isfinite(out)))
    print("KERNEL_OK")
</pallas_src>

<mosaic_0001>
module attributes {stable_mosaic.version = 11 : i64} {
  func.func @_vit_kernel(%arg0: i32, %arg1: i32, %arg2: memref<2x16x640xf32, #tpu.memory_space<vmem>>, %arg3: memref<640x128xbf16, #tpu.memory_space<vmem>>, %arg4: memref<16x128xf32, #tpu.memory_space<vmem>>, %arg5: memref<1x128x384xbf16, #tpu.memory_space<vmem>>, %arg6: memref<1x128x128xbf16, #tpu.memory_space<vmem>>, %arg7: memref<1x128x256xbf16, #tpu.memory_space<vmem>>, %arg8: memref<1x256x128xbf16, #tpu.memory_space<vmem>>, %arg9: memref<1x8x384xf32, #tpu.memory_space<vmem>>, %arg10: memref<1x128xf32, #tpu.memory_space<vmem>>, %arg11: memref<1x128xf32, #tpu.memory_space<vmem>>, %arg12: memref<128x128xbf16, #tpu.memory_space<vmem>>, %arg13: memref<1x128xf32, #tpu.memory_space<vmem>>, %arg14: memref<1x2x128xf32, #tpu.memory_space<vmem>>, %arg15: memref<2x16x128xf32, #tpu.memory_space<vmem>>) attributes {dimension_semantics = [#tpu.dimension_semantics<parallel>, #tpu.dimension_semantics<arbitrary>], iteration_bounds = array<i64: 1, 2>, scalar_prefetch = 0 : i64, scratch_operands = 1 : i64, tpu.core_type = #tpu.core_type<tc>, window_params = [{transform_indices = @transform_0, window_bounds = array<i64: 2, 16, 640>}, {pipeline_mode = #tpu.pipeline_mode<synchronous>, transform_indices = @transform_1, window_bounds = array<i64: 640, 128>}, {pipeline_mode = #tpu.pipeline_mode<synchronous>, transform_indices = @transform_2, window_bounds = array<i64: 16, 128>}, {transform_indices = @transform_3, window_bounds = array<i64: 1, 128, 384>}, {transform_indices = @transform_4, window_bounds = array<i64: 1, 128, 128>}, {transform_indices = @transform_5, window_bounds = array<i64: 1, 128, 256>}, {transform_indices = @transform_6, window_bounds = array<i64: 1, 256, 128>}, {transform_indices = @transform_7, window_bounds = array<i64: 1, 8, 384>}, {pipeline_mode = #tpu.pipeline_mode<synchronous>, transform_indices = @transform_8, window_bounds = array<i64: 1, 128>}, {pipeline_mode = #tpu.pipeline_mode<synchronous>, transform_indices = @transform_9, window_bounds = array<i64: 1, 128>}, {pipeline_mode = #tpu.pipeline_mode<synchronous>, transform_indices = @transform_10, window_bounds = array<i64: 128, 128>}, {pipeline_mode = #tpu.pipeline_mode<synchronous>, transform_indices = @transform_11, window_bounds = array<i64: 1, 128>}, {transform_indices = @transform_12, window_bounds = array<i64: 1, 2, 128>}]} {
    %c0_i32 = arith.constant 0 : i32
    %0 = arith.cmpi eq, %arg1, %c0_i32 : i32
    %1 = arith.extui %0 : i1 to i32
    %c0_i32_0 = arith.constant 0 : i32
    %2 = arith.cmpi ne, %1, %c0_i32_0 : i32
    scf.if %2 {
      %c0_63 = arith.constant 0 : index
      %c0_64 = arith.constant 0 : index
      %c0_65 = arith.constant 0 : index
      %208 = vector.load %arg2[%c0_63, %c0_64, %c0_65] : memref<2x16x640xf32, #tpu.memory_space<vmem>>, vector<2x16x640xf32>
      %209 = arith.truncf %208 : vector<2x16x640xf32> to vector<2x16x640xbf16>
      %210 = vector.shape_cast %209 : vector<2x16x640xbf16> to vector<32x640xbf16>
      %c0_66 = arith.constant 0 : index
      %c0_67 = arith.constant 0 : index
      %211 = vector.load %arg3[%c0_66, %c0_67] : memref<640x128xbf16, #tpu.memory_space<vmem>>, vector<640x128xbf16>
      %cst_68 = arith.constant dense<0.000000e+00> : vector<32x128xf32>
      %212 = tpu.matmul %210, %211, %cst_68 {dimension_numbers = #tpu.dot_dimension_numbers<[1], [0], [0], [1], [0, 0, 1, 1], [], []>} : vector<32x640xbf16>, vector<640x128xbf16>, vector<32x128xf32> -> vector<32x128xf32>
      %213 = vector.shape_cast %212 : vector<32x128xf32> to vector<2x16x128xf32>
      %c0_69 = arith.constant 0 : index
      %c0_70 = arith.constant 0 : index
      %214 = vector.load %arg4[%c0_69, %c0_70] : memref<16x128xf32, #tpu.memory_space<vmem>>, vector<16x128xf32>
      %215 = vector.shape_cast %214 : vector<16x128xf32> to vector<1x16x128xf32>
      %216 = vector.broadcast %215 : vector<1x16x128xf32> to vector<2x16x128xf32>
      %217 = arith.addf %213, %216 : vector<2x16x128xf32>
      %c0_71 = arith.constant 0 : index
      %c0_72 = arith.constant 0 : index
      %c0_73 = arith.constant 0 : index
      %218 = vector.load %arg15[%c0_71, %c0_72, %c0_73] : memref<2x16x128xf32, #tpu.memory_space<vmem>>, vector<2x16x128xf32>
      tpu.vector_store %arg15[%c0_71, %c0_72, %c0_73], %217 {strides = array<i32>} : memref<2x16x128xf32, #tpu.memory_space<vmem>>, vector<2x16x128xf32>,
    } else {
    }
    %c0 = arith.constant 0 : index
    %c0_1 = arith.constant 0 : index
    %c0_2 = arith.constant 0 : index
    %3 = vector.load %arg15[%c0, %c0_1, %c0_2] : memref<2x16x128xf32, #tpu.memory_space<vmem>>, vector<2x16x128xf32>
    %4 = vector.shape_cast %3 : vector<2x16x128xf32> to vector<32x128xf32>
    %c0_3 = arith.constant 0 : index
    %c0_4 = arith.constant 0 : index
    %c0_5 = arith.constant 0 : index
    %5 = vector.load %arg9[%c0_3, %c0_4, %c0_5] : memref<1x8x384xf32, #tpu.memory_space<vmem>>, vector<1x8x384xf32>
    %6 = vector.shape_cast %5 : vector<1x8x384xf32> to vector<8x384xf32>
    %7 = vector.extract_strided_slice %6 {offsets = [0, 0], sizes = [1, 128], strides = [1, 1]} : vector<8x384xf32> to vector<1x128xf32>
    %8 = vector.extract_strided_slice %6 {offsets = [1, 0], sizes = [1, 128], strides = [1, 1]} : vector<8x384xf32> to vector<1x128xf32>
    %9 = vector.extract_strided_slice %6 {offsets = [2, 0], sizes = [1, 384], strides = [1, 1]} : vector<8x384xf32> to vector<1x384xf32>
    %10 = vector.extract_strided_slice %6 {offsets = [3, 0], sizes = [1, 128], strides = [1, 1]} : vector<8x384xf32> to vector<1x128xf32>
    %11 = vector.extract_strided_slice %6 {offsets = [4, 0], sizes = [1, 128], strides = [1, 1]} : vector<8x384xf32> to vector<1x128xf32>
    %12 = vector.extract_strided_slice %6 {offsets = [5, 0], sizes = [1, 128], strides = [1, 1]} : vector<8x384xf32> to vector<1x128xf32>
    %13 = vector.extract_strided_slice %6 {offsets = [6, 0], sizes = [1, 256], strides = [1, 1]} : vector<8x384xf32> to vector<1x256xf32>
    %14 = vector.extract_strided_slice %6 {offsets = [7, 0], sizes = [1, 128], strides = [1, 1]} : vector<8x384xf32> to vector<1x128xf32>
    %cst = arith.constant dense<0.000000e+00> : vector<32xf32>
    %15 = vector.multi_reduction <add>, %4, %cst [1] : vector<32x128xf32> to vector<32xf32>
    %16 = vector.shape_cast %15 : vector<32xf32> to vector<32x1xf32>
    %cst_6 = arith.constant 1.280000e+02 : f32
    %17 = vector.broadcast %cst_6 : f32 to vector<32x1xf32>
    %18 = arith.divf %16, %17 : vector<32x1xf32>
    %19 = vector.broadcast %18 : vector<32x1xf32> to vector<32x128xf32>
    %20 = arith.subf %4, %19 : vector<32x128xf32>
    %21 = arith.mulf %20, %20 : vector<32x128xf32>
    %cst_7 = arith.constant dense<0.000000e+00> : vector<32xf32>
    %22 = vector.multi_reduction <add>, %21, %cst_7 [1] : vector<32x128xf32> to vector<32xf32>
    %23 = vector.shape_cast %22 : vector<32xf32> to vector<32x1xf32>
    %cst_8 = arith.constant 1.280000e+02 : f32
    %24 = vector.broadcast %cst_8 : f32 to vector<32x1xf32>
    %25 = arith.divf %23, %24 : vector<32x1xf32>
    %26 = vector.broadcast %18 : vector<32x1xf32> to vector<32x128xf32>
    %27 = arith.subf %4, %26 : vector<32x128xf32>
    %cst_9 = arith.constant 9.99999974E-6 : f32
    %28 = vector.broadcast %cst_9 : f32 to vector<32x1xf32>
    %29 = arith.addf %25, %28 : vector<32x1xf32>
    %30 = math.rsqrt %29 : vector<32x1xf32>
    %31 = vector.broadcast %30 : vector<32x1xf32> to vector<32x128xf32>
    %32 = arith.mulf %27, %31 : vector<32x128xf32>
    %33 = vector.broadcast %7 : vector<1x128xf32> to vector<32x128xf32>
    %34 = arith.mulf %32, %33 : vector<32x128xf32>
    %35 = vector.broadcast %8 : vector<1x128xf32> to vector<32x128xf32>
    %36 = arith.addf %34, %35 : vector<32x128xf32>
    %37 = arith.truncf %36 : vector<32x128xf32> to vector<32x128xbf16>
    %c0_10 = arith.constant 0 : index
    %c0_11 = arith.constant 0 : index
    %c0_12 = arith.constant 0 : index
    %38 = vector.load %arg5[%c0_10, %c0_11, %c0_12] : memref<1x128x384xbf16, #tpu.memory_space<vmem>>, vector<1x128x384xbf16>
    %39 = vector.shape_cast %38 : vector<1x128x384xbf16> to vector<128x384xbf16>
    %cst_13 = arith.constant dense<0.000000e+00> : vector<32x384xf32>
    %40 = tpu.matmul %37, %39, %cst_13 {dimension_numbers = #tpu.dot_dimension_numbers<[1], [0], [0], [1], [0, 0, 1, 1], [], []>} : vector<32x128xbf16>, vector<128x384xbf16>, vector<32x384xf32> -> vector<32x384xf32>
    %41 = vector.broadcast %9 : vector<1x384xf32> to vector<32x384xf32>
    %42 = arith.addf %40, %41 : vector<32x384xf32>
    %43 = tpu.iota {dimensions = array<i32: 2>} : vector<2x16x16xi32>
    %c5_i32 = arith.constant 5 : i32
    %44 = vector.broadcast %c5_i32 : i32 to vector<2x16x16xi32>
    %45 = arith.cmpi slt, %43, %44 : vector<2x16x16xi32>
    %46 = vector.extract_strided_slice %42 {offsets = [0, 0], sizes = [32, 32], strides = [1, 1]} : vector<32x384xf32> to vector<32x32xf32>
    %47 = arith.truncf %46 : vector<32x32xf32> to vector<32x32xbf16>
    %48 = vector.shape_cast %47 : vector<32x32xbf16> to vector<2x16x32xbf16>
    %49 = vector.extract_strided_slice %42 {offsets = [0, 128], sizes = [32, 32], strides = [1, 1]} : vector<32x384xf32> to vector<32x32xf32>
    %50 = arith.truncf %49 : vector<32x32xf32> to vector<32x32xbf16>
    %51 = vector.shape_cast %50 : vector<32x32xbf16> to vector<2x16x32xbf16>
    %52 = vector.extract_strided_slice %42 {offsets = [0, 256], sizes = [32, 32], strides = [1, 1]} : vector<32x384xf32> to vector<32x32xf32>
    %53 = arith.truncf %52 : vector<32x32xf32> to vector<32x32xbf16>
    %54 = vector.shape_cast %53 : vector<32x32xbf16> to vector<2x16x32xbf16>
    "tpu.trace_start"() <{level = 10 : i32, message = "bqd,bkd->bqk"}> : () -> ()
    %cst_14 = arith.constant dense<0.000000e+00> : vector<2x16x16xf32>
    %55 = tpu.matmul %48, %51, %cst_14 {dimension_numbers = #tpu.dot_dimension_numbers<[2], [2], [1], [1], [0, 0, 0, 1, 1, 1], [0], [0]>} : vector<2x16x32xbf16>, vector<2x16x32xbf16>, vector<2x16x16xf32> -> vector<2x16x16xf32>
    "tpu.trace_stop"() : () -> ()
    %cst_15 = arith.constant 0.176776692 : f32
    %56 = vector.broadcast %cst_15 : f32 to vector<2x16x16xf32>
    %57 = arith.mulf %55, %56 : vector<2x16x16xf32>
    %cst_16 = arith.constant -1.000000e+30 : f32
    %58 = vector.broadcast %cst_16 : f32 to vector<2x16x16xf32>
    %59 = arith.select %45, %57, %58 : vector<2x16x16xi1>, vector<2x16x16xf32>
    %cst_17 = arith.constant dense<0xFF800000> : vector<2x16xf32>
    %60 = vector.multi_reduction <maximumf>, %59, %cst_17 [2] : vector<2x16x16xf32> to vector<2x16xf32>
    %61 = vector.shape_cast %60 : vector<2x16xf32> to vector<2x16x1xf32>
    %62 = vector.broadcast %61 : vector<2x16x1xf32> to vector<2x16x16xf32>
    %63 = arith.subf %59, %62 : vector<2x16x16xf32>
    %64 = math.exp %63 : vector<2x16x16xf32>
    %cst_18 = arith.constant dense<0.000000e+00> : vector<2x16xf32>
    %65 = vector.multi_reduction <add>, %64, %cst_18 [2] : vector<2x16x16xf32> to vector<2x16xf32>
    %66 = vector.shape_cast %65 : vector<2x16xf32> to vector<2x16x1xf32>
    %67 = vector.broadcast %66 : vector<2x16x1xf32> to vector<2x16x16xf32>
    %68 = arith.divf %64, %67 : vector<2x16x16xf32>
    %69 = arith.truncf %68 : vector<2x16x16xf32> to vector<2x16x16xbf16>
    "tpu.trace_start"() <{level = 10 : i32, message = "bqk,bkd->bqd"}> : () -> ()
    %cst_19 = arith.constant dense<0.000000e+00> : vector<2x16x32xf32>
    %70 = tpu.matmul %69, %54, %cst_19 {dimension_numbers = #tpu.dot_dimension_numbers<[2], [1], [1], [2], [0, 0, 0, 1, 1, 2], [0], [0]>} : vector<2x16x16xbf16>, vector<2x16x32xbf16>, vector<2x16x32xf32> -> vector<2x16x32xf32>
    "tpu.trace_stop"() : () -> ()
    %71 = vector.extract_strided_slice %42 {offsets = [0, 32], sizes = [32, 32], strides = [1, 1]} : vector<32x384xf32> to vector<32x32xf32>
    %72 = arith.truncf %71 : vector<32x32xf32> to vector<32x32xbf16>
    %73 = vector.shape_cast %72 : vector<32x32xbf16> to vector<2x16x32xbf16>
    %74 = vector.extract_strided_slice %42 {offsets = [0, 160], sizes = [32, 32], strides = [1, 1]} : vector<32x384xf32> to vector<32x32xf32>
    %75 = arith.truncf %74 : vector<32x32xf32> to vector<32x32xbf16>
    %76 = vector.shape_cast %75 : vector<32x32xbf16> to vector<2x16x32xbf16>
    %77 = vector.extract_strided_slice %42 {offsets = [0, 288], sizes = [32, 32], strides = [1, 1]} : vector<32x384xf32> to vector<32x32xf32>
    %78 = arith.truncf %77 : vector<32x32xf32> to vector<32x32xbf16>
    %79 = vector.shape_cast %78 : vector<32x32xbf16> to vector<2x16x32xbf16>
    "tpu.trace_start"() <{level = 10 : i32, message = "bqd,bkd->bqk"}> : () -> ()
    %cst_20 = arith.constant dense<0.000000e+00> : vector<2x16x16xf32>
    %80 = tpu.matmul %73, %76, %cst_20 {dimension_numbers = #tpu.dot_dimension_numbers<[2], [2], [1], [1], [0, 0, 0, 1, 1, 1], [0], [0]>} : vector<2x16x32xbf16>, vector<2x16x32xbf16>, vector<2x16x16xf32> -> vector<2x16x16xf32>
    "tpu.trace_stop"() : () -> ()
    %cst_21 = arith.constant 0.176776692 : f32
    %81 = vector.broadcast %cst_21 : f32 to vector<2x16x16xf32>
    %82 = arith.mulf %80, %81 : vector<2x16x16xf32>
    %cst_22 = arith.constant -1.000000e+30 : f32
    %83 = vector.broadcast %cst_22 : f32 to vector<2x16x16xf32>
    %84 = arith.select %45, %82, %83 : vector<2x16x16xi1>, vector<2x16x16xf32>
    %cst_23 = arith.constant dense<0xFF800000> : vector<2x16xf32>
    %85 = vector.multi_reduction <maximumf>, %84, %cst_23 [2] : vector<2x16x16xf32> to vector<2x16xf32>
    %86 = vector.shape_cast %85 : vector<2x16xf32> to vector<2x16x1xf32>
    %87 = vector.broadcast %86 : vector<2x16x1xf32> to vector<2x16x16xf32>
    %88 = arith.subf %84, %87 : vector<2x16x16xf32>
    %89 = math.exp %88 : vector<2x16x16xf32>
    %cst_24 = arith.constant dense<0.000000e+00> : vector<2x16xf32>
    %90 = vector.multi_reduction <add>, %89, %cst_24 [2] : vector<2x16x16xf32> to vector<2x16xf32>
    %91 = vector.shape_cast %90 : vector<2x16xf32> to vector<2x16x1xf32>
    %92 = vector.broadcast %91 : vector<2x16x1xf32> to vector<2x16x16xf32>
    %93 = arith.divf %89, %92 : vector<2x16x16xf32>
    %94 = arith.truncf %93 : vector<2x16x16xf32> to vector<2x16x16xbf16>
    "tpu.trace_start"() <{level = 10 : i32, message = "bqk,bkd->bqd"}> : () -> ()
    %cst_25 = arith.constant dense<0.000000e+00> : vector<2x16x32xf32>
    %95 = tpu.matmul %94, %79, %cst_25 {dimension_numbers = #tpu.dot_dimension_numbers<[2], [1], [1], [2], [0, 0, 0, 1, 1, 2], [0], [0]>} : vector<2x16x16xbf16>, vector<2x16x32xbf16>, vector<2x16x32xf32> -> vector<2x16x32xf32>
    "tpu.trace_stop"() : () -> ()
    %96 = vector.extract_strided_slice %42 {offsets = [0, 64], sizes = [32, 32], strides = [1, 1]} : vector<32x384xf32> to vector<32x32xf32>
    %97 = arith.truncf %96 : vector<32x32xf32> to vector<32x32xbf16>
    %98 = vector.shape_cast %97 : vector<32x32xbf16> to vector<2x16x32xbf16>
    %99 = vector.extract_strided_slice %42 {offsets = [0, 192], sizes = [32, 32], strides = [1, 1]} : vector<32x384xf32> to vector<32x32xf32>
    %100 = arith.truncf %99 : vector<32x32xf32> to vector<32x32xbf16>
    %101 = vector.shape_cast %100 : vector<32x32xbf16> to vector<2x16x32xbf16>
    %102 = vector.extract_strided_slice %42 {offsets = [0, 320], sizes = [32, 32], strides = [1, 1]} : vector<32x384xf32> to vector<32x32xf32>
    %103 = arith.truncf %102 : vector<32x32xf32> to vector<32x32xbf16>
    %104 = vector.shape_cast %103 : vector<32x32xbf16> to vector<2x16x32xbf16>
    "tpu.trace_start"() <{level = 10 : i32, message = "bqd,bkd->bqk"}> : () -> ()
    %cst_26 = arith.constant dense<0.000000e+00> : vector<2x16x16xf32>
    %105 = tpu.matmul %98, %101, %cst_26 {dimension_numbers = #tpu.dot_dimension_numbers<[2], [2], [1], [1], [0, 0, 0, 1, 1, 1], [0], [0]>} : vector<2x16x32xbf16>, vector<2x16x32xbf16>, vector<2x16x16xf32> -> vector<2x16x16xf32>
    "tpu.trace_stop"() : () -> ()
    %cst_27 = arith.constant 0.176776692 : f32
    %106 = vector.broadcast %cst_27 : f32 to vector<2x16x16xf32>
    %107 = arith.mulf %105, %106 : vector<2x16x16xf32>
    %cst_28 = arith.constant -1.000000e+30 : f32
    %108 = vector.broadcast %cst_28 : f32 to vector<2x16x16xf32>
    %109 = arith.select %45, %107, %108 : vector<2x16x16xi1>, vector<2x16x16xf32>
    %cst_29 = arith.constant dense<0xFF800000> : vector<2x16xf32>
    %110 = vector.multi_reduction <maximumf>, %109, %cst_29 [2] : vector<2x16x16xf32> to vector<2x16xf32>
    %111 = vector.shape_cast %110 : vector<2x16xf32> to vector<2x16x1xf32>
    %112 = vector.broadcast %111 : vector<2x16x1xf32> to vector<2x16x16xf32>
    %113 = arith.subf %109, %112 : vector<2x16x16xf32>
    %114 = math.exp %113 : vector<2x16x16xf32>
    %cst_30 = arith.constant dense<0.000000e+00> : vector<2x16xf32>
    %115 = vector.multi_reduction <add>, %114, %cst_30 [2] : vector<2x16x16xf32> to vector<2x16xf32>
    %116 = vector.shape_cast %115 : vector<2x16xf32> to vector<2x16x1xf32>
    %117 = vector.broadcast %116 : vector<2x16x1xf32> to vector<2x16x16xf32>
    %118 = arith.divf %114, %117 : vector<2x16x16xf32>
    %119 = arith.truncf %118 : vector<2x16x16xf32> to vector<2x16x16xbf16>
    "tpu.trace_start"() <{level = 10 : i32, message = "bqk,bkd->bqd"}> : () -> ()
    %cst_31 = arith.constant dense<0.000000e+00> : vector<2x16x32xf32>
    %120 = tpu.matmul %119, %104, %cst_31 {dimension_numbers = #tpu.dot_dimension_numbers<[2], [1], [1], [2], [0, 0, 0, 1, 1, 2], [0], [0]>} : vector<2x16x16xbf16>, vector<2x16x32xbf16>, vector<2x16x32xf32> -> vector<2x16x32xf32>
    "tpu.trace_stop"() : () -> ()
    %121 = vector.extract_strided_slice %42 {offsets = [0, 96], sizes = [32, 32], strides = [1, 1]} : vector<32x384xf32> to vector<32x32xf32>
    %122 = arith.truncf %121 : vector<32x32xf32> to vector<32x32xbf16>
    %123 = vector.shape_cast %122 : vector<32x32xbf16> to vector<2x16x32xbf16>
    %124 = vector.extract_strided_slice %42 {offsets = [0, 224], sizes = [32, 32], strides = [1, 1]} : vector<32x384xf32> to vector<32x32xf32>
    %125 = arith.truncf %124 : vector<32x32xf32> to vector<32x32xbf16>
    %126 = vector.shape_cast %125 : vector<32x32xbf16> to vector<2x16x32xbf16>
    %127 = vector.extract_strided_slice %42 {offsets = [0, 352], sizes = [32, 32], strides = [1, 1]} : vector<32x384xf32> to vector<32x32xf32>
    %128 = arith.truncf %127 : vector<32x32xf32> to vector<32x32xbf16>
    %129 = vector.shape_cast %128 : vector<32x32xbf16> to vector<2x16x32xbf16>
    "tpu.trace_start"() <{level = 10 : i32, message = "bqd,bkd->bqk"}> : () -> ()
    %cst_32 = arith.constant dense<0.000000e+00> : vector<2x16x16xf32>
    %130 = tpu.matmul %123, %126, %cst_32 {dimension_numbers = #tpu.dot_dimension_numbers<[2], [2], [1], [1], [0, 0, 0, 1, 1, 1], [0], [0]>} : vector<2x16x32xbf16>, vector<2x16x32xbf16>, vector<2x16x16xf32> -> vector<2x16x16xf32>
    "tpu.trace_stop"() : () -> ()
    %cst_33 = arith.constant 0.176776692 : f32
    %131 = vector.broadcast %cst_33 : f32 to vector<2x16x16xf32>
    %132 = arith.mulf %130, %131 : vector<2x16x16xf32>
    %cst_34 = arith.constant -1.000000e+30 : f32
    %133 = vector.broadcast %cst_34 : f32 to vector<2x16x16xf32>
    %134 = arith.select %45, %132, %133 : vector<2x16x16xi1>, vector<2x16x16xf32>
    %cst_35 = arith.constant dense<0xFF800000> : vector<2x16xf32>
    %135 = vector.multi_reduction <maximumf>, %134, %cst_35 [2] : vector<2x16x16xf32> to vector<2x16xf32>
    %136 = vector.shape_cast %135 : vector<2x16xf32> to vector<2x16x1xf32>
    %137 = vector.broadcast %136 : vector<2x16x1xf32> to vector<2x16x16xf32>
    %138 = arith.subf %134, %137 : vector<2x16x16xf32>
    %139 = math.exp %138 : vector<2x16x16xf32>
    %cst_36 = arith.constant dense<0.000000e+00> : vector<2x16xf32>
    %140 = vector.multi_reduction <add>, %139, %cst_36 [2] : vector<2x16x16xf32> to vector<2x16xf32>
    %141 = vector.shape_cast %140 : vector<2x16xf32> to vector<2x16x1xf32>
    %142 = vector.broadcast %141 : vector<2x16x1xf32> to vector<2x16x16xf32>
    %143 = arith.divf %139, %142 : vector<2x16x16xf32>
    %144 = arith.truncf %143 : vector<2x16x16xf32> to vector<2x16x16xbf16>
    "tpu.trace_start"() <{level = 10 : i32, message = "bqk,bkd->bqd"}> : () -> ()
    %cst_37 = arith.constant dense<0.000000e+00> : vector<2x16x32xf32>
    %145 = tpu.matmul %144, %129, %cst_37 {dimension_numbers = #tpu.dot_dimension_numbers<[2], [1], [1], [2], [0, 0, 0, 1, 1, 2], [0], [0]>} : vector<2x16x16xbf16>, vector<2x16x32xbf16>, vector<2x16x32xf32> -> vector<2x16x32xf32>
    "tpu.trace_stop"() : () -> ()
    %146 = tpu.concatenate %70, %95, %120, %145 in 2 : vector<2x16x32xf32>, vector<2x16x32xf32>, vector<2x16x32xf32>, vector<2x16x32xf32> -> vector<2x16x128xf32>
    %147 = vector.shape_cast %146 : vector<2x16x128xf32> to vector<32x128xf32>
    %148 = arith.truncf %147 : vector<32x128xf32> to vector<32x128xbf16>
    %c0_38 = arith.constant 0 : index
    %c0_39 = arith.constant 0 : index
    %c0_40 = arith.constant 0 : index
    %149 = vector.load %arg6[%c0_38, %c0_39, %c0_40] : memref<1x128x128xbf16, #tpu.memory_space<vmem>>, vector<1x128x128xbf16>
    %150 = vector.shape_cast %149 : vector<1x128x128xbf16> to vector<128x128xbf16>
    %cst_41 = arith.constant dense<0.000000e+00> : vector<32x128xf32>
    %151 = tpu.matmul %148, %150, %cst_41 {dimension_numbers = #tpu.dot_dimension_numbers<[1], [0], [0], [1], [0, 0, 1, 1], [], []>} : vector<32x128xbf16>, vector<128x128xbf16>, vector<32x128xf32> -> vector<32x128xf32>
    %152 = vector.broadcast %10 : vector<1x128xf32> to vector<32x128xf32>
    %153 = arith.addf %151, %152 : vector<32x128xf32>
    %154 = arith.addf %4, %153 : vector<32x128xf32>
    %cst_42 = arith.constant dense<0.000000e+00> : vector<32xf32>
    %155 = vector.multi_reduction <add>, %154, %cst_42 [1] : vector<32x128xf32> to vector<32xf32>
    %156 = vector.shape_cast %155 : vector<32xf32> to vector<32x1xf32>
    %cst_43 = arith.constant 1.280000e+02 : f32
    %157 = vector.broadcast %cst_43 : f32 to vector<32x1xf32>
    %158 = arith.divf %156, %157 : vector<32x1xf32>
    %159 = vector.broadcast %158 : vector<32x1xf32> to vector<32x128xf32>
    %160 = arith.subf %154, %159 : vector<32x128xf32>
    %161 = arith.mulf %160, %160 : vector<32x128xf32>
    %cst_44 = arith.constant dense<0.000000e+00> : vector<32xf32>
    %162 = vector.multi_reduction <add>, %161, %cst_44 [1] : vector<32x128xf32> to vector<32xf32>
    %163 = vector.shape_cast %162 : vector<32xf32> to vector<32x1xf32>
    %cst_45 = arith.constant 1.280000e+02 : f32
    %164 = vector.broadcast %cst_45 : f32 to vector<32x1xf32>
    %165 = arith.divf %163, %164 : vector<32x1xf32>
    %166 = vector.broadcast %158 : vector<32x1xf32> to vector<32x128xf32>
    %167 = arith.subf %154, %166 : vector<32x128xf32>
    %cst_46 = arith.constant 9.99999974E-6 : f32
    %168 = vector.broadcast %cst_46 : f32 to vector<32x1xf32>
    %169 = arith.addf %165, %168 : vector<32x1xf32>
    %170 = math.rsqrt %169 : vector<32x1xf32>
    %171 = vector.broadcast %170 : vector<32x1xf32> to vector<32x128xf32>
    %172 = arith.mulf %167, %171 : vector<32x128xf32>
    %173 = vector.broadcast %11 : vector<1x128xf32> to vector<32x128xf32>
    %174 = arith.mulf %172, %173 : vector<32x128xf32>
    %175 = vector.broadcast %12 : vector<1x128xf32> to vector<32x128xf32>
    %176 = arith.addf %174, %175 : vector<32x128xf32>
    %177 = arith.truncf %176 : vector<32x128xf32> to vector<32x128xbf16>
    %c0_47 = arith.constant 0 : index
    %c0_48 = arith.constant 0 : index
    %c0_49 = arith.constant 0 : index
    %178 = vector.load %arg7[%c0_47, %c0_48, %c0_49] : memref<1x128x256xbf16, #tpu.memory_space<vmem>>, vector<1x128x256xbf16>
    %179 = vector.shape_cast %178 : vector<1x128x256xbf16> to vector<128x256xbf16>
    %cst_50 = arith.constant dense<0.000000e+00> : vector<32x256xf32>
    %180 = tpu.matmul %177, %179, %cst_50 {dimension_numbers = #tpu.dot_dimension_numbers<[1], [0], [0], [1], [0, 0, 1, 1], [], []>} : vector<32x128xbf16>, vector<128x256xbf16>, vector<32x256xf32> -> vector<32x256xf32>
    %181 = vector.broadcast %13 : vector<1x256xf32> to vector<32x256xf32>
    %182 = arith.addf %180, %181 : vector<32x256xf32>
    %183 = arith.mulf %182, %182 : vector<32x256xf32>
    %184 = arith.mulf %182, %183 : vector<32x256xf32>
    %cst_51 = arith.constant 4.471500e-02 : f32
    %185 = vector.broadcast %cst_51 : f32 to vector<32x256xf32>
    %186 = arith.mulf %185, %184 : vector<32x256xf32>
    %187 = arith.addf %182, %186 : vector<32x256xf32>
    %cst_52 = arith.constant 0.797884583 : f32
    %188 = vector.broadcast %cst_52 : f32 to vector<32x256xf32>
    %189 = arith.mulf %188, %187 : vector<32x256xf32>
    %190 = math.tanh %189 : vector<32x256xf32>
    %cst_53 = arith.constant 1.000000e+00 : f32
    %191 = vector.broadcast %cst_53 : f32 to vector<32x256xf32>
    %192 = arith.addf %191, %190 : vector<32x256xf32>
    %cst_54 = arith.constant 5.000000e-01 : f32
    %193 = vector.broadcast %cst_54 : f32 to vector<32x256xf32>
    %194 = arith.mulf %193, %192 : vector<32x256xf32>
    %195 = arith.mulf %182, %194 : vector<32x256xf32>
    %196 = arith.truncf %195 : vector<32x256xf32> to vector<32x256xbf16>
    %c0_55 = arith.constant 0 : index
    %c0_56 = arith.constant 0 : index
    %c0_57 = arith.constant 0 : index
    %197 = vector.load %arg8[%c0_55, %c0_56, %c0_57] : memref<1x256x128xbf16, #tpu.memory_space<vmem>>, vector<1x256x128xbf16>
    %198 = vector.shape_cast %197 : vector<1x256x128xbf16> to vector<256x128xbf16>
    %cst_58 = arith.constant dense<0.000000e+00> : vector<32x128xf32>
    %199 = tpu.matmul %196, %198, %cst_58 {dimension_numbers = #tpu.dot_dimension_numbers<[1], [0], [0], [1], [0, 0, 1, 1], [], []>} : vector<32x256xbf16>, vector<256x128xbf16>, vector<32x128xf32> -> vector<32x128xf32>
    %200 = vector.broadcast %14 : vector<1x128xf32> to vector<32x128xf32>
    %201 = arith.addf %199, %200 : vector<32x128xf32>
    %202 = arith.addf %154, %201 : vector<32x128xf32>
    %203 = vector.shape_cast %202 : vector<32x128xf32> to vector<2x16x128xf32>
    %c0_59 = arith.constant 0 : index
    %c0_60 = arith.constant 0 : index
    %c0_61 = arith.constant 0 : index
    %204 = vector.load %arg15[%c0_59, %c0_60, %c0_61] : memref<2x16x128xf32, #tpu.memory_space<vmem>>, vector<2x16x128xf32>
    tpu.vector_store %arg15[%c0_59, %c0_60, %c0_61], %203 {strides = array<i32>} : memref<2x16x128xf32, #tpu.memory_space<vmem>>, vector<2x16x128xf32>,
    %c1_i32 = arith.constant 1 : i32
    %205 = arith.cmpi eq, %arg1, %c1_i32 : i32
    %206 = arith.extui %205 : i1 to i32
    %c0_i32_62 = arith.constant 0 : i32
    %207 = arith.cmpi ne, %206, %c0_i32_62 : i32
    scf.if %207 {
      %208 = vector.shape_cast %202 : vector<32x128xf32> to vector<2x16x128xf32>
      %209 = vector.extract_strided_slice %208 {offsets = [0, 0, 0], sizes = [2, 1, 128], strides = [1, 1, 1]} : vector<2x16x128xf32> to vector<2x1x128xf32>
      %210 = vector.shape_cast %209 : vector<2x1x128xf32> to vector<2x128xf32>
      %c0_63 = arith.constant 0 : index
      %c0_64 = arith.constant 0 : index
      %211 = vector.load %arg10[%c0_63, %c0_64] : memref<1x128xf32, #tpu.memory_space<vmem>>, vector<1x128xf32>
      %c0_65 = arith.constant 0 : index
      %c0_66 = arith.constant 0 : index
      %212 = vector.load %arg11[%c0_65, %c0_66] : memref<1x128xf32, #tpu.memory_space<vmem>>, vector<1x128xf32>
      %cst_67 = arith.constant dense<0.000000e+00> : vector<2xf32>
      %213 = vector.multi_reduction <add>, %210, %cst_67 [1] : vector<2x128xf32> to vector<2xf32>
      %214 = vector.shape_cast %213 : vector<2xf32> to vector<2x1xf32>
      %cst_68 = arith.constant 1.280000e+02 : f32
      %215 = vector.broadcast %cst_68 : f32 to vector<2x1xf32>
      %216 = arith.divf %214, %215 : vector<2x1xf32>
      %217 = vector.broadcast %216 : vector<2x1xf32> to vector<2x128xf32>
      %218 = arith.subf %210, %217 : vector<2x128xf32>
      %219 = arith.mulf %218, %218 : vector<2x128xf32>
      %cst_69 = arith.constant dense<0.000000e+00> : vector<2xf32>
      %220 = vector.multi_reduction <add>, %219, %cst_69 [1] : vector<2x128xf32> to vector<2xf32>
      %221 = vector.shape_cast %220 : vector<2xf32> to vector<2x1xf32>
      %cst_70 = arith.constant 1.280000e+02 : f32
      %222 = vector.broadcast %cst_70 : f32 to vector<2x1xf32>
      %223 = arith.divf %221, %222 : vector<2x1xf32>
      %224 = vector.broadcast %216 : vector<2x1xf32> to vector<2x128xf32>
      %225 = arith.subf %210, %224 : vector<2x128xf32>
      %cst_71 = arith.constant 9.99999974E-6 : f32
      %226 = vector.broadcast %cst_71 : f32 to vector<2x1xf32>
      %227 = arith.addf %223, %226 : vector<2x1xf32>
      %228 = math.rsqrt %227 : vector<2x1xf32>
      %229 = vector.broadcast %228 : vector<2x1xf32> to vector<2x128xf32>
      %230 = arith.mulf %225, %229 : vector<2x128xf32>
      %231 = vector.broadcast %211 : vector<1x128xf32> to vector<2x128xf32>
      %232 = arith.mulf %230, %231 : vector<2x128xf32>
      %233 = vector.broadcast %212 : vector<1x128xf32> to vector<2x128xf32>
      %234 = arith.addf %232, %233 : vector<2x128xf32>
      %235 = arith.truncf %234 : vector<2x128xf32> to vector<2x128xbf16>
      %c0_72 = arith.constant 0 : index
      %c0_73 = arith.constant 0 : index
      %236 = vector.load %arg12[%c0_72, %c0_73] : memref<128x128xbf16, #tpu.memory_space<vmem>>, vector<128x128xbf16>
      %cst_74 = arith.constant dense<0.000000e+00> : vector<2x128xf32>
      %237 = tpu.matmul %235, %236, %cst_74 {dimension_numbers = #tpu.dot_dimension_numbers<[1], [0], [0], [1], [0, 0, 1, 1], [], []>} : vector<2x128xbf16>, vector<128x128xbf16>, vector<2x128xf32> -> vector<2x128xf32>
      %c0_75 = arith.constant 0 : index
      %c0_76 = arith.constant 0 : index
      %238 = vector.load %arg13[%c0_75, %c0_76] : memref<1x128xf32, #tpu.memory_space<vmem>>, vector<1x128xf32>
      %239 = vector.broadcast %238 : vector<1x128xf32> to vector<2x128xf32>
      %240 = arith.addf %237, %239 : vector<2x128xf32>
      %c0_77 = arith.constant 0 : index
      %c0_78 = arith.constant 0 : index
      %c0_79 = arith.constant 0 : index
      %241 = vector.load %arg14[%c0_77, %c0_78, %c0_79] : memref<1x2x128xf32, #tpu.memory_space<vmem>>, vector<1x2x128xf32>
      %242 = vector.shape_cast %241 : vector<1x2x128xf32> to vector<2x128xf32>
      %243 = vector.shape_cast %240 : vector<2x128xf32> to vector<1x2x128xf32>
      tpu.vector_store %arg14[%c0_77, %c0_78, %c0_79], %243 {strides = array<i32>} : memref<1x2x128xf32, #tpu.memory_space<vmem>>, vector<1x2x128xf32>,
    } else {
    }
    return
  }
  func.func @transform_0(%arg0: i32, %arg1: i32) -> (i32, i32, i32) {
    %c0_i32 = arith.constant 0 : i32
    %c0_i32_0 = arith.constant 0 : i32
    %c0_i32_1 = arith.constant 0 : i32
    return %arg0, %c0_i32, %c0_i32_0 : i32, i32, i32
  }
  func.func @transform_1(%arg0: i32, %arg1: i32) -> (i32, i32) {
    %c0_i32 = arith.constant 0 : i32
    %c0_i32_0 = arith.constant 0 : i32
    %c0_i32_1 = arith.constant 0 : i32
    return %c0_i32, %c0_i32_0 : i32, i32
  }
  func.func @transform_2(%arg0: i32, %arg1: i32) -> (i32, i32) {
    %c0_i32 = arith.constant 0 : i32
    %c0_i32_0 = arith.constant 0 : i32
    %c0_i32_1 = arith.constant 0 : i32
    return %c0_i32, %c0_i32_0 : i32, i32
  }
  func.func @transform_3(%arg0: i32, %arg1: i32) -> (i32, i32, i32) {
    %c0_i32 = arith.constant 0 : i32
    %c0_i32_0 = arith.constant 0 : i32
    %c0_i32_1 = arith.constant 0 : i32
    return %arg1, %c0_i32, %c0_i32_0 : i32, i32, i32
  }
  func.func @transform_4(%arg0: i32, %arg1: i32) -> (i32, i32, i32) {
    %c0_i32 = arith.constant 0 : i32
    %c0_i32_0 = arith.constant 0 : i32
    %c0_i32_1 = arith.constant 0 : i32
    return %arg1, %c0_i32, %c0_i32_0 : i32, i32, i32
  }
  func.func @transform_5(%arg0: i32, %arg1: i32) -> (i32, i32, i32) {
    %c0_i32 = arith.constant 0 : i32
    %c0_i32_0 = arith.constant 0 : i32
    %c0_i32_1 = arith.constant 0 : i32
    return %arg1, %c0_i32, %c0_i32_0 : i32, i32, i32
  }
  func.func @transform_6(%arg0: i32, %arg1: i32) -> (i32, i32, i32) {
    %c0_i32 = arith.constant 0 : i32
    %c0_i32_0 = arith.constant 0 : i32
    %c0_i32_1 = arith.constant 0 : i32
    return %arg1, %c0_i32, %c0_i32_0 : i32, i32, i32
  }
  func.func @transform_7(%arg0: i32, %arg1: i32) -> (i32, i32, i32) {
    %c0_i32 = arith.constant 0 : i32
    %c0_i32_0 = arith.constant 0 : i32
    %c0_i32_1 = arith.constant 0 : i32
    return %arg1, %c0_i32, %c0_i32_0 : i32, i32, i32
  }
  func.func @transform_8(%arg0: i32, %arg1: i32) -> (i32, i32) {
    %c0_i32 = arith.constant 0 : i32
    %c0_i32_0 = arith.constant 0 : i32
    %c0_i32_1 = arith.constant 0 : i32
    return %c0_i32, %c0_i32_0 : i32, i32
  }
  func.func @transform_9(%arg0: i32, %arg1: i32) -> (i32, i32) {
    %c0_i32 = arith.constant 0 : i32
    %c0_i32_0 = arith.constant 0 : i32
    %c0_i32_1 = arith.constant 0 : i32
    return %c0_i32, %c0_i32_0 : i32, i32
  }
  func.func @transform_10(%arg0: i32, %arg1: i32) -> (i32, i32) {
    %c0_i32 = arith.constant 0 : i32
    %c0_i32_0 = arith.constant 0 : i32
    %c0_i32_1 = arith.constant 0 : i32
    return %c0_i32, %c0_i32_0 : i32, i32
  }
  func.func @transform_11(%arg0: i32, %arg1: i32) -> (i32, i32) {
    %c0_i32 = arith.constant 0 : i32
    %c0_i32_0 = arith.constant 0 : i32
    %c0_i32_1 = arith.constant 0 : i32
    return %c0_i32, %c0_i32_0 : i32, i32
  }
  func.func @transform_12(%arg0: i32, %arg1: i32) -> (i32, i32, i32) {
    %c0_i32 = arith.constant 0 : i32
    %c0_i32_0 = arith.constant 0 : i32
    %c0_i32_1 = arith.constant 0 : i32
    return %arg0, %c0_i32, %c0_i32_0 : i32, i32, i32
  }
}

</mosaic_0001>

<llo_original>
// kernel: vit_feature_wrapper_forward.1
$region0: #{vit_feature_wrapper_forward.1}
  #allocation0 [shape = 'u32[]', space=smem, size = 0x4, offset = 0x4, fixed_abs, tag = 'smem constant byte address 0x4 - core index']
  #allocation1 [shape = 'u32[72,128]{1,0:T(1,128)}', space=vmem, size = 0x9000, scoped, tag = 'internal scratch']
  #allocation2 [shape = 'f32[2,16,128]{2,1,0:T(8,128)}', space=vmem, size = 0x4000, scoped, tag = 'scratch operand']
  %s0 = inlined_call_operand.vmem [shape: f32[2,16,640], index: 0, kind: input, shape index: {}]
  %s1 = inlined_call_operand.vmem [shape: bf16[640,128], index: 1, kind: input, shape index: {}]
  %s2 = inlined_call_operand.vmem [shape: f32[16,128], index: 2, kind: input, shape index: {}]
  %s3 = inlined_call_operand.vmem [shape: bf16[2,128,384], index: 3, kind: input, shape index: {}]
  %s4 = inlined_call_operand.vmem [shape: bf16[2,128,128], index: 4, kind: input, shape index: {}]
  %s5 = inlined_call_operand.vmem [shape: bf16[2,128,256], index: 5, kind: input, shape index: {}]
  %s6 = inlined_call_operand.vmem [shape: bf16[2,256,128], index: 6, kind: input, shape index: {}]
  %s7 = inlined_call_operand.vmem [shape: f32[2,8,384], index: 7, kind: input, shape index: {}]
  %s8 = inlined_call_operand.vmem [shape: f32[1,128], index: 8, kind: input, shape index: {}]
  %s9 = inlined_call_operand.vmem [shape: f32[1,128], index: 9, kind: input, shape index: {}]
  %s10 = inlined_call_operand.vmem [shape: bf16[128,128], index: 10, kind: input, shape index: {}]
  %s11 = inlined_call_operand.vmem [shape: f32[1,128], index: 11, kind: input, shape index: {}]
  %s12 = inlined_call_operand.hbm [shape: f32[1,2,128], index: 12, kind: output, shape index: {}]
  %s13 = sld [smem:[#allocation0]]
  $region89: #{vit_feature_wrapper_forward.1} parent=0
    _
  %s15 = ssub.s32 1, %s13
  %s16 = scalar_select 0, %s15, %s13
  $region1: #{vit_feature_wrapper_forward.1} parent=0
    #allocation3 [shape = 'u8[1024]{0}', space=vmem, size = 0x400, scoped, tag = 'output window, operand 0, single buffered']
    #allocation4 [shape = 's32[2]{0}', space=sflag, size = 0x8, scoped, tag = 'scoped memory for vit_feature_wrapper_forward.1']
    %17 = vsyncpa [#allocation4], 0
    loop: start=0, step=1, limit=4
    $region2: #{vit_feature_wrapper_forward.1} parent=1 // loop_pre_header
      _
    $region3: #{vit_feature_wrapper_forward.1} parent=1 // loop_header
      %s19 = sphi 0, %s23
      %p20 = scmp.ge.s32.totalorder %s19, 4
      %s26 = sphi 0, %s38
      %s27 = sphi 0, %s34
      %s28 = sphi 0, %s26
      %s29 = sphi 0, %s27
      %s30 = sphi 0, %s28
      %s31 = sphi 0, %s29
      %s41 = sphi 0, %s43
      %s44 = sphi 0, %s41
      %s45 = sphi 0, %s44
      %s61 = sphi 0, %s45
      %s65 = sphi 0, %s65
      %s67 = sphi 0, %s65
      %s68 = sphi 0, %s67
      %s82 = sphi 0, %s68
      %s86 = sphi 0, %s86
      %s88 = sphi 0, %s86
      %s89 = sphi 0, %s88
      %s103 = sphi 0, %s89
      %s109 = sphi 0, %s111
      %s112 = sphi 0, %s109
      %s113 = sphi 0, %s112
      %s129 = sphi 0, %s113
      %s135 = sphi 0, %s137
      %s138 = sphi 0, %s135
      %s139 = sphi 0, %s138
      %s155 = sphi 0, %s139
      %s161 = sphi 0, %s163
      %s164 = sphi 0, %s161
      %s165 = sphi 0, %s164
      %s181 = sphi 0, %s165
      %s187 = sphi 0, %s189
      %s190 = sphi 0, %s187
      %s191 = sphi 0, %s190
      %s207 = sphi 0, %s191
      %s213 = sphi 0, %s215
      %s216 = sphi 0, %s213
      %s217 = sphi 0, %s216
      %s233 = sphi 0, %s217
      %s237 = sphi 0, %s237
      %s239 = sphi 0, %s237
      %s240 = sphi 0, %s239
      %s254 = sphi 0, %s240
      %s258 = sphi 0, %s258
      %s260 = sphi 0, %s258
      %s261 = sphi 0, %s260
      %s275 = sphi 0, %s261
      %s279 = sphi 0, %s279
      %s281 = sphi 0, %s279
      %s282 = sphi 0, %s281
      %s296 = sphi 0, %s282
      %s300 = sphi 0, %s300
      %s302 = sphi 0, %s300
      %s303 = sphi 0, %s302
      %s317 = sphi 0, %s303
      %s323 = sphi 0, %s325
      %s326 = sphi 0, %s323
      %s327 = sphi 0, %s326
      %s343 = sphi 0, %s327
    $region4: #{vit_feature_wrapper_forward.1} parent=1 // loop_header_branch
      %22 = sbr.rel (%p20) target = $region8
    $region5: #{vit_feature_wrapper_forward.1} parent=1 // loop_body
      %s24 = ssub.s32 %s19, 1
      %s25 = ssub.s32 %s19, 2
      %s32 = sadd.s32 1, %s27
      %p33 = scmp.ge.s32.totalorder %s32, 2
      %s34 = scalar_select %p33, 0, %s32
      %s35 = sadd.s32 1, %s26
      %s36 = scalar_select %p33, %s35, %s26
      %p37 = scmp.ge.s32.totalorder %s36, 1
      %s38 = scalar_select %p37, 0, %s36
      %s39 = ssub.s32 %s26, %s38
      %p40 = scmp.eq.s32.totalorder %s39, 0
      %s42 = sadd.s32 %s41, 1
      %s43 = scalar_select %p40, %s41, %s42
      %p46 = pneg %p40
      %p47 = scmp.eq.s32.totalorder %s19, 1
      %p48 = por %p46, %p47
      %p49 = scmp.ne.s32.totalorder %s41, %s44
      %p50 = scmp.eq.s32.totalorder %s19, 0
      %p51 = por %p49, %p50
      %p52 = scmp.ne.s32.totalorder %s41, %s44
      %p53 = scmp.eq.s32.totalorder %s24, 1
      %p54 = por %p52, %p53
      %p55 = scmp.ne.s32.totalorder %s44, %s45
      %p56 = scmp.eq.s32.totalorder %s24, 0
      %p57 = por %p55, %p56
      %p58 = scmp.ne.s32.totalorder %s44, %s45
      %p59 = scmp.eq.s32.totalorder %s25, 1
      %p60 = por %p58, %p59
      %p62 = scmp.ne.s32.totalorder %s45, %s61
      %p63 = scmp.eq.s32.totalorder %s25, 0
      %p64 = por %p62, %p63
      %s66 = sadd.s32 %s65, 1
      %p69 = scmp.eq.s32.totalorder %s19, 1
      %p70 = scmp.ne.s32.totalorder %s65, %s67
      %p71 = scmp.eq.s32.totalorder %s19, 0
      %p72 = por %p70, %p71
      %p73 = scmp.ne.s32.totalorder %s65, %s67
      %p74 = scmp.eq.s32.totalorder %s24, 1
      %p75 = por %p73, %p74
      %p76 = scmp.ne.s32.totalorder %s67, %s68
      %p77 = scmp.eq.s32.totalorder %s24, 0
      %p78 = por %p76, %p77
      %p79 = scmp.ne.s32.totalorder %s67, %s68
      %p80 = scmp.eq.s32.totalorder %s25, 1
      %p81 = por %p79, %p80
      %p83 = scmp.ne.s32.totalorder %s68, %s82
      %p84 = scmp.eq.s32.totalorder %s25, 0
      %p85 = por %p83, %p84
      %s87 = sadd.s32 %s86, 1
      %p90 = scmp.eq.s32.totalorder %s19, 1
      %p91 = scmp.ne.s32.totalorder %s86, %s88
      %p92 = scmp.eq.s32.totalorder %s19, 0
      %p93 = por %p91, %p92
      %p94 = scmp.ne.s32.totalorder %s86, %s88
      %p95 = scmp.eq.s32.totalorder %s24, 1
      %p96 = por %p94, %p95
      %p97 = scmp.ne.s32.totalorder %s88, %s89
      %p98 = scmp.eq.s32.totalorder %s24, 0
      %p99 = por %p97, %p98
      %p100 = scmp.ne.s32.totalorder %s88, %s89
      %p101 = scmp.eq.s32.totalorder %s25, 1
      %p102 = por %p100, %p101
      %p104 = scmp.ne.s32.totalorder %s89, %s103
      %p105 = scmp.eq.s32.totalorder %s25, 0
      %p106 = por %p104, %p105
      %s107 = ssub.s32 %s27, %s34
      %p108 = scmp.eq.s32.totalorder %s107, 0
      %s110 = sadd.s32 %s109, 1
      %s111 = scalar_select %p108, %s109, %s110
      %p114 = pneg %p108
      %p115 = scmp.eq.s32.totalorder %s19, 1
      %p116 = por %p114, %p115
      %p117 = scmp.ne.s32.totalorder %s109, %s112
      %p118 = scmp.eq.s32.totalorder %s19, 0
      %p119 = por %p117, %p118
      %p120 = scmp.ne.s32.totalorder %s109, %s112
      %p121 = scmp.eq.s32.totalorder %s24, 1
      %p122 = por %p120, %p121
      %p123 = scmp.ne.s32.totalorder %s112, %s113
      %p124 = scmp.eq.s32.totalorder %s24, 0
      %p125 = por %p123, %p124
      %p126 = scmp.ne.s32.totalorder %s112, %s113
      %p127 = scmp.eq.s32.totalorder %s25, 1
      %p128 = por %p126, %p127
      %p130 = scmp.ne.s32.totalorder %s113, %s129
      %p131 = scmp.eq.s32.totalorder %s25, 0
      %p132 = por %p130, %p131
      %s133 = ssub.s32 %s27, %s34
      %p134 = scmp.eq.s32.totalorder %s133, 0
      %s136 = sadd.s32 %s135, 1
      %s137 = scalar_select %p134, %s135, %s136
      %p140 = pneg %p134
      %p141 = scmp.eq.s32.totalorder %s19, 1
      %p142 = por %p140, %p141
      %p143 = scmp.ne.s32.totalorder %s135, %s138
      %p144 = scmp.eq.s32.totalorder %s19, 0
      %p145 = por %p143, %p144
      %p146 = scmp.ne.s32.totalorder %s135, %s138
      %p147 = scmp.eq.s32.totalorder %s24, 1
      %p148 = por %p146, %p147
      %p149 = scmp.ne.s32.totalorder %s138, %s139
      %p150 = scmp.eq.s32.totalorder %s24, 0
      %p151 = por %p149, %p150
      %p152 = scmp.ne.s32.totalorder %s138, %s139
      %p153 = scmp.eq.s32.totalorder %s25, 1
      %p154 = por %p152, %p153
      %p156 = scmp.ne.s32.totalorder %s139, %s155
      %p157 = scmp.eq.s32.totalorder %s25, 0
      %p158 = por %p156, %p157
      %s159 = ssub.s32 %s27, %s34
      %p160 = scmp.eq.s32.totalorder %s159, 0
      %s162 = sadd.s32 %s161, 1
      %s163 = scalar_select %p160, %s161, %s162
      %p166 = pneg %p160
      %p167 = scmp.eq.s32.totalorder %s19, 1
      %p168 = por %p166, %p167
      %p169 = scmp.ne.s32.totalorder %s161, %s164
      %p170 = scmp.eq.s32.totalorder %s19, 0
      %p171 = por %p169, %p170
      %p172 = scmp.ne.s32.totalorder %s161, %s164
      %p173 = scmp.eq.s32.totalorder %s24, 1
      %p174 = por %p172, %p173
      %p175 = scmp.ne.s32.totalorder %s164, %s165
      %p176 = scmp.eq.s32.totalorder %s24, 0
      %p177 = por %p175, %p176
      %p178 = scmp.ne.s32.totalorder %s164, %s165
      %p179 = scmp.eq.s32.totalorder %s25, 1
      %p180 = por %p178, %p179
      %p182 = scmp.ne.s32.totalorder %s165, %s181
      %p183 = scmp.eq.s32.totalorder %s25, 0
      %p184 = por %p182, %p183
      %s185 = ssub.s32 %s27, %s34
      %p186 = scmp.eq.s32.totalorder %s185, 0
      %s188 = sadd.s32 %s187, 1
      %s189 = scalar_select %p186, %s187, %s188
      %p192 = pneg %p186
      %p193 = scmp.eq.s32.totalorder %s19, 1
      %p194 = por %p192, %p193
      %p195 = scmp.ne.s32.totalorder %s187, %s190
      %p196 = scmp.eq.s32.totalorder %s19, 0
      %p197 = por %p195, %p196
      %p198 = scmp.ne.s32.totalorder %s187, %s190
      %p199 = scmp.eq.s32.totalorder %s24, 1
      %p200 = por %p198, %p199
      %p201 = scmp.ne.s32.totalorder %s190, %s191
      %p202 = scmp.eq.s32.totalorder %s24, 0
      %p203 = por %p201, %p202
      %p204 = scmp.ne.s32.totalorder %s190, %s191
      %p205 = scmp.eq.s32.totalorder %s25, 1
      %p206 = por %p204, %p205
      %p208 = scmp.ne.s32.totalorder %s191, %s207
      %p209 = scmp.eq.s32.totalorder %s25, 0
      %p210 = por %p208, %p209
      %s211 = ssub.s32 %s27, %s34
      %p212 = scmp.eq.s32.totalorder %s211, 0
      %s214 = sadd.s32 %s213, 1
      %s215 = scalar_select %p212, %s213, %s214
      %p218 = pneg %p212
      %p219 = scmp.eq.s32.totalorder %s19, 1
      %p220 = por %p218, %p219
      %p221 = scmp.ne.s32.totalorder %s213, %s216
      %p222 = scmp.eq.s32.totalorder %s19, 0
      %p223 = por %p221, %p222
      %p224 = scmp.ne.s32.totalorder %s213, %s216
      %p225 = scmp.eq.s32.totalorder %s24, 1
      %p226 = por %p224, %p225
      %p227 = scmp.ne.s32.totalorder %s216, %s217
      %p228 = scmp.eq.s32.totalorder %s24, 0
      %p229 = por %p227, %p228
      %p230 = scmp.ne.s32.totalorder %s216, %s217
      %p231 = scmp.eq.s32.totalorder %s25, 1
      %p232 = por %p230, %p231
      %p234 = scmp.ne.s32.totalorder %s217, %s233
      %p235 = scmp.eq.s32.totalorder %s25, 0
      %p236 = por %p234, %p235
      %s238 = sadd.s32 %s237, 1
      %p241 = scmp.eq.s32.totalorder %s19, 1
      %p242 = scmp.ne.s32.totalorder %s237, %s239
      %p243 = scmp.eq.s32.totalorder %s19, 0
      %p244 = por %p242, %p243
      %p245 = scmp.ne.s32.totalorder %s237, %s239
      %p246 = scmp.eq.s32.totalorder %s24, 1
      %p247 = por %p245, %p246
      %p248 = scmp.ne.s32.totalorder %s239, %s240
      %p249 = scmp.eq.s32.totalorder %s24, 0
      %p250 = por %p248, %p249
      %p251 = scmp.ne.s32.totalorder %s239, %s240
      %p252 = scmp.eq.s32.totalorder %s25, 1
      %p253 = por %p251, %p252
      %p255 = scmp.ne.s32.totalorder %s240, %s254
      %p256 = scmp.eq.s32.totalorder %s25, 0
      %p257 = por %p255, %p256
      %s259 = sadd.s32 %s258, 1
      %p262 = scmp.eq.s32.totalorder %s19, 1
      %p263 = scmp.ne.s32.totalorder %s258, %s260
      %p264 = scmp.eq.s32.totalorder %s19, 0
      %p265 = por %p263, %p264
      %p266 = scmp.ne.s32.totalorder %s258, %s260
      %p267 = scmp.eq.s32.totalorder %s24, 1
      %p268 = por %p266, %p267
      %p269 = scmp.ne.s32.totalorder %s260, %s261
      %p270 = scmp.eq.s32.totalorder %s24, 0
      %p271 = por %p269, %p270
      %p272 = scmp.ne.s32.totalorder %s260, %s261
      %p273 = scmp.eq.s32.totalorder %s25, 1
      %p274 = por %p272, %p273
      %p276 = scmp.ne.s32.totalorder %s261, %s275
      %p277 = scmp.eq.s32.totalorder %s25, 0
      %p278 = por %p276, %p277
      %s280 = sadd.s32 %s279, 1
      %p283 = scmp.eq.s32.totalorder %s19, 1
      %p284 = scmp.ne.s32.totalorder %s279, %s281
      %p285 = scmp.eq.s32.totalorder %s19, 0
      %p286 = por %p284, %p285
      %p287 = scmp.ne.s32.totalorder %s279, %s281
      %p288 = scmp.eq.s32.totalorder %s24, 1
      %p289 = por %p287, %p288
      %p290 = scmp.ne.s32.totalorder %s281, %s282
      %p291 = scmp.eq.s32.totalorder %s24, 0
      %p292 = por %p290, %p291
      %p293 = scmp.ne.s32.totalorder %s281, %s282
      %p294 = scmp.eq.s32.totalorder %s25, 1
      %p295 = por %p293, %p294
      %p297 = scmp.ne.s32.totalorder %s282, %s296
      %p298 = scmp.eq.s32.totalorder %s25, 0
      %p299 = por %p297, %p298
      %s301 = sadd.s32 %s300, 1
      %p304 = scmp.eq.s32.totalorder %s19, 1
      %p305 = scmp.ne.s32.totalorder %s300, %s302
      %p306 = scmp.eq.s32.totalorder %s19, 0
      %p307 = por %p305, %p306
      %p308 = scmp.ne.s32.totalorder %s300, %s302
      %p309 = scmp.eq.s32.totalorder %s24, 1
      %p310 = por %p308, %p309
      %p311 = scmp.ne.s32.totalorder %s302, %s303
      %p312 = scmp.eq.s32.totalorder %s24, 0
      %p313 = por %p311, %p312
      %p314 = scmp.ne.s32.totalorder %s302, %s303
      %p315 = scmp.eq.s32.totalorder %s25, 1
      %p316 = por %p314, %p315
      %p318 = scmp.ne.s32.totalorder %s303, %s317
      %p319 = scmp.eq.s32.totalorder %s25, 0
      %p320 = por %p318, %p319
      %s321 = ssub.s32 %s26, %s38
      %p322 = scmp.eq.s32.totalorder %s321, 0
      %s324 = sadd.s32 %s323, 1
      %s325 = scalar_select %p322, %s323, %s324
      %p328 = pneg %p322
      %p329 = scmp.eq.s32.totalorder %s19, 1
      %p330 = por %p328, %p329
      %p331 = scmp.ne.s32.totalorder %s323, %s326
      %p332 = scmp.eq.s32.totalorder %s19, 0
      %p333 = por %p331, %p332
      %p334 = scmp.ne.s32.totalorder %s323, %s326
      %p335 = scmp.eq.s32.totalorder %s24, 1
      %p336 = por %p334, %p335
      %p337 = scmp.ne.s32.totalorder %s326, %s327
      %p338 = scmp.eq.s32.totalorder %s24, 0
      %p339 = por %p337, %p338
      %p340 = scmp.ne.s32.totalorder %s326, %s327
      %p341 = scmp.eq.s32.totalorder %s25, 1
      %p342 = por %p340, %p341
      %p344 = scmp.ne.s32.totalorder %s327, %s343
      %p345 = scmp.eq.s32.totalorder %s25, 0
      %p346 = por %p344, %p345
      %p347 = scmp.le.s32.totalorder 1, %s19
      %p348 = scmp.lt.s32.totalorder %s19, 3
      %p349 = pnand %p347, %p348
      %p350 = pneg %p349
      // Predicated region
      $region9: #{vit_feature_wrapper_forward.1} parent=5 // pred_check
        _
      $region10: #{vit_feature_wrapper_forward.1} parent=5 // pred_check_branch
        %352 = sbr.rel (%p349) target = $region12
      $region11: #{vit_feature_wrapper_forward.1} parent=5 // pred_region
        %s353 = ssub.s32 %s19, 1
        // Predicated region
        $region13: #{vit_feature_wrapper_forward.1} parent=11 // pred_check
          %p354 = pneg %p57
        $region14: #{vit_feature_wrapper_forward.1} parent=11 // pred_check_branch
          %356 = sbr.rel (%p354) target = $region16
        $region15: #{vit_feature_wrapper_forward.1} parent=11 // pred_region
          %s357 = smul.u32 2, %s28
          %p358 = scmp.lt.s32.totalorder %s357, 1
          %s359 = scalar_select %p358, %s357, 1
          %s360 = smul.addr %s359, 10
          %s361 = smul.addr %s360, 8
          %s362 = scalar_lea.vmem %s0, %s361
          %s363 = smul.u32 2, %s28
        $region16: #{vit_feature_wrapper_forward.1} parent=11 // pred_fallthru
          _
        // Predicated region
        $region17: #{vit_feature_wrapper_forward.1} parent=11 // pred_check
          %p364 = pneg %p78
        $region18: #{vit_feature_wrapper_forward.1} parent=11 // pred_check_branch
          %366 = sbr.rel (%p364) target = $region20
        $region19: #{vit_feature_wrapper_forward.1} parent=11 // pred_region
          _
        $region20: #{vit_feature_wrapper_forward.1} parent=11 // pred_fallthru
          _
        // Predicated region
        $region21: #{vit_feature_wrapper_forward.1} parent=11 // pred_check
          %p367 = pneg %p99
        $region22: #{vit_feature_wrapper_forward.1} parent=11 // pred_check_branch
          %369 = sbr.rel (%p367) target = $region24
        $region23: #{vit_feature_wrapper_forward.1} parent=11 // pred_region
          _
        $region24: #{vit_feature_wrapper_forward.1} parent=11 // pred_fallthru
          _
        // Predicated region
        $region25: #{vit_feature_wrapper_forward.1} parent=11 // pred_check
          %p370 = pneg %p250
        $region26: #{vit_feature_wrapper_forward.1} parent=11 // pred_check_branch
          %372 = sbr.rel (%p370) target = $region28
        $region27: #{vit_feature_wrapper_forward.1} parent=11 // pred_region
          _
        $region28: #{vit_feature_wrapper_forward.1} parent=11 // pred_fallthru
          _
        // Predicated region
        $region29: #{vit_feature_wrapper_forward.1} parent=11 // pred_check
          %p373 = pneg %p271
        $region30: #{vit_feature_wrapper_forward.1} parent=11 // pred_check_branch
          %375 = sbr.rel (%p373) target = $region32
        $region31: #{vit_feature_wrapper_forward.1} parent=11 // pred_region
          _
        $region32: #{vit_feature_wrapper_forward.1} parent=11 // pred_fallthru
          _
        // Predicated region
        $region33: #{vit_feature_wrapper_forward.1} parent=11 // pred_check
          %p376 = pneg %p292
        $region34: #{vit_feature_wrapper_forward.1} parent=11 // pred_check_branch
          %378 = sbr.rel (%p376) target = $region36
        $region35: #{vit_feature_wrapper_forward.1} parent=11 // pred_region
          _
        $region36: #{vit_feature_wrapper_forward.1} parent=11 // pred_fallthru
          _
        // Predicated region
        $region37: #{vit_feature_wrapper_forward.1} parent=11 // pred_check
          %p379 = pneg %p313
        $region38: #{vit_feature_wrapper_forward.1} parent=11 // pred_check_branch
          %381 = sbr.rel (%p379) target = $region40
        $region39: #{vit_feature_wrapper_forward.1} parent=11 // pred_region
          _
        $region40: #{vit_feature_wrapper_forward.1} parent=11 // pred_fallthru
          _
      $region12: #{vit_feature_wrapper_forward.1} parent=5 // pred_fallthru
        _
      %p382 = scmp.lt.s32.totalorder %s19, 2
      // Predicated region
      $region41: #{vit_feature_wrapper_forward.1} parent=5 // pred_check
        %p383 = pneg %p382
      $region42: #{vit_feature_wrapper_forward.1} parent=5 // pred_check_branch
        %385 = sbr.rel (%p383) target = $region44
      $region43: #{vit_feature_wrapper_forward.1} parent=5 // pred_region
        // Predicated region
        $region45: #{vit_feature_wrapper_forward.1} parent=43 // pred_check
          %p386 = pneg %p119
        $region46: #{vit_feature_wrapper_forward.1} parent=43 // pred_check_branch
          %388 = sbr.rel (%p386) target = $region48
        $region47: #{vit_feature_wrapper_forward.1} parent=43 // pred_region
          %p389 = scmp.lt.s32.totalorder %s27, 1
          %s390 = scalar_select %p389, %s27, 1
          %s391 = smul.addr %s390, 48
          %s392 = smul.addr %s391, 4
          %s393 = scalar_lea.vmem %s3, %s392
        $region48: #{vit_feature_wrapper_forward.1} parent=43 // pred_fallthru
          _
        // Predicated region
        $region49: #{vit_feature_wrapper_forward.1} parent=43 // pred_check
          %p394 = pneg %p145
        $region50: #{vit_feature_wrapper_forward.1} parent=43 // pred_check_branch
          %396 = sbr.rel (%p394) target = $region52
        $region51: #{vit_feature_wrapper_forward.1} parent=43 // pred_region
          %p397 = scmp.lt.s32.totalorder %s27, 1
          %s398 = scalar_select %p397, %s27, 1
          %s399 = smul.addr %s398, 16
          %s400 = smul.addr %s399, 4
          %s401 = scalar_lea.vmem %s4, %s400
        $region52: #{vit_feature_wrapper_forward.1} parent=43 // pred_fallthru
          _
        // Predicated region
        $region53: #{vit_feature_wrapper_forward.1} parent=43 // pred_check
          %p402 = pneg %p171
        $region54: #{vit_feature_wrapper_forward.1} parent=43 // pred_check_branch
          %404 = sbr.rel (%p402) target = $region56
        $region55: #{vit_feature_wrapper_forward.1} parent=43 // pred_region
          %p405 = scmp.lt.s32.totalorder %s27, 1
          %s406 = scalar_select %p405, %s27, 1
          %s407 = smul.addr %s406, 32
          %s408 = smul.addr %s407, 4
          %s409 = scalar_lea.vmem %s5, %s408
        $region56: #{vit_feature_wrapper_forward.1} parent=43 // pred_fallthru
          _
        // Predicated region
        $region57: #{vit_feature_wrapper_forward.1} parent=43 // pred_check
          %p410 = pneg %p197
        $region58: #{vit_feature_wrapper_forward.1} parent=43 // pred_check_branch
          %412 = sbr.rel (%p410) target = $region60
        $region59: #{vit_feature_wrapper_forward.1} parent=43 // pred_region
          %p413 = scmp.lt.s32.totalorder %s27, 1
          %s414 = scalar_select %p413, %s27, 1
          %s415 = smul.addr %s414, 32
          %s416 = smul.addr %s415, 4
          %s417 = scalar_lea.vmem %s6, %s416
        $region60: #{vit_feature_wrapper_forward.1} parent=43 // pred_fallthru
          _
        // Predicated region
        $region61: #{vit_feature_wrapper_forward.1} parent=43 // pred_check
          %p418 = pneg %p223
        $region62: #{vit_feature_wrapper_forward.1} parent=43 // pred_check_branch
          %420 = sbr.rel (%p418) target = $region64
        $region63: #{vit_feature_wrapper_forward.1} parent=43 // pred_region
          %p421 = scmp.lt.s32.totalorder %s27, 1
          %s422 = scalar_select %p421, %s27, 1
          %s423 = smul.addr %s422, 3
          %s424 = smul.addr %s423, 8
          %s425 = scalar_lea.vmem %s7, %s424
        $region64: #{vit_feature_wrapper_forward.1} parent=43 // pred_fallthru
          _
      $region44: #{vit_feature_wrapper_forward.1} parent=5 // pred_fallthru
        _
      %p426 = scmp.le.s32.totalorder 1, %s19
      %p427 = scmp.lt.s32.totalorder %s19, 3
      %p428 = pnand %p426, %p427
      %p429 = pneg %p428
      // Predicated region
      $region65: #{vit_feature_wrapper_forward.1} parent=5 // pred_check
        _
      $region66: #{vit_feature_wrapper_forward.1} parent=5 // pred_check_branch
        %431 = sbr.rel (%p428) target = $region68
      $region67: #{vit_feature_wrapper_forward.1} parent=5 // pred_region
        %s432 = ssub.s32 %s19, 1
        %s433 = smul.u32 2, %s28
        %p434 = scmp.lt.s32.totalorder %s433, 1
        %s435 = scalar_select %p434, %s433, 1
        %s436 = smul.addr %s435, 10
        %s437 = smul.addr %s436, 8
        %s438 = scalar_lea.vmem %s0, %s437
        %p439 = pneg %p57
        %p440 = pneg %p54
        %p441 = pneg %p78
        %p442 = pneg %p75
        %p443 = pneg %p99
        %p444 = pneg %p96
        %p445 = scmp.lt.s32.totalorder %s29, 1
        %s446 = scalar_select %p445, %s29, 1
        %s447 = smul.addr %s446, 48
        %s448 = smul.addr %s447, 4
        %s449 = scalar_lea.vmem %s3, %s448
        %p450 = pneg %p125
        %p451 = pneg %p122
        %p452 = scmp.lt.s32.totalorder %s29, 1
        %s453 = scalar_select %p452, %s29, 1
        %s454 = smul.addr %s453, 16
        %s455 = smul.addr %s454, 4
        %s456 = scalar_lea.vmem %s4, %s455
        %p457 = pneg %p151
        %p458 = pneg %p148
        %p459 = scmp.lt.s32.totalorder %s29, 1
        %s460 = scalar_select %p459, %s29, 1
        %s461 = smul.addr %s460, 32
        %s462 = smul.addr %s461, 4
        %s463 = scalar_lea.vmem %s5, %s462
        %p464 = pneg %p177
        %p465 = pneg %p174
        %p466 = scmp.lt.s32.totalorder %s29, 1
        %s467 = scalar_select %p466, %s29, 1
        %s468 = smul.addr %s467, 32
        %s469 = smul.addr %s468, 4
        %s470 = scalar_lea.vmem %s6, %s469
        %p471 = pneg %p203
        %p472 = pneg %p200
        %p473 = scmp.lt.s32.totalorder %s29, 1
        %s474 = scalar_select %p473, %s29, 1
        %s475 = smul.addr %s474, 3
        %s476 = smul.addr %s475, 8
        %s477 = scalar_lea.vmem %s7, %s476
        %p478 = pneg %p229
        %p479 = pneg %p226
        %p480 = pneg %p250
        %p481 = pneg %p247
        %p482 = pneg %p271
        %p483 = pneg %p268
        %p484 = pneg %p292
        %p485 = pneg %p289
        %p486 = pneg %p313
        %p487 = pneg %p310
        %p488 = pneg %p339
        %p489 = pneg %p336
        %s490 = smul.u32 2, %s28
        %p491 = scmp.lt.s32.totalorder %s490, 1
        %s492 = scalar_select %p491, %s490, 1
        %s493 = smul.addr %s492, 10
        %s494 = smul.addr %s493, 8
        %s495 = scalar_lea.vmem %s0, %s494
        %s496 = smul.u32 2, %s28
        %p497 = scmp.lt.s32.totalorder %s29, 1
        %s498 = scalar_select %p497, %s29, 1
        %s499 = smul.addr %s498, 48
        %s500 = smul.addr %s499, 4
        %s501 = scalar_lea.vmem %s3, %s500
        %p502 = scmp.lt.s32.totalorder %s29, 1
        %s503 = scalar_select %p502, %s29, 1
        %s504 = smul.addr %s503, 16
        %s505 = smul.addr %s504, 4
        %s506 = scalar_lea.vmem %s4, %s505
        %p507 = scmp.lt.s32.totalorder %s29, 1
        %s508 = scalar_select %p507, %s29, 1
        %s509 = smul.addr %s508, 32
        %s510 = smul.addr %s509, 4
        %s511 = scalar_lea.vmem %s5, %s510
        %p512 = scmp.lt.s32.totalorder %s29, 1
        %s513 = scalar_select %p512, %s29, 1
        %s514 = smul.addr %s513, 32
        %s515 = smul.addr %s514, 4
        %s516 = scalar_lea.vmem %s6, %s515
        %p517 = scmp.lt.s32.totalorder %s29, 1
        %s518 = scalar_select %p517, %s29, 1
        %s519 = smul.addr %s518, 3
        %s520 = smul.addr %s519, 8
        %s521 = scalar_lea.vmem %s7, %s520
        %p523 = scmp.eq.s32.totalorder %s29, 0
        // Predicated region
        $region69: #{vit_feature_wrapper_forward.1} parent=67 // pred_check
          %p524 = pneg %p523
        $region70: #{vit_feature_wrapper_forward.1} parent=67 // pred_check_branch
          %526 = sbr.rel (%p524) target = $region72
        $region71: #{vit_feature_wrapper_forward.1} parent=67 // pred_region
          %v527 = vld [vmem:[%s495] sm:$0xff]
          %v528 = vld [vmem:[%s495 + $0x8] sm:$0xff]
          %v529 = vld [vmem:[%s495 + $0x10] sm:$0xff]
          %v530 = vld [vmem:[%s495 + $0x18] sm:$0xff]
          %v531 = vld [vmem:[%s495 + $0x20] sm:$0xff]
          %v532 = vld [vmem:[%s495 + $0x28] sm:$0xff]
          %v533 = vld [vmem:[%s495 + $0x30] sm:$0xff]
          %v534 = vld [vmem:[%s495 + $0x38] sm:$0xff]
          %v535 = vld [vmem:[%s495 + $0x40] sm:$0xff]
          %v536 = vld [vmem:[%s495 + $0x48] sm:$0xff]
          %v537 = vld [vmem:[%s495 + $0x50] sm:$0xff]
          %v538 = vld [vmem:[%s495 + $0x58] sm:$0xff]
          %v539 = vld [vmem:[%s495 + $0x60] sm:$0xff]
          %v540 = vld [vmem:[%s495 + $0x68] sm:$0xff]
          %v541 = vld [vmem:[%s495 + $0x70] sm:$0xff]
          %v542 = vld [vmem:[%s495 + $0x78] sm:$0xff]
          %v543 = vld [vmem:[%s495 + $0x80] sm:$0xff]
          %v544 = vld [vmem:[%s495 + $0x88] sm:$0xff]
          %v545 = vld [vmem:[%s495 + $0x90] sm:$0xff]
          %v546 = vld [vmem:[%s495 + $0x98] sm:$0xff]
          %v547 = vpack.c.bf16 %v528, %v527
          %v548 = vpack.c.bf16 %v530, %v529
          %v549 = vpack.c.bf16 %v531, %v531
          %v550 = vpack.c.bf16 %v533, %v532
          %v551 = vpack.c.bf16 %v535, %v534
          %v552 = vpack.c.bf16 %v536, %v536
          %v553 = vpack.c.bf16 %v538, %v537
          %v554 = vpack.c.bf16 %v540, %v539
          %v555 = vpack.c.bf16 %v541, %v541
          %v556 = vpack.c.bf16 %v543, %v542
          %v557 = vpack.c.bf16 %v545, %v544
          %v558 = vpack.c.bf16 %v546, %v546
          %v559 = vld [vmem:[%s1] sm:$0xf]
          %v560 = vld [vmem:[%s1 + $0x4] sm:$0xf]
          %v561 = vld [vmem:[%s1 + $0x8] sm:$0xf]
          %v562 = vld [vmem:[%s1 + $0xc] sm:$0xf]
          %v563 = vld [vmem:[%s1 + $0x10] sm:$0xf]
          %v564 = vld [vmem:[%s1 + $0x14] sm:$0xf]
          %v565 = vld [vmem:[%s1 + $0x18] sm:$0xf]
          %v566 = vld [vmem:[%s1 + $0x1c] sm:$0xf]
          %v567 = vld [vmem:[%s1 + $0x20] sm:$0xf]
          %v568 = vld [vmem:[%s1 + $0x24] sm:$0xf]
          %v569 = vld [vmem:[%s1 + $0x28] sm:$0xf]
          %v570 = vld [vmem:[%s1 + $0x2c] sm:$0xf]
          %v571 = vld [vmem:[%s1 + $0x30] sm:$0xf]
          %v572 = vld [vmem:[%s1 + $0x34] sm:$0xf]
          %v573 = vld [vmem:[%s1 + $0x38] sm:$0xf]
          %v574 = vld [vmem:[%s1 + $0x3c] sm:$0xf]
          %v575 = vld [vmem:[%s1 + $0x40] sm:$0xf]
          %v576 = vld [vmem:[%s1 + $0x44] sm:$0xf]
          %v577 = vld [vmem:[%s1 + $0x48] sm:$0xf]
          %v578 = vld [vmem:[%s1 + $0x4c] sm:$0xf]
          %v579 = vld [vmem:[%s1 + $0x50] sm:$0xf]
          %v580 = vld [vmem:[%s1 + $0x54] sm:$0xf]
          %v581 = vld [vmem:[%s1 + $0x58] sm:$0xf]
          %v582 = vld [vmem:[%s1 + $0x5c] sm:$0xf]
          %v583 = vld [vmem:[%s1 + $0x60] sm:$0xf]
          %v584 = vld [vmem:[%s1 + $0x64] sm:$0xf]
          %v585 = vld [vmem:[%s1 + $0x68] sm:$0xf]
          %v586 = vld [vmem:[%s1 + $0x6c] sm:$0xf]
          %v587 = vld [vmem:[%s1 + $0x70] sm:$0xf]
          %v588 = vld [vmem:[%s1 + $0x74] sm:$0xf]
          %v589 = vld [vmem:[%s1 + $0x78] sm:$0xf]
          %v590 = vld [vmem:[%s1 + $0x7c] sm:$0xf]
          %v591 = vld [vmem:[%s1 + $0x80] sm:$0xf]
          %v592 = vld [vmem:[%s1 + $0x84] sm:$0xf]
          %v593 = vld [vmem:[%s1 + $0x88] sm:$0xf]
          %v594 = vld [vmem:[%s1 + $0x8c] sm:$0xf]
          %v595 = vld [vmem:[%s1 + $0x90] sm:$0xf]
          %v596 = vld [vmem:[%s1 + $0x94] sm:$0xf]
          %v597 = vld [vmem:[%s1 + $0x98] sm:$0xf]
          %v598 = vld [vmem:[%s1 + $0x9c] sm:$0xf]
          %v599 = vld [vmem:[%s1 + $0xa0] sm:$0xf]
          %v600 = vld [vmem:[%s1 + $0xa4] sm:$0xf]
          %v601 = vld [vmem:[%s1 + $0xa8] sm:$0xf]
          %v602 = vld [vmem:[%s1 + $0xac] sm:$0xf]
          %v603 = vld [vmem:[%s1 + $0xb0] sm:$0xf]
          %v604 = vld [vmem:[%s1 + $0xb4] sm:$0xf]
          %v605 = vld [vmem:[%s1 + $0xb8] sm:$0xf]
          %v606 = vld [vmem:[%s1 + $0xbc] sm:$0xf]
          %v607 = vld [vmem:[%s1 + $0xc0] sm:$0xf]
          %v608 = vld [vmem:[%s1 + $0xc4] sm:$0xf]
          %v609 = vld [vmem:[%s1 + $0xc8] sm:$0xf]
          %v610 = vld [vmem:[%s1 + $0xcc] sm:$0xf]
          %v611 = vld [vmem:[%s1 + $0xd0] sm:$0xf]
          %v612 = vld [vmem:[%s1 + $0xd4] sm:$0xf]
          %v613 = vld [vmem:[%s1 + $0xd8] sm:$0xf]
          %v614 = vld [vmem:[%s1 + $0xdc] sm:$0xf]
          %v615 = vld [vmem:[%s1 + $0xe0] sm:$0xf]
          %v616 = vld [vmem:[%s1 + $0xe4] sm:$0xf]
          %v617 = vld [vmem:[%s1 + $0xe8] sm:$0xf]
          %v618 = vld [vmem:[%s1 + $0xec] sm:$0xf]
          %v619 = vld [vmem:[%s1 + $0xf0] sm:$0xf]
          %v620 = vld [vmem:[%s1 + $0xf4] sm:$0xf]
          %v621 = vld [vmem:[%s1 + $0xf8] sm:$0xf]
          %v622 = vld [vmem:[%s1 + $0xfc] sm:$0xf]
          %v623 = vld [vmem:[%s1 + $0x100] sm:$0xf]
          %v624 = vld [vmem:[%s1 + $0x104] sm:$0xf]
          %v625 = vld [vmem:[%s1 + $0x108] sm:$0xf]
          %v626 = vld [vmem:[%s1 + $0x10c] sm:$0xf]
          %v627 = vld [vmem:[%s1 + $0x110] sm:$0xf]
          %v628 = vld [vmem:[%s1 + $0x114] sm:$0xf]
          %v629 = vld [vmem:[%s1 + $0x118] sm:$0xf]
          %v630 = vld [vmem:[%s1 + $0x11c] sm:$0xf]
          %v631 = vld [vmem:[%s1 + $0x120] sm:$0xf]
          %v632 = vld [vmem:[%s1 + $0x124] sm:$0xf]
          %v633 = vld [vmem:[%s1 + $0x128] sm:$0xf]
          %v634 = vld [vmem:[%s1 + $0x12c] sm:$0xf]
          %v635 = vld [vmem:[%s1 + $0x130] sm:$0xf]
          %v636 = vld [vmem:[%s1 + $0x134] sm:$0xf]
          %v637 = vld [vmem:[%s1 + $0x138] sm:$0xf]
          %v638 = vld [vmem:[%s1 + $0x13c] sm:$0xf]
          %v651 = vunpack.c.l.b16 %v547
          %v652 = vunpack.c.h.b16 %v547
          %v653 = vunpack.c.l.b16 %v548
          %v654 = vunpack.c.h.b16 %v548
          %v655 = vunpack.c.l.b16 %v549
          %v656 = vunpack.c.l.b16 %v550
          %v657 = vunpack.c.h.b16 %v550
          %v658 = vunpack.c.l.b16 %v551
          %v659 = vunpack.c.h.b16 %v551
          %v660 = vunpack.c.l.b16 %v552
          %v661 = vunpack.c.l.b16 %v553
          %v662 = vunpack.c.h.b16 %v553
          %v663 = vunpack.c.l.b16 %v554
          %v664 = vunpack.c.h.b16 %v554
          %v665 = vunpack.c.l.b16 %v555
          %v666 = vunpack.c.l.b16 %v556
          %v667 = vunpack.c.h.b16 %v556
          %v668 = vunpack.c.l.b16 %v557
          %v669 = vunpack.c.h.b16 %v557
          %v670 = vunpack.c.l.b16 %v558
          %v671 = vpack.c.b16 %v656, %v651
          %v672 = vpack.c.b16 %v657, %v652
          %v673 = vpack.c.b16 %v658, %v653
          %v674 = vpack.c.b16 %v659, %v654
          %v675 = vpack.c.b16 %v660, %v655
          %v676 = vpack.c.b16 %v666, %v661
          %v677 = vpack.c.b16 %v667, %v662
          %v678 = vpack.c.b16 %v668, %v663
          %v679 = vpack.c.b16 %v669, %v664
          %v680 = vpack.c.b16 %v670, %v665
          %v771 = vunpack.c.l.b16 %v559
          %v772 = vunpack.c.l.b16 %v560
          %v773 = vunpack.c.l.b16 %v561
          %v774 = vunpack.c.l.b16 %v562
          %v775 = vunpack.c.l.b16 %v563
          %v776 = vunpack.c.l.b16 %v564
          %v777 = vunpack.c.l.b16 %v565
          %v778 = vunpack.c.l.b16 %v566
          %v779 = vunpack.c.l.b16 %v567
          %v780 = vunpack.c.l.b16 %v568
          %v781 = vunpack.c.l.b16 %v569
          %v782 = vunpack.c.l.b16 %v570
          %v783 = vunpack.c.l.b16 %v571
          %v784 = vunpack.c.l.b16 %v572
          %v785 = vunpack.c.l.b16 %v573
          %v786 = vunpack.c.l.b16 %v574
          %v787 = vunpack.c.l.b16 %v575
          %v788 = vunpack.c.l.b16 %v576
          %v789 = vunpack.c.l.b16 %v577
          %v790 = vunpack.c.l.b16 %v578
          %v791 = vunpack.c.l.b16 %v579
          %v792 = vunpack.c.l.b16 %v580
          %v793 = vunpack.c.l.b16 %v581
          %v794 = vunpack.c.l.b16 %v582
          %v795 = vunpack.c.l.b16 %v583
          %v796 = vunpack.c.l.b16 %v584
          %v797 = vunpack.c.l.b16 %v585
          %v798 = vunpack.c.l.b16 %v586
          %v799 = vunpack.c.l.b16 %v587
          %v800 = vunpack.c.l.b16 %v588
          %v801 = vunpack.c.l.b16 %v589
          %v802 = vunpack.c.l.b16 %v590
          %v803 = vunpack.c.l.b16 %v591
          %v804 = vunpack.c.l.b16 %v592
          %v805 = vunpack.c.l.b16 %v593
          %v806 = vunpack.c.l.b16 %v594
          %v807 = vunpack.c.l.b16 %v595
          %v808 = vunpack.c.l.b16 %v596
          %v809 = vunpack.c.l.b16 %v597
          %v810 = vunpack.c.l.b16 %v598
          %v811 = vunpack.c.l.b16 %v599
          %v812 = vunpack.c.l.b16 %v600
          %v813 = vunpack.c.l.b16 %v601
          %v814 = vunpack.c.l.b16 %v602
          %v815 = vunpack.c.l.b16 %v603
          %v816 = vunpack.c.l.b16 %v604
          %v817 = vunpack.c.l.b16 %v605
          %v818 = vunpack.c.l.b16 %v606
          %v819 = vunpack.c.l.b16 %v607
          %v820 = vunpack.c.l.b16 %v608
          %v821 = vunpack.c.l.b16 %v609
          %v822 = vunpack.c.l.b16 %v610
          %v823 = vunpack.c.l.b16 %v611
          %v824 = vunpack.c.l.b16 %v612
          %v825 = vunpack.c.l.b16 %v613
          %v826 = vunpack.c.l.b16 %v614
          %v827 = vunpack.c.l.b16 %v615
          %v828 = vunpack.c.l.b16 %v616
          %v829 = vunpack.c.l.b16 %v617
          %v830 = vunpack.c.l.b16 %v618
          %v831 = vunpack.c.l.b16 %v619
          %v832 = vunpack.c.l.b16 %v620
          %v833 = vunpack.c.l.b16 %v621
          %v834 = vunpack.c.l.b16 %v622
          %v835 = vunpack.c.l.b16 %v623
          %v836 = vunpack.c.l.b16 %v624
          %v837 = vunpack.c.l.b16 %v625
          %v838 = vunpack.c.l.b16 %v626
          %v839 = vunpack.c.l.b16 %v627
          %v840 = vunpack.c.l.b16 %v628
          %v841 = vunpack.c.l.b16 %v629
          %v842 = vunpack.c.l.b16 %v630
          %v843 = vunpack.c.l.b16 %v631
          %v844 = vunpack.c.l.b16 %v632
          %v845 = vunpack.c.l.b16 %v633
          %v846 = vunpack.c.l.b16 %v634
          %v847 = vunpack.c.l.b16 %v635
          %v848 = vunpack.c.l.b16 %v636
          %v849 = vunpack.c.l.b16 %v637
          %v850 = vunpack.c.l.b16 %v638
          %v851 = vpack.c.b16 %v772, %v771
          %v852 = vpack.c.b16 %v774, %v773
          %v853 = vpack.c.b16 %v776, %v775
          %v854 = vpack.c.b16 %v778, %v777
          %v855 = vpack.c.b16 %v780, %v779
          %v856 = vpack.c.b16 %v782, %v781
          %v857 = vpack.c.b16 %v784, %v783
          %v858 = vpack.c.b16 %v786, %v785
          %v859 = vpack.c.b16 %v788, %v787
          %v860 = vpack.c.b16 %v790, %v789
          %v861 = vpack.c.b16 %v792, %v791
          %v862 = vpack.c.b16 %v794, %v793
          %v863 = vpack.c.b16 %v796, %v795
          %v864 = vpack.c.b16 %v798, %v797
          %v865 = vpack.c.b16 %v800, %v799
          %v866 = vpack.c.b16 %v802, %v801
          %v867 = vpack.c.b16 %v804, %v803
          %v868 = vpack.c.b16 %v806, %v805
          %v869 = vpack.c.b16 %v808, %v807
          %v870 = vpack.c.b16 %v810, %v809
          %v871 = vpack.c.b16 %v812, %v811
          %v872 = vpack.c.b16 %v814, %v813
          %v873 = vpack.c.b16 %v816, %v815
          %v874 = vpack.c.b16 %v818, %v817
          %v875 = vpack.c.b16 %v820, %v819
          %v876 = vpack.c.b16 %v822, %v821
          %v877 = vpack.c.b16 %v824, %v823
          %v878 = vpack.c.b16 %v826, %v825
          %v879 = vpack.c.b16 %v828, %v827
          %v880 = vpack.c.b16 %v830, %v829
          %v881 = vpack.c.b16 %v832, %v831
          %v882 = vpack.c.b16 %v834, %v833
          %v883 = vpack.c.b16 %v836, %v835
          %v884 = vpack.c.b16 %v838, %v837
          %v885 = vpack.c.b16 %v840, %v839
          %v886 = vpack.c.b16 %v842, %v841
          %v887 = vpack.c.b16 %v844, %v843
          %v888 = vpack.c.b16 %v846, %v845
          %v889 = vpack.c.b16 %v848, %v847
          %v890 = vpack.c.b16 %v850, %v849
          %931 = vmatpush.bf16.msra.mxu0 %v858
          %932 = vmatpush.bf16.msra.mxu0 %v857
          %933 = vmatpush.bf16.msra.mxu0 %v856
          %934 = vmatpush.bf16.msra.mxu0 %v855
          %935 = vmatpush.bf16.msra.mxu0 %v854
          %936 = vmatpush.bf16.msra.mxu0 %v853
          %937 = vmatpush.bf16.msra.mxu0 %v852
          %938 = vmatpush.bf16.msra.mxu0 %v851
          %939 = vmatmul.bf16.gmra.mxu0 %v671
          %v940 = vpop.f32.mrf.mxu0
          %v941 = vadd.f32 0.0, %v940
          %v942 = vpop.f32.mrf.mxu0
          %v943 = vadd.f32 0.0, %v942
          %944 = vmatmul.bf16.gmra.mxu0 %v676
          %v945 = vpop.f32.mrf.mxu0
          %v946 = vadd.f32 0.0, %v945
          %v947 = vpop.f32.mrf.mxu0
          %v948 = vadd.f32 0.0, %v947
          %949 = vdwg.mxu0
          %950 = vmatpush.bf16.msra.mxu0 %v866
          %951 = vmatpush.bf16.msra.mxu0 %v865
          %952 = vmatpush.bf16.msra.mxu0 %v864
          %953 = vmatpush.bf16.msra.mxu0 %v863
          %954 = vmatpush.bf16.msra.mxu0 %v862
          %955 = vmatpush.bf16.msra.mxu0 %v861
          %956 = vmatpush.bf16.msra.mxu0 %v860
          %957 = vmatpush.bf16.msra.mxu0 %v859
          %958 = vmatmul.bf16.gmra.mxu0 %v672
          %v959 = vpop.f32.mrf.mxu0
          %v960 = vadd.f32 %v941, %v959
          %v961 = vpop.f32.mrf.mxu0
          %v962 = vadd.f32 %v943, %v961
          %963 = vmatmul.bf16.gmra.mxu0 %v677
          %v964 = vpop.f32.mrf.mxu0
          %v965 = vadd.f32 %v946, %v964
          %v966 = vpop.f32.mrf.mxu0
          %v967 = vadd.f32 %v948, %v966
          %968 = vdwg.mxu0
          %969 = vmatpush.bf16.msra.mxu0 %v874
          %970 = vmatpush.bf16.msra.mxu0 %v873
          %971 = vmatpush.bf16.msra.mxu0 %v872
          %972 = vmatpush.bf16.msra.mxu0 %v871
          %973 = vmatpush.bf16.msra.mxu0 %v870
          %974 = vmatpush.bf16.msra.mxu0 %v869
          %975 = vmatpush.bf16.msra.mxu0 %v868
          %976 = vmatpush.bf16.msra.mxu0 %v867
          %977 = vmatmul.bf16.gmra.mxu0 %v673
          %v978 = vpop.f32.mrf.mxu0
          %v979 = vadd.f32 %v960, %v978
          %v980 = vpop.f32.mrf.mxu0
          %v981 = vadd.f32 %v962, %v980
          %982 = vmatmul.bf16.gmra.mxu0 %v678
          %v983 = vpop.f32.mrf.mxu0
          %v984 = vadd.f32 %v965, %v983
          %v985 = vpop.f32.mrf.mxu0
          %v986 = vadd.f32 %v967, %v985
          %987 = vdwg.mxu0
          %988 = vmatpush.bf16.msra.mxu0 %v882
          %989 = vmatpush.bf16.msra.mxu0 %v881
          %990 = vmatpush.bf16.msra.mxu0 %v880
          %991 = vmatpush.bf16.msra.mxu0 %v879
          %992 = vmatpush.bf16.msra.mxu0 %v878
          %993 = vmatpush.bf16.msra.mxu0 %v877
          %994 = vmatpush.bf16.msra.mxu0 %v876
          %995 = vmatpush.bf16.msra.mxu0 %v875
          %996 = vmatmul.bf16.gmra.mxu0 %v674
          %v997 = vpop.f32.mrf.mxu0
          %v998 = vadd.f32 %v979, %v997
          %v999 = vpop.f32.mrf.mxu0
          %v1000 = vadd.f32 %v981, %v999
          %1001 = vmatmul.bf16.gmra.mxu0 %v679
          %v1002 = vpop.f32.mrf.mxu0
          %v1003 = vadd.f32 %v984, %v1002
          %v1004 = vpop.f32.mrf.mxu0
          %v1005 = vadd.f32 %v986, %v1004
          %1006 = vdwg.mxu0
          %1007 = vmatpush.bf16.msra.mxu0 %v890
          %1008 = vmatpush.bf16.msra.mxu0 %v889
          %1009 = vmatpush.bf16.msra.mxu0 %v888
          %1010 = vmatpush.bf16.msra.mxu0 %v887
          %1011 = vmatpush.bf16.msra.mxu0 %v886
          %1012 = vmatpush.bf16.msra.mxu0 %v885
          %1013 = vmatpush.bf16.msra.mxu0 %v884
          %1014 = vmatpush.bf16.msra.mxu0 %v883
          %1015 = vmatmul.bf16.gmra.mxu0 %v675
          %v1016 = vpop.f32.mrf.mxu0
          %v1017 = vadd.f32 %v998, %v1016
          %v1018 = vpop.f32.mrf.mxu0
          %v1019 = vadd.f32 %v1000, %v1018
          %1020 = vmatmul.bf16.gmra.mxu0 %v680
          %v1021 = vpop.f32.mrf.mxu0
          %v1022 = vadd.f32 %v1003, %v1021
          %v1023 = vpop.f32.mrf.mxu0
          %v1024 = vadd.f32 %v1005, %v1023
          %1025 = vdwg.mxu0
          %v1026 = vld [vmem:[%s2] sm:$0xff]
          %v1027 = vld [vmem:[%s2 + $0x8] sm:$0xff]
          %v1028 = vadd.f32 %v1017, %v1026
          %v1029 = vadd.f32 %v1019, %v1027
          %v1030 = vadd.f32 %v1022, %v1026
          %v1031 = vadd.f32 %v1024, %v1027
          %1032 = vst [vmem:[#allocation2] sm:$0xff] %v1028
          %1033 = vst [vmem:[#allocation2 + $0x8] sm:$0xff] %v1029
          %1034 = vst [vmem:[#allocation2 + $0x10] sm:$0xff] %v1030
          %1035 = vst [vmem:[#allocation2 + $0x18] sm:$0xff] %v1031
        $region72: #{vit_feature_wrapper_forward.1} parent=67 // pred_fallthru
          _
        %v1036 = vld [vmem:[#allocation2] sm:$0xff]
        %v1037 = vld [vmem:[#allocation2 + $0x8] sm:$0xff]
        %v1038 = vld [vmem:[#allocation2 + $0x10] sm:$0xff]
        %v1039 = vld [vmem:[#allocation2 + $0x18] sm:$0xff]
        %v1040 = vld [vmem:[%s521] sm:$0xff]
        %v1041 = vld [vmem:[%s521 + $0x8] sm:$0xff]
        %v1042 = vld [vmem:[%s521 + $0x10] sm:$0xff]
        %1043 = vadd.xlane.f32.xlu0 %v1036
        %v1044 = vpop.xlane.xlu0 %1043
        %1045 = vadd.xlane.f32.xlu0 %v1037
        %v1046 = vpop.xlane.xlu0 %1045
        %1047 = vadd.xlane.f32.xlu0 %v1038
        %v1048 = vpop.xlane.xlu0 %1047
        %1049 = vadd.xlane.f32.xlu0 %v1039
        %v1050 = vpop.xlane.xlu0 %1049
        %v1051 = vrcp.pop 128.0
        %v1052 = vmul.f32 128.0, %v1051
        %v1053 = vsub.f32 1.0, %v1052
        %v1054 = vmul.f32 %v1051, %v1053
        %v1055 = vadd.f32 %v1051, %v1054
        %vm1056 = vweird.f32 %v1051
        %v1057 = vsel %vm1056, %v1051, %v1055
        %v1058 = vmul.f32 %v1044, %v1057
        %v1059 = vmul.f32 %v1046, %v1057
        %v1060 = vmul.f32 %v1048, %v1057
        %v1061 = vmul.f32 %v1050, %v1057
        %v1062 = vsub.f32 %v1036, %v1058
        %v1063 = vsub.f32 %v1037, %v1059
        %v1064 = vsub.f32 %v1038, %v1060
        %v1065 = vsub.f32 %v1039, %v1061
        %v1066 = vmul.f32 %v1062, %v1062
        %v1067 = vmul.f32 %v1063, %v1063
        %v1068 = vmul.f32 %v1064, %v1064
        %v1069 = vmul.f32 %v1065, %v1065
        %1070 = vadd.xlane.f32.xlu0 %v1066
        %v1071 = vpop.xlane.xlu0 %1070
        %1072 = vadd.xlane.f32.xlu0 %v1067
        %v1073 = vpop.xlane.xlu0 %1072
        %1074 = vadd.xlane.f32.xlu0 %v1068
        %v1075 = vpop.xlane.xlu0 %1074
        %1076 = vadd.xlane.f32.xlu0 %v1069
        %v1077 = vpop.xlane.xlu0 %1076
        %v1078 = vmul.f32 %v1071, %v1057
        %v1079 = vmul.f32 %v1073, %v1057
        %v1080 = vmul.f32 %v1075, %v1057
        %v1081 = vmul.f32 %v1077, %v1057
        %v1082 = vadd.f32 %v1078, 1e-05
        %v1083 = vadd.f32 %v1079, 1e-05
        %v1084 = vadd.f32 %v1080, 1e-05
        %v1085 = vadd.f32 %v1081, 1e-05
        %v1086 = vrsqrt.pop %v1082
        %v1087 = vmul.f32 %v1086, %v1082
        %v1088 = vmul.f32 %v1087, %v1086
        %v1089 = vmul.f32 0.5, %v1088
        %v1090 = vsub.f32 1.5, %v1089
        %v1091 = vmul.f32 %v1086, %v1090
        %vm1092 = vweird.f32 %v1082
        %vm1093 = vweird.f32 %v1086
        %vm1094 = vmor %vm1092, %vm1093
        %v1095 = vsel %vm1094, %v1086, %v1091
        %v1096 = vrsqrt.pop %v1083
        %v1097 = vmul.f32 %v1096, %v1083
        %v1098 = vmul.f32 %v1097, %v1096
        %v1099 = vmul.f32 0.5, %v1098
        %v1100 = vsub.f32 1.5, %v1099
        %v1101 = vmul.f32 %v1096, %v1100
        %vm1102 = vweird.f32 %v1083
        %vm1103 = vweird.f32 %v1096
        %vm1104 = vmor %vm1102, %vm1103
        %v1105 = vsel %vm1104, %v1096, %v1101
        %v1106 = vrsqrt.pop %v1084
        %v1107 = vmul.f32 %v1106, %v1084
        %v1108 = vmul.f32 %v1107, %v1106
        %v1109 = vmul.f32 0.5, %v1108
        %v1110 = vsub.f32 1.5, %v1109
        %v1111 = vmul.f32 %v1106, %v1110
        %vm1112 = vweird.f32 %v1084
        %vm1113 = vweird.f32 %v1106
        %vm1114 = vmor %vm1112, %vm1113
        %v1115 = vsel %vm1114, %v1106, %v1111
        %v1116 = vrsqrt.pop %v1085
        %v1117 = vmul.f32 %v1116, %v1085
        %v1118 = vmul.f32 %v1117, %v1116
        %v1119 = vmul.f32 0.5, %v1118
        %v1120 = vsub.f32 1.5, %v1119
        %v1121 = vmul.f32 %v1116, %v1120
        %vm1122 = vweird.f32 %v1085
        %vm1123 = vweird.f32 %v1116
        %vm1124 = vmor %vm1122, %vm1123
        %v1125 = vsel %vm1124, %v1116, %v1121
        %v1126 = vmul.f32 %v1062, %v1095
        %v1127 = vmul.f32 %v1063, %v1105
        %v1128 = vmul.f32 %v1064, %v1115
        %v1129 = vmul.f32 %v1065, %v1125
        %v1130 = vperm.slane %v1040, 0
        %v1131 = vmul.f32 %v1126, %v1130
        %v1132 = vmul.f32 %v1127, %v1130
        %v1133 = vmul.f32 %v1128, %v1130
        %v1134 = vmul.f32 %v1129, %v1130
        %v1135 = vperm.slane %v1040, 1
        %v1136 = vadd.f32 %v1131, %v1135
        %v1137 = vadd.f32 %v1132, %v1135
        %v1138 = vadd.f32 %v1133, %v1135
        %v1139 = vadd.f32 %v1134, %v1135
        %v1140 = vpack.c.bf16 %v1137, %v1136
        %v1141 = vpack.c.bf16 %v1139, %v1138
        %v1142 = vld [vmem:[%s501] sm:$0xff]
        %v1143 = vld [vmem:[%s501 + $0x8] sm:$0xf]
        %v1144 = vld [vmem:[%s501 + $0xc] sm:$0xff]
        %v1145 = vld [vmem:[%s501 + $0x14] sm:$0xf]
        %v1146 = vld [vmem:[%s501 + $0x18] sm:$0xff]
        %v1147 = vld [vmem:[%s501 + $0x20] sm:$0xf]
        %v1148 = vld [vmem:[%s501 + $0x24] sm:$0xff]
        %v1149 = vld [vmem:[%s501 + $0x2c] sm:$0xf]
        %v1150 = vld [vmem:[%s501 + $0x30] sm:$0xff]
        %v1151 = vld [vmem:[%s501 + $0x38] sm:$0xf]
        %v1152 = vld [vmem:[%s501 + $0x3c] sm:$0xff]
        %v1153 = vld [vmem:[%s501 + $0x44] sm:$0xf]
        %v1154 = vld [vmem:[%s501 + $0x48] sm:$0xff]
        %v1155 = vld [vmem:[%s501 + $0x50] sm:$0xf]
        %v1156 = vld [vmem:[%s501 + $0x54] sm:$0xff]
        %v1157 = vld [vmem:[%s501 + $0x5c] sm:$0xf]
        %v1158 = vld [vmem:[%s501 + $0x60] sm:$0xff]
        %v1159 = vld [vmem:[%s501 + $0x68] sm:$0xf]
        %v1160 = vld [vmem:[%s501 + $0x6c] sm:$0xff]
        %v1161 = vld [vmem:[%s501 + $0x74] sm:$0xf]
        %v1162 = vld [vmem:[%s501 + $0x78] sm:$0xff]
        %v1163 = vld [vmem:[%s501 + $0x80] sm:$0xf]
        %v1164 = vld [vmem:[%s501 + $0x84] sm:$0xff]
        %v1165 = vld [vmem:[%s501 + $0x8c] sm:$0xf]
        %v1166 = vld [vmem:[%s501 + $0x90] sm:$0xff]
        %v1167 = vld [vmem:[%s501 + $0x98] sm:$0xf]
        %v1168 = vld [vmem:[%s501 + $0x9c] sm:$0xff]
        %v1169 = vld [vmem:[%s501 + $0xa4] sm:$0xf]
        %v1170 = vld [vmem:[%s501 + $0xa8] sm:$0xff]
        %v1171 = vld [vmem:[%s501 + $0xb0] sm:$0xf]
        %v1172 = vld [vmem:[%s501 + $0xb4] sm:$0xff]
        %v1173 = vld [vmem:[%s501 + $0xbc] sm:$0xf]
        %v1174 = vperm.slane %v1040, 2
        %v1175 = vperm.slane %v1041, 2
        %v1176 = vperm.slane %v1042, 2
        %v1209 = vunpack.c.l.b16 %v1142
        %v1210 = vunpack.c.h.b16 %v1142
        %v1211 = vunpack.c.l.b16 %v1143
        %v1212 = vunpack.c.l.b16 %v1144
        %v1213 = vunpack.c.h.b16 %v1144
        %v1214 = vunpack.c.l.b16 %v1145
        %v1215 = vunpack.c.l.b16 %v1146
        %v1216 = vunpack.c.h.b16 %v1146
        %v1217 = vunpack.c.l.b16 %v1147
        %v1218 = vunpack.c.l.b16 %v1148
        %v1219 = vunpack.c.h.b16 %v1148
        %v1220 = vunpack.c.l.b16 %v1149
        %v1221 = vunpack.c.l.b16 %v1150
        %v1222 = vunpack.c.h.b16 %v1150
        %v1223 = vunpack.c.l.b16 %v1151
        %v1224 = vunpack.c.l.b16 %v1152
        %v1225 = vunpack.c.h.b16 %v1152
        %v1226 = vunpack.c.l.b16 %v1153
        %v1227 = vunpack.c.l.b16 %v1154
        %v1228 = vunpack.c.h.b16 %v1154
        %v1229 = vunpack.c.l.b16 %v1155
        %v1230 = vunpack.c.l.b16 %v1156
        %v1231 = vunpack.c.h.b16 %v1156
        %v1232 = vunpack.c.l.b16 %v1157
        %v1233 = vunpack.c.l.b16 %v1158
        %v1234 = vunpack.c.h.b16 %v1158
        %v1235 = vunpack.c.l.b16 %v1159
        %v1236 = vunpack.c.l.b16 %v1160
        %v1237 = vunpack.c.h.b16 %v1160
        %v1238 = vunpack.c.l.b16 %v1161
        %v1239 = vunpack.c.l.b16 %v1162
        %v1240 = vunpack.c.h.b16 %v1162
        %v1241 = vunpack.c.l.b16 %v1163
        %v1242 = vunpack.c.l.b16 %v1164
        %v1243 = vunpack.c.h.b16 %v1164
        %v1244 = vunpack.c.l.b16 %v1165
        %v1245 = vunpack.c.l.b16 %v1166
        %v1246 = vunpack.c.h.b16 %v1166
        %v1247 = vunpack.c.l.b16 %v1167
        %v1248 = vunpack.c.l.b16 %v1168
        %v1249 = vunpack.c.h.b16 %v1168
        %v1250 = vunpack.c.l.b16 %v1169
        %v1251 = vunpack.c.l.b16 %v1170
        %v1252 = vunpack.c.h.b16 %v1170
        %v1253 = vunpack.c.l.b16 %v1171
        %v1254 = vunpack.c.l.b16 %v1172
        %v1255 = vunpack.c.h.b16 %v1172
        %v1256 = vunpack.c.l.b16 %v1173
        %v1257 = vpack.c.b16 %v1212, %v1209
        %v1258 = vpack.c.b16 %v1213, %v1210
        %v1259 = vpack.c.b16 %v1214, %v1211
        %v1260 = vpack.c.b16 %v1218, %v1215
        %v1261 = vpack.c.b16 %v1219, %v1216
        %v1262 = vpack.c.b16 %v1220, %v1217
        %v1263 = vpack.c.b16 %v1224, %v1221
        %v1264 = vpack.c.b16 %v1225, %v1222
        %v1265 = vpack.c.b16 %v1226, %v1223
        %v1266 = vpack.c.b16 %v1230, %v1227
        %v1267 = vpack.c.b16 %v1231, %v1228
        %v1268 = vpack.c.b16 %v1232, %v1229
        %v1269 = vpack.c.b16 %v1236, %v1233
        %v1270 = vpack.c.b16 %v1237, %v1234
        %v1271 = vpack.c.b16 %v1238, %v1235
        %v1272 = vpack.c.b16 %v1242, %v1239
        %v1273 = vpack.c.b16 %v1243, %v1240
        %v1274 = vpack.c.b16 %v1244, %v1241
        %v1275 = vpack.c.b16 %v1248, %v1245
        %v1276 = vpack.c.b16 %v1249, %v1246
        %v1277 = vpack.c.b16 %v1250, %v1247
        %v1278 = vpack.c.b16 %v1254, %v1251
        %v1279 = vpack.c.b16 %v1255, %v1252
        %v1280 = vpack.c.b16 %v1256, %v1253
        %1305 = vmatpush.bf16.msra.mxu0 %v1278
        %1306 = vmatpush.bf16.msra.mxu0 %v1275
        %1307 = vmatpush.bf16.msra.mxu0 %v1272
        %1308 = vmatpush.bf16.msra.mxu0 %v1269
        %1309 = vmatpush.bf16.msra.mxu0 %v1266
        %1310 = vmatpush.bf16.msra.mxu0 %v1263
        %1311 = vmatpush.bf16.msra.mxu0 %v1260
        %1312 = vmatpush.bf16.msra.mxu0 %v1257
        %1313 = vmatmul.bf16.gmra.mxu0 %v1140
        %v1314 = vpop.f32.mrf.mxu0
        %v1315 = vadd.f32 %v1174, %v1314
        %v1316 = vpop.f32.mrf.mxu0
        %v1317 = vadd.f32 %v1174, %v1316
        %1318 = vmatmul.bf16.gmra.mxu0 %v1141
        %v1319 = vpop.f32.mrf.mxu0
        %v1320 = vadd.f32 %v1174, %v1319
        %v1321 = vpop.f32.mrf.mxu0
        %v1322 = vadd.f32 %v1174, %v1321
        %1323 = vdwg.mxu0
        %1324 = vmatpush.bf16.msra.mxu0 %v1279
        %1325 = vmatpush.bf16.msra.mxu0 %v1276
        %1326 = vmatpush.bf16.msra.mxu0 %v1273
        %1327 = vmatpush.bf16.msra.mxu0 %v1270
        %1328 = vmatpush.bf16.msra.mxu0 %v1267
        %1329 = vmatpush.bf16.msra.mxu0 %v1264
        %1330 = vmatpush.bf16.msra.mxu0 %v1261
        %1331 = vmatpush.bf16.msra.mxu0 %v1258
        %1332 = vmatmul.bf16.gmra.mxu0 %v1140
        %v1333 = vpop.f32.mrf.mxu0
        %v1334 = vadd.f32 %v1175, %v1333
        %v1335 = vpop.f32.mrf.mxu0
        %v1336 = vadd.f32 %v1175, %v1335
        %1337 = vmatmul.bf16.gmra.mxu0 %v1141
        %v1338 = vpop.f32.mrf.mxu0
        %v1339 = vadd.f32 %v1175, %v1338
        %v1340 = vpop.f32.mrf.mxu0
        %v1341 = vadd.f32 %v1175, %v1340
        %1342 = vdwg.mxu0
        %1343 = vmatpush.bf16.msra.mxu0 %v1280
        %1344 = vmatpush.bf16.msra.mxu0 %v1277
        %1345 = vmatpush.bf16.msra.mxu0 %v1274
        %1346 = vmatpush.bf16.msra.mxu0 %v1271
        %1347 = vmatpush.bf16.msra.mxu0 %v1268
        %1348 = vmatpush.bf16.msra.mxu0 %v1265
        %1349 = vmatpush.bf16.msra.mxu0 %v1262
        %1350 = vmatpush.bf16.msra.mxu0 %v1259
        %1351 = vmatmul.bf16.gmra.mxu0 %v1140
        %v1352 = vpop.f32.mrf.mxu0
        %v1353 = vadd.f32 %v1176, %v1352
        %v1354 = vpop.f32.mrf.mxu0
        %v1355 = vadd.f32 %v1176, %v1354
        %1356 = vmatmul.bf16.gmra.mxu0 %v1141
        %v1357 = vpop.f32.mrf.mxu0
        %v1358 = vadd.f32 %v1176, %v1357
        %v1359 = vpop.f32.mrf.mxu0
        %v1360 = vadd.f32 %v1176, %v1359
        %1361 = vdwg.mxu0
        %v1362 = vlaneseq
        %v1363 = vand.u32 %v1362, 127
        %vm1364 = vcmp.lt.s32.totalorder %v1363, 5
        %v1365 = vpack.c.bf16 %v1315, %v1315
        %v1366 = vpack.c.bf16 %v1317, %v1317
        %v1367 = vpack.c.bf16 %v1320, %v1320
        %v1368 = vpack.c.bf16 %v1322, %v1322
        %v1369 = vpack.c.bf16 %v1334, %v1334
        %v1370 = vpack.c.bf16 %v1336, %v1336
        %v1371 = vpack.c.bf16 %v1339, %v1339
        %v1372 = vpack.c.bf16 %v1341, %v1341
        %v1373 = vpack.c.bf16 %v1353, %v1353
        %v1374 = vpack.c.bf16 %v1355, %v1355
        %v1375 = vpack.c.bf16 %v1358, %v1358
        %v1376 = vpack.c.bf16 %v1360, %v1360
        %v1379 = vunpack.c.l.b16 %v1365
        %v1380 = vunpack.c.l.b16 %v1366
        %v1381 = vpack.c.b16 %v1380, %v1379
        %v1384 = vunpack.c.l.b16 %v1369
        %v1385 = vunpack.c.l.b16 %v1370
        %v1386 = vpack.c.b16 %v1385, %v1384
        %vm1387 = vcmask 261120
        %v1389 = vsel %vm1387, %v1381, 0
        %v1392 = vsel %vm1387, %v1386, 0
        %1394 = vmatpush.bf16.xpose.msra.mxu0 0
        %1395 = vmatpush.bf16.xpose.msra.mxu0 0
        %1396 = vmatpush.bf16.xpose.msra.mxu0 0
        %1397 = vmatpush.bf16.xpose.msra.mxu0 0
        %1398 = vmatpush.bf16.xpose.msra.mxu0 0
        %1399 = vmatpush.bf16.xpose.msra.mxu0 0
        %1400 = vmatpush.bf16.xpose.msra.mxu0 0
        %1401 = vmatpush.bf16.xpose.msra.mxu0 %v1392
        %1402 = vmatmul.bf16.gmra.mxu0 %v1389
        %v1403 = vpop.f32.mrf.mxu0
        %v1404 = vadd.f32 0.0, %v1403
        %v1405 = vpop.f32.mrf.mxu0
        %v1406 = vadd.f32 0.0, %v1405
        %1407 = vdwg.mxu0
        %v1410 = vunpack.c.l.b16 %v1367
        %v1411 = vunpack.c.l.b16 %v1368
        %v1412 = vpack.c.b16 %v1411, %v1410
        %v1415 = vunpack.c.l.b16 %v1371
        %v1416 = vunpack.c.l.b16 %v1372
        %v1417 = vpack.c.b16 %v1416, %v1415
        %v1419 = vsel %vm1387, %v1412, 0
        %v1422 = vsel %vm1387, %v1417, 0
        %1424 = vmatpush.bf16.xpose.msra.mxu0 0
        %1425 = vmatpush.bf16.xpose.msra.mxu0 0
        %1426 = vmatpush.bf16.xpose.msra.mxu0 0
        %1427 = vmatpush.bf16.xpose.msra.mxu0 0
        %1428 = vmatpush.bf16.xpose.msra.mxu0 0
        %1429 = vmatpush.bf16.xpose.msra.mxu0 0
        %1430 = vmatpush.bf16.xpose.msra.mxu0 0
        %1431 = vmatpush.bf16.xpose.msra.mxu0 %v1422
        %1432 = vmatmul.bf16.gmra.mxu0 %v1419
        %v1433 = vpop.f32.mrf.mxu0
        %v1434 = vadd.f32 0.0, %v1433
        %v1435 = vpop.f32.mrf.mxu0
        %v1436 = vadd.f32 0.0, %v1435
        %1437 = vdwg.mxu0
        %v1438 = vmul.f32 %v1404, 0.17677669
        %v1439 = vmul.f32 %v1406, 0.17677669
        %v1440 = vmul.f32 %v1434, 0.17677669
        %v1441 = vmul.f32 %v1436, 0.17677669
        %v1442 = vsel %vm1364, %v1438, -1e+30
        %v1443 = vsel %vm1364, %v1439, -1e+30
        %v1444 = vsel %vm1364, %v1440, -1e+30
        %v1445 = vsel %vm1364, %v1441, -1e+30
        %vm1446 = vcmask 130048
        %v1447 = vsel %vm1446, %v1442, -inf
        %1448 = vmax.xlane.f32.xlu0 %v1447
        %v1449 = vpop.xlane.xlu0 %1448
        %v1450 = vsel %vm1446, %v1443, -inf
        %1451 = vmax.xlane.f32.xlu0 %v1450
        %v1452 = vpop.xlane.xlu0 %1451
        %v1453 = vsel %vm1446, %v1444, -inf
        %1454 = vmax.xlane.f32.xlu0 %v1453
        %v1455 = vpop.xlane.xlu0 %1454
        %v1456 = vsel %vm1446, %v1445, -inf
        %1457 = vmax.xlane.f32.xlu0 %v1456
        %v1458 = vpop.xlane.xlu0 %1457
        %v1459 = vsub.f32 %v1442, %v1449
        %v1460 = vsub.f32 %v1443, %v1452
        %v1461 = vsub.f32 %v1444, %v1455
        %v1462 = vsub.f32 %v1445, %v1458
        %v1463 = vmul.f32 %v1459, 1.442695
        %v1464 = vpow.pop %v1463
        %v1465 = vmul.f32 %v1460, 1.442695
        %v1466 = vpow.pop %v1465
        %v1467 = vmul.f32 %v1461, 1.442695
        %v1468 = vpow.pop %v1467
        %v1469 = vmul.f32 %v1462, 1.442695
        %v1470 = vpow.pop %v1469
        %v1471 = vsel %vm1446, %v1464, 0.0
        %1472 = vadd.xlane.f32.xlu0 %v1471
        %v1473 = vpop.xlane.xlu0 %1472
        %v1474 = vsel %vm1446, %v1466, 0.0
        %1475 = vadd.xlane.f32.xlu0 %v1474
        %v1476 = vpop.xlane.xlu0 %1475
        %v1477 = vsel %vm1446, %v1468, 0.0
        %1478 = vadd.xlane.f32.xlu0 %v1477
        %v1479 = vpop.xlane.xlu0 %1478
        %v1480 = vsel %vm1446, %v1470, 0.0
        %1481 = vadd.xlane.f32.xlu0 %v1480
        %v1482 = vpop.xlane.xlu0 %1481
        %v1483 = vrcp.pop %v1473
        %v1484 = vmul.f32 %v1473, %v1483
        %v1485 = vsub.f32 1.0, %v1484
        %v1486 = vmul.f32 %v1483, %v1485
        %v1487 = vadd.f32 %v1483, %v1486
        %vm1488 = vweird.f32 %v1473
        %vm1489 = vweird.f32 %v1483
        %vm1490 = vmor %vm1488, %vm1489
        %v1491 = vsel %vm1490, %v1483, %v1487
        %v1492 = vand.u32 2147483647, %v1473
        %vm1493 = vcmp.eq.f32.partialorder %v1492, 8.507059e+37
        %v1494 = vand.u32 %v1473, 2147483648
        %v1495 = vor.u32 1.1754944e-38, %v1494
        %v1496 = vsel %vm1493, %v1495, %v1491
        %v1497 = vmul.f32 %v1464, %v1496
        %v1498 = vrcp.pop %v1476
        %v1499 = vmul.f32 %v1476, %v1498
        %v1500 = vsub.f32 1.0, %v1499
        %v1501 = vmul.f32 %v1498, %v1500
        %v1502 = vadd.f32 %v1498, %v1501
        %vm1503 = vweird.f32 %v1476
        %vm1504 = vweird.f32 %v1498
        %vm1505 = vmor %vm1503, %vm1504
        %v1506 = vsel %vm1505, %v1498, %v1502
        %v1507 = vand.u32 2147483647, %v1476
        %vm1508 = vcmp.eq.f32.partialorder %v1507, 8.507059e+37
        %v1509 = vand.u32 %v1476, 2147483648
        %v1510 = vor.u32 1.1754944e-38, %v1509
        %v1511 = vsel %vm1508, %v1510, %v1506
        %v1512 = vmul.f32 %v1466, %v1511
        %v1513 = vrcp.pop %v1479
        %v1514 = vmul.f32 %v1479, %v1513
        %v1515 = vsub.f32 1.0, %v1514
        %v1516 = vmul.f32 %v1513, %v1515
        %v1517 = vadd.f32 %v1513, %v1516
        %vm1518 = vweird.f32 %v1479
        %vm1519 = vweird.f32 %v1513
        %vm1520 = vmor %vm1518, %vm1519
        %v1521 = vsel %vm1520, %v1513, %v1517
        %v1522 = vand.u32 2147483647, %v1479
        %vm1523 = vcmp.eq.f32.partialorder %v1522, 8.507059e+37
        %v1524 = vand.u32 %v1479, 2147483648
        %v1525 = vor.u32 1.1754944e-38, %v1524
        %v1526 = vsel %vm1523, %v1525, %v1521
        %v1527 = vmul.f32 %v1468, %v1526
        %v1528 = vrcp.pop %v1482
        %v1529 = vmul.f32 %v1482, %v1528
        %v1530 = vsub.f32 1.0, %v1529
        %v1531 = vmul.f32 %v1528, %v1530
        %v1532 = vadd.f32 %v1528, %v1531
        %vm1533 = vweird.f32 %v1482
        %vm1534 = vweird.f32 %v1528
        %vm1535 = vmor %vm1533, %vm1534
        %v1536 = vsel %vm1535, %v1528, %v1532
        %v1537 = vand.u32 2147483647, %v1482
        %vm1538 = vcmp.eq.f32.partialorder %v1537, 8.507059e+37
        %v1539 = vand.u32 %v1482, 2147483648
        %v1540 = vor.u32 1.1754944e-38, %v1539
        %v1541 = vsel %vm1538, %v1540, %v1536
        %v1542 = vmul.f32 %v1470, %v1541
        %v1543 = vpack.c.bf16 %v1497, %v1497
        %v1544 = vpack.c.bf16 %v1512, %v1512
        %v1545 = vpack.c.bf16 %v1527, %v1527
        %v1546 = vpack.c.bf16 %v1542, %v1542
        %v1549 = vunpack.c.l.b16 %v1543
        %v1550 = vunpack.c.l.b16 %v1544
        %v1551 = vpack.c.b16 %v1550, %v1549
        %v1554 = vunpack.c.l.b16 %v1373
        %v1555 = vunpack.c.l.b16 %v1374
        %v1556 = vpack.c.b16 %v1555, %v1554
        %v1559 = vsel %vm1446, %v1551, 0
        %1561 = vmatpush.bf16.msra.mxu0 0
        %1562 = vmatpush.bf16.msra.mxu0 0
        %1563 = vmatpush.bf16.msra.mxu0 0
        %1564 = vmatpush.bf16.msra.mxu0 0
        %1565 = vmatpush.bf16.msra.mxu0 0
        %1566 = vmatpush.bf16.msra.mxu0 0
        %1567 = vmatpush.bf16.msra.mxu0 0
        %1568 = vmatpush.bf16.msra.mxu0 %v1556
        %1569 = vmatmul.bf16.gmra.mxu0 %v1559
        %v1570 = vpop.f32.mrf.mxu0
        %v1571 = vadd.f32 0.0, %v1570
        %v1572 = vpop.f32.mrf.mxu0
        %v1573 = vadd.f32 0.0, %v1572
        %1574 = vdwg.mxu0
        %v1577 = vunpack.c.l.b16 %v1545
        %v1578 = vunpack.c.l.b16 %v1546
        %v1579 = vpack.c.b16 %v1578, %v1577
        %v1582 = vunpack.c.l.b16 %v1375
        %v1583 = vunpack.c.l.b16 %v1376
        %v1584 = vpack.c.b16 %v1583, %v1582
        %v1587 = vsel %vm1446, %v1579, 0
        %1589 = vmatpush.bf16.msra.mxu0 0
        %1590 = vmatpush.bf16.msra.mxu0 0
        %1591 = vmatpush.bf16.msra.mxu0 0
        %1592 = vmatpush.bf16.msra.mxu0 0
        %1593 = vmatpush.bf16.msra.mxu0 0
        %1594 = vmatpush.bf16.msra.mxu0 0
        %1595 = vmatpush.bf16.msra.mxu0 0
        %1596 = vmatpush.bf16.msra.mxu0 %v1584
        %1597 = vmatmul.bf16.gmra.mxu0 %v1587
        %v1598 = vpop.f32.mrf.mxu0
        %v1599 = vadd.f32 0.0, %v1598
        %v1600 = vpop.f32.mrf.mxu0
        %v1601 = vadd.f32 0.0, %v1600
        %1602 = vdwg.mxu0
        %1603 = vrot.lane.b32.xlu0 %v1381, 96
        %v1604 = vpop.permute.xlu0 %1603
        %1605 = vrot.lane.b32.xlu0 %v1386, 96
        %v1606 = vpop.permute.xlu0 %1605
        %v1608 = vsel %vm1387, %v1604, 0
        %v1611 = vsel %vm1387, %v1606, 0
        %1613 = vmatpush.bf16.xpose.msra.mxu0 0
        %1614 = vmatpush.bf16.xpose.msra.mxu0 0
        %1615 = vmatpush.bf16.xpose.msra.mxu0 0
        %1616 = vmatpush.bf16.xpose.msra.mxu0 0
        %1617 = vmatpush.bf16.xpose.msra.mxu0 0
        %1618 = vmatpush.bf16.xpose.msra.mxu0 0
        %1619 = vmatpush.bf16.xpose.msra.mxu0 0
        %1620 = vmatpush.bf16.xpose.msra.mxu0 %v1611
        %1621 = vmatmul.bf16.gmra.mxu0 %v1608
        %v1622 = vpop.f32.mrf.mxu0
        %v1623 = vadd.f32 0.0, %v1622
        %v1624 = vpop.f32.mrf.mxu0
        %v1625 = vadd.f32 0.0, %v1624
        %1626 = vdwg.mxu0
        %1627 = vrot.lane.b32.xlu0 %v1412, 96
        %v1628 = vpop.permute.xlu0 %1627
        %1629 = vrot.lane.b32.xlu0 %v1417, 96
        %v1630 = vpop.permute.xlu0 %1629
        %v1632 = vsel %vm1387, %v1628, 0
        %v1635 = vsel %vm1387, %v1630, 0
        %1637 = vmatpush.bf16.xpose.msra.mxu0 0
        %1638 = vmatpush.bf16.xpose.msra.mxu0 0
        %1639 = vmatpush.bf16.xpose.msra.mxu0 0
        %1640 = vmatpush.bf16.xpose.msra.mxu0 0
        %1641 = vmatpush.bf16.xpose.msra.mxu0 0
        %1642 = vmatpush.bf16.xpose.msra.mxu0 0
        %1643 = vmatpush.bf16.xpose.msra.mxu0 0
        %1644 = vmatpush.bf16.xpose.msra.mxu0 %v1635
        %1645 = vmatmul.bf16.gmra.mxu0 %v1632
        %v1646 = vpop.f32.mrf.mxu0
        %v1647 = vadd.f32 0.0, %v1646
        %v1648 = vpop.f32.mrf.mxu0
        %v1649 = vadd.f32 0.0, %v1648
        %1650 = vdwg.mxu0
        %v1651 = vmul.f32 %v1623, 0.17677669
        %v1652 = vmul.f32 %v1625, 0.17677669
        %v1653 = vmul.f32 %v1647, 0.17677669
        %v1654 = vmul.f32 %v1649, 0.17677669
        %v1655 = vsel %vm1364, %v1651, -1e+30
        %v1656 = vsel %vm1364, %v1652, -1e+30
        %v1657 = vsel %vm1364, %v1653, -1e+30
        %v1658 = vsel %vm1364, %v1654, -1e+30
        %v1659 = vsel %vm1446, %v1655, -inf
        %1660 = vmax.xlane.f32.xlu0 %v1659
        %v1661 = vpop.xlane.xlu0 %1660
        %v1662 = vsel %vm1446, %v1656, -inf
        %1663 = vmax.xlane.f32.xlu0 %v1662
        %v1664 = vpop.xlane.xlu0 %1663
        %v1665 = vsel %vm1446, %v1657, -inf
        %1666 = vmax.xlane.f32.xlu0 %v1665
        %v1667 = vpop.xlane.xlu0 %1666
        %v1668 = vsel %vm1446, %v1658, -inf
        %1669 = vmax.xlane.f32.xlu0 %v1668
        %v1670 = vpop.xlane.xlu0 %1669
        %v1671 = vsub.f32 %v1655, %v1661
        %v1672 = vsub.f32 %v1656, %v1664
        %v1673 = vsub.f32 %v1657, %v1667
        %v1674 = vsub.f32 %v1658, %v1670
        %v1675 = vmul.f32 %v1671, 1.442695
        %v1676 = vpow.pop %v1675
        %v1677 = vmul.f32 %v1672, 1.442695
        %v1678 = vpow.pop %v1677
        %v1679 = vmul.f32 %v1673, 1.442695
        %v1680 = vpow.pop %v1679
        %v1681 = vmul.f32 %v1674, 1.442695
        %v1682 = vpow.pop %v1681
        %v1683 = vsel %vm1446, %v1676, 0.0
        %1684 = vadd.xlane.f32.xlu0 %v1683
        %v1685 = vpop.xlane.xlu0 %1684
        %v1686 = vsel %vm1446, %v1678, 0.0
        %1687 = vadd.xlane.f32.xlu0 %v1686
        %v1688 = vpop.xlane.xlu0 %1687
        %v1689 = vsel %vm1446, %v1680, 0.0
        %1690 = vadd.xlane.f32.xlu0 %v1689
        %v1691 = vpop.xlane.xlu0 %1690
        %v1692 = vsel %vm1446, %v1682, 0.0
        %1693 = vadd.xlane.f32.xlu0 %v1692
        %v1694 = vpop.xlane.xlu0 %1693
        %v1695 = vrcp.pop %v1685
        %v1696 = vmul.f32 %v1685, %v1695
        %v1697 = vsub.f32 1.0, %v1696
        %v1698 = vmul.f32 %v1695, %v1697
        %v1699 = vadd.f32 %v1695, %v1698
        %vm1700 = vweird.f32 %v1685
        %vm1701 = vweird.f32 %v1695
        %vm1702 = vmor %vm1700, %vm1701
        %v1703 = vsel %vm1702, %v1695, %v1699
        %v1704 = vand.u32 2147483647, %v1685
        %vm1705 = vcmp.eq.f32.partialorder %v1704, 8.507059e+37
        %v1706 = vand.u32 %v1685, 2147483648
        %v1707 = vor.u32 1.1754944e-38, %v1706
        %v1708 = vsel %vm1705, %v1707, %v1703
        %v1709 = vmul.f32 %v1676, %v1708
        %v1710 = vrcp.pop %v1688
        %v1711 = vmul.f32 %v1688, %v1710
        %v1712 = vsub.f32 1.0, %v1711
        %v1713 = vmul.f32 %v1710, %v1712
        %v1714 = vadd.f32 %v1710, %v1713
        %vm1715 = vweird.f32 %v1688
        %vm1716 = vweird.f32 %v1710
        %vm1717 = vmor %vm1715, %vm1716
        %v1718 = vsel %vm1717, %v1710, %v1714
        %v1719 = vand.u32 2147483647, %v1688
        %vm1720 = vcmp.eq.f32.partialorder %v1719, 8.507059e+37
        %v1721 = vand.u32 %v1688, 2147483648
        %v1722 = vor.u32 1.1754944e-38, %v1721
        %v1723 = vsel %vm1720, %v1722, %v1718
        %v1724 = vmul.f32 %v1678, %v1723
        %v1725 = vrcp.pop %v1691
        %v1726 = vmul.f32 %v1691, %v1725
        %v1727 = vsub.f32 1.0, %v1726
        %v1728 = vmul.f32 %v1725, %v1727
        %v1729 = vadd.f32 %v1725, %v1728
        %vm1730 = vweird.f32 %v1691
        %vm1731 = vweird.f32 %v1725
        %vm1732 = vmor %vm1730, %vm1731
        %v1733 = vsel %vm1732, %v1725, %v1729
        %v1734 = vand.u32 2147483647, %v1691
        %vm1735 = vcmp.eq.f32.partialorder %v1734, 8.507059e+37
        %v1736 = vand.u32 %v1691, 2147483648
        %v1737 = vor.u32 1.1754944e-38, %v1736
        %v1738 = vsel %vm1735, %v1737, %v1733
        %v1739 = vmul.f32 %v1680, %v1738
        %v1740 = vrcp.pop %v1694
        %v1741 = vmul.f32 %v1694, %v1740
        %v1742 = vsub.f32 1.0, %v1741
        %v1743 = vmul.f32 %v1740, %v1742
        %v1744 = vadd.f32 %v1740, %v1743
        %vm1745 = vweird.f32 %v1694
        %vm1746 = vweird.f32 %v1740
        %vm1747 = vmor %vm1745, %vm1746
        %v1748 = vsel %vm1747, %v1740, %v1744
        %v1749 = vand.u32 2147483647, %v1694
        %vm1750 = vcmp.eq.f32.partialorder %v1749, 8.507059e+37
        %v1751 = vand.u32 %v1694, 2147483648
        %v1752 = vor.u32 1.1754944e-38, %v1751
        %v1753 = vsel %vm1750, %v1752, %v1748
        %v1754 = vmul.f32 %v1682, %v1753
        %v1755 = vpack.c.bf16 %v1709, %v1709
        %v1756 = vpack.c.bf16 %v1724, %v1724
        %v1757 = vpack.c.bf16 %v1739, %v1739
        %v1758 = vpack.c.bf16 %v1754, %v1754
        %v1761 = vunpack.c.l.b16 %v1755
        %v1762 = vunpack.c.l.b16 %v1756
        %v1763 = vpack.c.b16 %v1762, %v1761
        %1764 = vrot.lane.b32.xlu0 %v1556, 96
        %v1765 = vpop.permute.xlu0 %1764
        %v1768 = vsel %vm1446, %v1763, 0
        %1770 = vmatpush.bf16.msra.mxu0 0
        %1771 = vmatpush.bf16.msra.mxu0 0
        %1772 = vmatpush.bf16.msra.mxu0 0
        %1773 = vmatpush.bf16.msra.mxu0 0
        %1774 = vmatpush.bf16.msra.mxu0 0
        %1775 = vmatpush.bf16.msra.mxu0 0
        %1776 = vmatpush.bf16.msra.mxu0 0
        %1777 = vmatpush.bf16.msra.mxu0 %v1765
        %1778 = vmatmul.bf16.gmra.mxu0 %v1768
        %v1779 = vpop.f32.mrf.mxu0
        %v1780 = vadd.f32 0.0, %v1779
        %v1781 = vpop.f32.mrf.mxu0
        %v1782 = vadd.f32 0.0, %v1781
        %1783 = vdwg.mxu0
        %v1786 = vunpack.c.l.b16 %v1757
        %v1787 = vunpack.c.l.b16 %v1758
        %v1788 = vpack.c.b16 %v1787, %v1786
        %1789 = vrot.lane.b32.xlu0 %v1584, 96
        %v1790 = vpop.permute.xlu0 %1789
        %v1793 = vsel %vm1446, %v1788, 0
        %1795 = vmatpush.bf16.msra.mxu0 0
        %1796 = vmatpush.bf16.msra.mxu0 0
        %1797 = vmatpush.bf16.msra.mxu0 0
        %1798 = vmatpush.bf16.msra.mxu0 0
        %1799 = vmatpush.bf16.msra.mxu0 0
        %1800 = vmatpush.bf16.msra.mxu0 0
        %1801 = vmatpush.bf16.msra.mxu0 0
        %1802 = vmatpush.bf16.msra.mxu0 %v1790
        %1803 = vmatmul.bf16.gmra.mxu0 %v1793
        %v1804 = vpop.f32.mrf.mxu0
        %v1805 = vadd.f32 0.0, %v1804
        %v1806 = vpop.f32.mrf.mxu0
        %v1807 = vadd.f32 0.0, %v1806
        %1808 = vdwg.mxu0
        %1809 = vrot.lane.b32.xlu0 %v1381, 64
        %v1810 = vpop.permute.xlu0 %1809
        %1811 = vrot.lane.b32.xlu0 %v1386, 64
        %v1812 = vpop.permute.xlu0 %1811
        %v1814 = vsel %vm1387, %v1810, 0
        %v1817 = vsel %vm1387, %v1812, 0
        %1819 = vmatpush.bf16.xpose.msra.mxu0 0
        %1820 = vmatpush.bf16.xpose.msra.mxu0 0
        %1821 = vmatpush.bf16.xpose.msra.mxu0 0
        %1822 = vmatpush.bf16.xpose.msra.mxu0 0
        %1823 = vmatpush.bf16.xpose.msra.mxu0 0
        %1824 = vmatpush.bf16.xpose.msra.mxu0 0
        %1825 = vmatpush.bf16.xpose.msra.mxu0 0
        %1826 = vmatpush.bf16.xpose.msra.mxu0 %v1817
        %1827 = vmatmul.bf16.gmra.mxu0 %v1814
        %v1828 = vpop.f32.mrf.mxu0
        %v1829 = vadd.f32 0.0, %v1828
        %v1830 = vpop.f32.mrf.mxu0
        %v1831 = vadd.f32 0.0, %v1830
        %1832 = vdwg.mxu0
        %1833 = vrot.lane.b32.xlu0 %v1412, 64
        %v1834 = vpop.permute.xlu0 %1833
        %1835 = vrot.lane.b32.xlu0 %v1417, 64
        %v1836 = vpop.permute.xlu0 %1835
        %v1838 = vsel %vm1387, %v1834, 0
        %v1841 = vsel %vm1387, %v1836, 0
        %1843 = vmatpush.bf16.xpose.msra.mxu0 0
        %1844 = vmatpush.bf16.xpose.msra.mxu0 0
        %1845 = vmatpush.bf16.xpose.msra.mxu0 0
        %1846 = vmatpush.bf16.xpose.msra.mxu0 0
        %1847 = vmatpush.bf16.xpose.msra.mxu0 0
        %1848 = vmatpush.bf16.xpose.msra.mxu0 0
        %1849 = vmatpush.bf16.xpose.msra.mxu0 0
        %1850 = vmatpush.bf16.xpose.msra.mxu0 %v1841
        %1851 = vmatmul.bf16.gmra.mxu0 %v1838
        %v1852 = vpop.f32.mrf.mxu0
        %v1853 = vadd.f32 0.0, %v1852
        %v1854 = vpop.f32.mrf.mxu0
        %v1855 = vadd.f32 0.0, %v1854
        %1856 = vdwg.mxu0
        %v1857 = vmul.f32 %v1829, 0.17677669
        %v1858 = vmul.f32 %v1831, 0.17677669
        %v1859 = vmul.f32 %v1853, 0.17677669
        %v1860 = vmul.f32 %v1855, 0.17677669
        %v1861 = vsel %vm1364, %v1857, -1e+30
        %v1862 = vsel %vm1364, %v1858, -1e+30
        %v1863 = vsel %vm1364, %v1859, -1e+30
        %v1864 = vsel %vm1364, %v1860, -1e+30
        %v1865 = vsel %vm1446, %v1861, -inf
        %1866 = vmax.xlane.f32.xlu0 %v1865
        %v1867 = vpop.xlane.xlu0 %1866
        %v1868 = vsel %vm1446, %v1862, -inf
        %1869 = vmax.xlane.f32.xlu0 %v1868
        %v1870 = vpop.xlane.xlu0 %1869
        %v1871 = vsel %vm1446, %v1863, -inf
        %1872 = vmax.xlane.f32.xlu0 %v1871
        %v1873 = vpop.xlane.xlu0 %1872
        %v1874 = vsel %vm1446, %v1864, -inf
        %1875 = vmax.xlane.f32.xlu0 %v1874
        %v1876 = vpop.xlane.xlu0 %1875
        %v1877 = vsub.f32 %v1861, %v1867
        %v1878 = vsub.f32 %v1862, %v1870
        %v1879 = vsub.f32 %v1863, %v1873
        %v1880 = vsub.f32 %v1864, %v1876
        %v1881 = vmul.f32 %v1877, 1.442695
        %v1882 = vpow.pop %v1881
        %v1883 = vmul.f32 %v1878, 1.442695
        %v1884 = vpow.pop %v1883
        %v1885 = vmul.f32 %v1879, 1.442695
        %v1886 = vpow.pop %v1885
        %v1887 = vmul.f32 %v1880, 1.442695
        %v1888 = vpow.pop %v1887
        %v1889 = vsel %vm1446, %v1882, 0.0
        %1890 = vadd.xlane.f32.xlu0 %v1889
        %v1891 = vpop.xlane.xlu0 %1890
        %v1892 = vsel %vm1446, %v1884, 0.0
        %1893 = vadd.xlane.f32.xlu0 %v1892
        %v1894 = vpop.xlane.xlu0 %1893
        %v1895 = vsel %vm1446, %v1886, 0.0
        %1896 = vadd.xlane.f32.xlu0 %v1895
        %v1897 = vpop.xlane.xlu0 %1896
        %v1898 = vsel %vm1446, %v1888, 0.0
        %1899 = vadd.xlane.f32.xlu0 %v1898
        %v1900 = vpop.xlane.xlu0 %1899
        %v1901 = vrcp.pop %v1891
        %v1902 = vmul.f32 %v1891, %v1901
        %v1903 = vsub.f32 1.0, %v1902
        %v1904 = vmul.f32 %v1901, %v1903
        %v1905 = vadd.f32 %v1901, %v1904
        %vm1906 = vweird.f32 %v1891
        %vm1907 = vweird.f32 %v1901
        %vm1908 = vmor %vm1906, %vm1907
        %v1909 = vsel %vm1908, %v1901, %v1905
        %v1910 = vand.u32 2147483647, %v1891
        %vm1911 = vcmp.eq.f32.partialorder %v1910, 8.507059e+37
        %v1912 = vand.u32 %v1891, 2147483648
        %v1913 = vor.u32 1.1754944e-38, %v1912
        %v1914 = vsel %vm1911, %v1913, %v1909
        %v1915 = vmul.f32 %v1882, %v1914
        %v1916 = vrcp.pop %v1894
        %v1917 = vmul.f32 %v1894, %v1916
        %v1918 = vsub.f32 1.0, %v1917
        %v1919 = vmul.f32 %v1916, %v1918
        %v1920 = vadd.f32 %v1916, %v1919
        %vm1921 = vweird.f32 %v1894
        %vm1922 = vweird.f32 %v1916
        %vm1923 = vmor %vm1921, %vm1922
        %v1924 = vsel %vm1923, %v1916, %v1920
        %v1925 = vand.u32 2147483647, %v1894
        %vm1926 = vcmp.eq.f32.partialorder %v1925, 8.507059e+37
        %v1927 = vand.u32 %v1894, 2147483648
        %v1928 = vor.u32 1.1754944e-38, %v1927
        %v1929 = vsel %vm1926, %v1928, %v1924
        %v1930 = vmul.f32 %v1884, %v1929
        %v1931 = vrcp.pop %v1897
        %v1932 = vmul.f32 %v1897, %v1931
        %v1933 = vsub.f32 1.0, %v1932
        %v1934 = vmul.f32 %v1931, %v1933
        %v1935 = vadd.f32 %v1931, %v1934
        %vm1936 = vweird.f32 %v1897
        %vm1937 = vweird.f32 %v1931
        %vm1938 = vmor %vm1936, %vm1937
        %v1939 = vsel %vm1938, %v1931, %v1935
        %v1940 = vand.u32 2147483647, %v1897
        %vm1941 = vcmp.eq.f32.partialorder %v1940, 8.507059e+37
        %v1942 = vand.u32 %v1897, 2147483648
        %v1943 = vor.u32 1.1754944e-38, %v1942
        %v1944 = vsel %vm1941, %v1943, %v1939
        %v1945 = vmul.f32 %v1886, %v1944
        %v1946 = vrcp.pop %v1900
        %v1947 = vmul.f32 %v1900, %v1946
        %v1948 = vsub.f32 1.0, %v1947
        %v1949 = vmul.f32 %v1946, %v1948
        %v1950 = vadd.f32 %v1946, %v1949
        %vm1951 = vweird.f32 %v1900
        %vm1952 = vweird.f32 %v1946
        %vm1953 = vmor %vm1951, %vm1952
        %v1954 = vsel %vm1953, %v1946, %v1950
        %v1955 = vand.u32 2147483647, %v1900
        %vm1956 = vcmp.eq.f32.partialorder %v1955, 8.507059e+37
        %v1957 = vand.u32 %v1900, 2147483648
        %v1958 = vor.u32 1.1754944e-38, %v1957
        %v1959 = vsel %vm1956, %v1958, %v1954
        %v1960 = vmul.f32 %v1888, %v1959
        %v1961 = vpack.c.bf16 %v1915, %v1915
        %v1962 = vpack.c.bf16 %v1930, %v1930
        %v1963 = vpack.c.bf16 %v1945, %v1945
        %v1964 = vpack.c.bf16 %v1960, %v1960
        %v1967 = vunpack.c.l.b16 %v1961
        %v1968 = vunpack.c.l.b16 %v1962
        %v1969 = vpack.c.b16 %v1968, %v1967
        %1970 = vrot.lane.b32.xlu0 %v1556, 64
        %v1971 = vpop.permute.xlu0 %1970
        %v1974 = vsel %vm1446, %v1969, 0
        %1976 = vmatpush.bf16.msra.mxu0 0
        %1977 = vmatpush.bf16.msra.mxu0 0
        %1978 = vmatpush.bf16.msra.mxu0 0
        %1979 = vmatpush.bf16.msra.mxu0 0
        %1980 = vmatpush.bf16.msra.mxu0 0
        %1981 = vmatpush.bf16.msra.mxu0 0
        %1982 = vmatpush.bf16.msra.mxu0 0
        %1983 = vmatpush.bf16.msra.mxu0 %v1971
        %1984 = vmatmul.bf16.gmra.mxu0 %v1974
        %v1985 = vpop.f32.mrf.mxu0
        %v1986 = vadd.f32 0.0, %v1985
        %v1987 = vpop.f32.mrf.mxu0
        %v1988 = vadd.f32 0.0, %v1987
        %1989 = vdwg.mxu0
        %v1992 = vunpack.c.l.b16 %v1963
        %v1993 = vunpack.c.l.b16 %v1964
        %v1994 = vpack.c.b16 %v1993, %v1992
        %1995 = vrot.lane.b32.xlu0 %v1584, 64
        %v1996 = vpop.permute.xlu0 %1995
        %v1999 = vsel %vm1446, %v1994, 0
        %2001 = vmatpush.bf16.msra.mxu0 0
        %2002 = vmatpush.bf16.msra.mxu0 0
        %2003 = vmatpush.bf16.msra.mxu0 0
        %2004 = vmatpush.bf16.msra.mxu0 0
        %2005 = vmatpush.bf16.msra.mxu0 0
        %2006 = vmatpush.bf16.msra.mxu0 0
        %2007 = vmatpush.bf16.msra.mxu0 0
        %2008 = vmatpush.bf16.msra.mxu0 %v1996
        %2009 = vmatmul.bf16.gmra.mxu0 %v1999
        %v2010 = vpop.f32.mrf.mxu0
        %v2011 = vadd.f32 0.0, %v2010
        %v2012 = vpop.f32.mrf.mxu0
        %v2013 = vadd.f32 0.0, %v2012
        %2014 = vdwg.mxu0
        %2015 = vrot.lane.b32.xlu0 %v1381, 32
        %v2016 = vpop.permute.xlu0 %2015
        %2017 = vrot.lane.b32.xlu0 %v1386, 32
        %v2018 = vpop.permute.xlu0 %2017
        %v2020 = vsel %vm1387, %v2016, 0
        %v2023 = vsel %vm1387, %v2018, 0
        %2025 = vmatpush.bf16.xpose.msra.mxu0 0
        %2026 = vmatpush.bf16.xpose.msra.mxu0 0
        %2027 = vmatpush.bf16.xpose.msra.mxu0 0
        %2028 = vmatpush.bf16.xpose.msra.mxu0 0
        %2029 = vmatpush.bf16.xpose.msra.mxu0 0
        %2030 = vmatpush.bf16.xpose.msra.mxu0 0
        %2031 = vmatpush.bf16.xpose.msra.mxu0 0
        %2032 = vmatpush.bf16.xpose.msra.mxu0 %v2023
        %2033 = vmatmul.bf16.gmra.mxu0 %v2020
        %v2034 = vpop.f32.mrf.mxu0
        %v2035 = vadd.f32 0.0, %v2034
        %v2036 = vpop.f32.mrf.mxu0
        %v2037 = vadd.f32 0.0, %v2036
        %2038 = vdwg.mxu0
        %2039 = vrot.lane.b32.xlu0 %v1412, 32
        %v2040 = vpop.permute.xlu0 %2039
        %2041 = vrot.lane.b32.xlu0 %v1417, 32
        %v2042 = vpop.permute.xlu0 %2041
        %v2044 = vsel %vm1387, %v2040, 0
        %v2047 = vsel %vm1387, %v2042, 0
        %2049 = vmatpush.bf16.xpose.msra.mxu0 0
        %2050 = vmatpush.bf16.xpose.msra.mxu0 0
        %2051 = vmatpush.bf16.xpose.msra.mxu0 0
        %2052 = vmatpush.bf16.xpose.msra.mxu0 0
        %2053 = vmatpush.bf16.xpose.msra.mxu0 0
        %2054 = vmatpush.bf16.xpose.msra.mxu0 0
        %2055 = vmatpush.bf16.xpose.msra.mxu0 0
        %2056 = vmatpush.bf16.xpose.msra.mxu0 %v2047
        %2057 = vmatmul.bf16.gmra.mxu0 %v2044
        %v2058 = vpop.f32.mrf.mxu0
        %v2059 = vadd.f32 0.0, %v2058
        %v2060 = vpop.f32.mrf.mxu0
        %v2061 = vadd.f32 0.0, %v2060
        %2062 = vdwg.mxu0
        %v2063 = vmul.f32 %v2035, 0.17677669
        %v2064 = vmul.f32 %v2037, 0.17677669
        %v2065 = vmul.f32 %v2059, 0.17677669
        %v2066 = vmul.f32 %v2061, 0.17677669
        %v2067 = vsel %vm1364, %v2063, -1e+30
        %v2068 = vsel %vm1364, %v2064, -1e+30
        %v2069 = vsel %vm1364, %v2065, -1e+30
        %v2070 = vsel %vm1364, %v2066, -1e+30
        %v2071 = vsel %vm1446, %v2067, -inf
        %2072 = vmax.xlane.f32.xlu0 %v2071
        %v2073 = vpop.xlane.xlu0 %2072
        %v2074 = vsel %vm1446, %v2068, -inf
        %2075 = vmax.xlane.f32.xlu0 %v2074
        %v2076 = vpop.xlane.xlu0 %2075
        %v2077 = vsel %vm1446, %v2069, -inf
        %2078 = vmax.xlane.f32.xlu0 %v2077
        %v2079 = vpop.xlane.xlu0 %2078
        %v2080 = vsel %vm1446, %v2070, -inf
        %2081 = vmax.xlane.f32.xlu0 %v2080
        %v2082 = vpop.xlane.xlu0 %2081
        %v2083 = vsub.f32 %v2067, %v2073
        %v2084 = vsub.f32 %v2068, %v2076
        %v2085 = vsub.f32 %v2069, %v2079
        %v2086 = vsub.f32 %v2070, %v2082
        %v2087 = vmul.f32 %v2083, 1.442695
        %v2088 = vpow.pop %v2087
        %v2089 = vmul.f32 %v2084, 1.442695
        %v2090 = vpow.pop %v2089
        %v2091 = vmul.f32 %v2085, 1.442695
        %v2092 = vpow.pop %v2091
        %v2093 = vmul.f32 %v2086, 1.442695
        %v2094 = vpow.pop %v2093
        %v2095 = vsel %vm1446, %v2088, 0.0
        %2096 = vadd.xlane.f32.xlu0 %v2095
        %v2097 = vpop.xlane.xlu0 %2096
        %v2098 = vsel %vm1446, %v2090, 0.0
        %2099 = vadd.xlane.f32.xlu0 %v2098
        %v2100 = vpop.xlane.xlu0 %2099
        %v2101 = vsel %vm1446, %v2092, 0.0
        %2102 = vadd.xlane.f32.xlu0 %v2101
        %v2103 = vpop.xlane.xlu0 %2102
        %v2104 = vsel %vm1446, %v2094, 0.0
        %2105 = vadd.xlane.f32.xlu0 %v2104
        %v2106 = vpop.xlane.xlu0 %2105
        %v2107 = vrcp.pop %v2097
        %v2108 = vmul.f32 %v2097, %v2107
        %v2109 = vsub.f32 1.0, %v2108
        %v2110 = vmul.f32 %v2107, %v2109
        %v2111 = vadd.f32 %v2107, %v2110
        %vm2112 = vweird.f32 %v2097
        %vm2113 = vweird.f32 %v2107
        %vm2114 = vmor %vm2112, %vm2113
        %v2115 = vsel %vm2114, %v2107, %v2111
        %v2116 = vand.u32 2147483647, %v2097
        %vm2117 = vcmp.eq.f32.partialorder %v2116, 8.507059e+37
        %v2118 = vand.u32 %v2097, 2147483648
        %v2119 = vor.u32 1.1754944e-38, %v2118
        %v2120 = vsel %vm2117, %v2119, %v2115
        %v2121 = vmul.f32 %v2088, %v2120
        %v2122 = vrcp.pop %v2100
        %v2123 = vmul.f32 %v2100, %v2122
        %v2124 = vsub.f32 1.0, %v2123
        %v2125 = vmul.f32 %v2122, %v2124
        %v2126 = vadd.f32 %v2122, %v2125
        %vm2127 = vweird.f32 %v2100
        %vm2128 = vweird.f32 %v2122
        %vm2129 = vmor %vm2127, %vm2128
        %v2130 = vsel %vm2129, %v2122, %v2126
        %v2131 = vand.u32 2147483647, %v2100
        %vm2132 = vcmp.eq.f32.partialorder %v2131, 8.507059e+37
        %v2133 = vand.u32 %v2100, 2147483648
        %v2134 = vor.u32 1.1754944e-38, %v2133
        %v2135 = vsel %vm2132, %v2134, %v2130
        %v2136 = vmul.f32 %v2090, %v2135
        %v2137 = vrcp.pop %v2103
        %v2138 = vmul.f32 %v2103, %v2137
        %v2139 = vsub.f32 1.0, %v2138
        %v2140 = vmul.f32 %v2137, %v2139
        %v2141 = vadd.f32 %v2137, %v2140
        %vm2142 = vweird.f32 %v2103
        %vm2143 = vweird.f32 %v2137
        %vm2144 = vmor %vm2142, %vm2143
        %v2145 = vsel %vm2144, %v2137, %v2141
        %v2146 = vand.u32 2147483647, %v2103
        %vm2147 = vcmp.eq.f32.partialorder %v2146, 8.507059e+37
        %v2148 = vand.u32 %v2103, 2147483648
        %v2149 = vor.u32 1.1754944e-38, %v2148
        %v2150 = vsel %vm2147, %v2149, %v2145
        %v2151 = vmul.f32 %v2092, %v2150
        %v2152 = vrcp.pop %v2106
        %v2153 = vmul.f32 %v2106, %v2152
        %v2154 = vsub.f32 1.0, %v2153
        %v2155 = vmul.f32 %v2152, %v2154
        %v2156 = vadd.f32 %v2152, %v2155
        %vm2157 = vweird.f32 %v2106
        %vm2158 = vweird.f32 %v2152
        %vm2159 = vmor %vm2157, %vm2158
        %v2160 = vsel %vm2159, %v2152, %v2156
        %v2161 = vand.u32 2147483647, %v2106
        %vm2162 = vcmp.eq.f32.partialorder %v2161, 8.507059e+37
        %v2163 = vand.u32 %v2106, 2147483648
        %v2164 = vor.u32 1.1754944e-38, %v2163
        %v2165 = vsel %vm2162, %v2164, %v2160
        %v2166 = vmul.f32 %v2094, %v2165
        %v2167 = vpack.c.bf16 %v2121, %v2121
        %v2168 = vpack.c.bf16 %v2136, %v2136
        %v2169 = vpack.c.bf16 %v2151, %v2151
        %v2170 = vpack.c.bf16 %v2166, %v2166
        %v2173 = vunpack.c.l.b16 %v2167
        %v2174 = vunpack.c.l.b16 %v2168
        %v2175 = vpack.c.b16 %v2174, %v2173
        %2176 = vrot.lane.b32.xlu0 %v1556, 32
        %v2177 = vpop.permute.xlu0 %2176
        %v2180 = vsel %vm1446, %v2175, 0
        %2182 = vmatpush.bf16.msra.mxu0 0
        %2183 = vmatpush.bf16.msra.mxu0 0
        %2184 = vmatpush.bf16.msra.mxu0 0
        %2185 = vmatpush.bf16.msra.mxu0 0
        %2186 = vmatpush.bf16.msra.mxu0 0
        %2187 = vmatpush.bf16.msra.mxu0 0
        %2188 = vmatpush.bf16.msra.mxu0 0
        %2189 = vmatpush.bf16.msra.mxu0 %v2177
        %2190 = vmatmul.bf16.gmra.mxu0 %v2180
        %v2191 = vpop.f32.mrf.mxu0
        %v2192 = vadd.f32 0.0, %v2191
        %v2193 = vpop.f32.mrf.mxu0
        %v2194 = vadd.f32 0.0, %v2193
        %2195 = vdwg.mxu0
        %v2198 = vunpack.c.l.b16 %v2169
        %v2199 = vunpack.c.l.b16 %v2170
        %v2200 = vpack.c.b16 %v2199, %v2198
        %2201 = vrot.lane.b32.xlu0 %v1584, 32
        %v2202 = vpop.permute.xlu0 %2201
        %v2205 = vsel %vm1446, %v2200, 0
        %2207 = vmatpush.bf16.msra.mxu0 0
        %2208 = vmatpush.bf16.msra.mxu0 0
        %2209 = vmatpush.bf16.msra.mxu0 0
        %2210 = vmatpush.bf16.msra.mxu0 0
        %2211 = vmatpush.bf16.msra.mxu0 0
        %2212 = vmatpush.bf16.msra.mxu0 0
        %2213 = vmatpush.bf16.msra.mxu0 0
        %2214 = vmatpush.bf16.msra.mxu0 %v2202
        %2215 = vmatmul.bf16.gmra.mxu0 %v2205
        %v2216 = vpop.f32.mrf.mxu0
        %v2217 = vadd.f32 0.0, %v2216
        %v2218 = vpop.f32.mrf.mxu0
        %v2219 = vadd.f32 0.0, %v2218
        %2220 = vdwg.mxu0
        %2225 = vrot.lane.b32.xlu0 %v1780, 32
        %v2226 = vpop.permute.xlu0 %2225
        %2227 = vrot.lane.b32.xlu0 %v1782, 32
        %v2228 = vpop.permute.xlu0 %2227
        %2229 = vrot.lane.b32.xlu0 %v1805, 32
        %v2230 = vpop.permute.xlu0 %2229
        %2231 = vrot.lane.b32.xlu0 %v1807, 32
        %v2232 = vpop.permute.xlu0 %2231
        %2241 = vrot.lane.b32.xlu0 %v1986, 64
        %v2242 = vpop.permute.xlu0 %2241
        %2243 = vrot.lane.b32.xlu0 %v1988, 64
        %v2244 = vpop.permute.xlu0 %2243
        %2245 = vrot.lane.b32.xlu0 %v2011, 64
        %v2246 = vpop.permute.xlu0 %2245
        %2247 = vrot.lane.b32.xlu0 %v2013, 64
        %v2248 = vpop.permute.xlu0 %2247
        %2257 = vrot.lane.b32.xlu0 %v2192, 96
        %v2258 = vpop.permute.xlu0 %2257
        %2259 = vrot.lane.b32.xlu0 %v2194, 96
        %v2260 = vpop.permute.xlu0 %2259
        %2261 = vrot.lane.b32.xlu0 %v2217, 96
        %v2262 = vpop.permute.xlu0 %2261
        %2263 = vrot.lane.b32.xlu0 %v2219, 96
        %v2264 = vpop.permute.xlu0 %2263
        %v2269 = vsel %vm1387, %v1571, %v2226
        %v2270 = vsel %vm1387, %v1573, %v2228
        %v2271 = vsel %vm1387, %v1599, %v2230
        %v2272 = vsel %vm1387, %v1601, %v2232
        %vm2273 = vcmask 523264
        %v2274 = vsel %vm2273, %v2269, %v2242
        %v2275 = vsel %vm2273, %v2270, %v2244
        %v2276 = vsel %vm2273, %v2271, %v2246
        %v2277 = vsel %vm2273, %v2272, %v2248
        %vm2278 = vcmask 785408
        %v2279 = vsel %vm2278, %v2274, %v2258
        %v2280 = vsel %vm2278, %v2275, %v2260
        %v2281 = vsel %vm2278, %v2276, %v2262
        %v2282 = vsel %vm2278, %v2277, %v2264
        %v2283 = vpack.c.bf16 %v2280, %v2279
        %v2284 = vpack.c.bf16 %v2282, %v2281
        %v2285 = vld [vmem:[%s506] sm:$0xf]
        %v2286 = vld [vmem:[%s506 + $0x4] sm:$0xf]
        %v2287 = vld [vmem:[%s506 + $0x8] sm:$0xf]
        %v2288 = vld [vmem:[%s506 + $0xc] sm:$0xf]
        %v2289 = vld [vmem:[%s506 + $0x10] sm:$0xf]
        %v2290 = vld [vmem:[%s506 + $0x14] sm:$0xf]
        %v2291 = vld [vmem:[%s506 + $0x18] sm:$0xf]
        %v2292 = vld [vmem:[%s506 + $0x1c] sm:$0xf]
        %v2293 = vld [vmem:[%s506 + $0x20] sm:$0xf]
        %v2294 = vld [vmem:[%s506 + $0x24] sm:$0xf]
        %v2295 = vld [vmem:[%s506 + $0x28] sm:$0xf]
        %v2296 = vld [vmem:[%s506 + $0x2c] sm:$0xf]
        %v2297 = vld [vmem:[%s506 + $0x30] sm:$0xf]
        %v2298 = vld [vmem:[%s506 + $0x34] sm:$0xf]
        %v2299 = vld [vmem:[%s506 + $0x38] sm:$0xf]
        %v2300 = vld [vmem:[%s506 + $0x3c] sm:$0xf]
        %v2301 = vperm.slane %v1040, 3
        %v2318 = vunpack.c.l.b16 %v2285
        %v2319 = vunpack.c.l.b16 %v2286
        %v2320 = vunpack.c.l.b16 %v2287
        %v2321 = vunpack.c.l.b16 %v2288
        %v2322 = vunpack.c.l.b16 %v2289
        %v2323 = vunpack.c.l.b16 %v2290
        %v2324 = vunpack.c.l.b16 %v2291
        %v2325 = vunpack.c.l.b16 %v2292
        %v2326 = vunpack.c.l.b16 %v2293
        %v2327 = vunpack.c.l.b16 %v2294
        %v2328 = vunpack.c.l.b16 %v2295
        %v2329 = vunpack.c.l.b16 %v2296
        %v2330 = vunpack.c.l.b16 %v2297
        %v2331 = vunpack.c.l.b16 %v2298
        %v2332 = vunpack.c.l.b16 %v2299
        %v2333 = vunpack.c.l.b16 %v2300
        %v2334 = vpack.c.b16 %v2319, %v2318
        %v2335 = vpack.c.b16 %v2321, %v2320
        %v2336 = vpack.c.b16 %v2323, %v2322
        %v2337 = vpack.c.b16 %v2325, %v2324
        %v2338 = vpack.c.b16 %v2327, %v2326
        %v2339 = vpack.c.b16 %v2329, %v2328
        %v2340 = vpack.c.b16 %v2331, %v2330
        %v2341 = vpack.c.b16 %v2333, %v2332
        %2350 = vmatpush.bf16.msra.mxu0 %v2341
        %2351 = vmatpush.bf16.msra.mxu0 %v2340
        %2352 = vmatpush.bf16.msra.mxu0 %v2339
        %2353 = vmatpush.bf16.msra.mxu0 %v2338
        %2354 = vmatpush.bf16.msra.mxu0 %v2337
        %2355 = vmatpush.bf16.msra.mxu0 %v2336
        %2356 = vmatpush.bf16.msra.mxu0 %v2335
        %2357 = vmatpush.bf16.msra.mxu0 %v2334
        %2358 = vmatmul.bf16.gmra.mxu0 %v2283
        %v2359 = vpop.f32.mrf.mxu0
        %v2360 = vadd.f32 %v2301, %v2359
        %v2361 = vpop.f32.mrf.mxu0
        %v2362 = vadd.f32 %v2301, %v2361
        %2363 = vmatmul.bf16.gmra.mxu0 %v2284
        %v2364 = vpop.f32.mrf.mxu0
        %v2365 = vadd.f32 %v2301, %v2364
        %v2366 = vpop.f32.mrf.mxu0
        %v2367 = vadd.f32 %v2301, %v2366
        %2368 = vdwg.mxu0
        %v2369 = vadd.f32 %v1036, %v2360
        %v2370 = vadd.f32 %v1037, %v2362
        %v2371 = vadd.f32 %v1038, %v2365
        %v2372 = vadd.f32 %v1039, %v2367
        %2373 = vadd.xlane.f32.xlu0 %v2369
        %v2374 = vpop.xlane.xlu0 %2373
        %2375 = vadd.xlane.f32.xlu0 %v2370
        %v2376 = vpop.xlane.xlu0 %2375
        %2377 = vadd.xlane.f32.xlu0 %v2371
        %v2378 = vpop.xlane.xlu0 %2377
        %2379 = vadd.xlane.f32.xlu0 %v2372
        %v2380 = vpop.xlane.xlu0 %2379
        %v2381 = vmul.f32 %v2374, %v1057
        %v2382 = vmul.f32 %v2376, %v1057
        %v2383 = vmul.f32 %v2378, %v1057
        %v2384 = vmul.f32 %v2380, %v1057
        %v2385 = vsub.f32 %v2369, %v2381
        %v2386 = vsub.f32 %v2370, %v2382
        %v2387 = vsub.f32 %v2371, %v2383
        %v2388 = vsub.f32 %v2372, %v2384
        %v2389 = vmul.f32 %v2385, %v2385
        %v2390 = vmul.f32 %v2386, %v2386
        %v2391 = vmul.f32 %v2387, %v2387
        %v2392 = vmul.f32 %v2388, %v2388
        %2393 = vadd.xlane.f32.xlu0 %v2389
        %v2394 = vpop.xlane.xlu0 %2393
        %2395 = vadd.xlane.f32.xlu0 %v2390
        %v2396 = vpop.xlane.xlu0 %2395
        %2397 = vadd.xlane.f32.xlu0 %v2391
        %v2398 = vpop.xlane.xlu0 %2397
        %2399 = vadd.xlane.f32.xlu0 %v2392
        %v2400 = vpop.xlane.xlu0 %2399
        %v2401 = vmul.f32 %v2394, %v1057
        %v2402 = vmul.f32 %v2396, %v1057
        %v2403 = vmul.f32 %v2398, %v1057
        %v2404 = vmul.f32 %v2400, %v1057
        %v2405 = vadd.f32 %v2401, 1e-05
        %v2406 = vadd.f32 %v2402, 1e-05
        %v2407 = vadd.f32 %v2403, 1e-05
        %v2408 = vadd.f32 %v2404, 1e-05
        %v2409 = vrsqrt.pop %v2405
        %v2410 = vmul.f32 %v2409, %v2405
        %v2411 = vmul.f32 %v2410, %v2409
        %v2412 = vmul.f32 0.5, %v2411
        %v2413 = vsub.f32 1.5, %v2412
        %v2414 = vmul.f32 %v2409, %v2413
        %vm2415 = vweird.f32 %v2405
        %vm2416 = vweird.f32 %v2409
        %vm2417 = vmor %vm2415, %vm2416
        %v2418 = vsel %vm2417, %v2409, %v2414
        %v2419 = vrsqrt.pop %v2406
        %v2420 = vmul.f32 %v2419, %v2406
        %v2421 = vmul.f32 %v2420, %v2419
        %v2422 = vmul.f32 0.5, %v2421
        %v2423 = vsub.f32 1.5, %v2422
        %v2424 = vmul.f32 %v2419, %v2423
        %vm2425 = vweird.f32 %v2406
        %vm2426 = vweird.f32 %v2419
        %vm2427 = vmor %vm2425, %vm2426
        %v2428 = vsel %vm2427, %v2419, %v2424
        %v2429 = vrsqrt.pop %v2407
        %v2430 = vmul.f32 %v2429, %v2407
        %v2431 = vmul.f32 %v2430, %v2429
        %v2432 = vmul.f32 0.5, %v2431
        %v2433 = vsub.f32 1.5, %v2432
        %v2434 = vmul.f32 %v2429, %v2433
        %vm2435 = vweird.f32 %v2407
        %vm2436 = vweird.f32 %v2429
        %vm2437 = vmor %vm2435, %vm2436
        %v2438 = vsel %vm2437, %v2429, %v2434
        %v2439 = vrsqrt.pop %v2408
        %v2440 = vmul.f32 %v2439, %v2408
        %v2441 = vmul.f32 %v2440, %v2439
        %v2442 = vmul.f32 0.5, %v2441
        %v2443 = vsub.f32 1.5, %v2442
        %v2444 = vmul.f32 %v2439, %v2443
        %vm2445 = vweird.f32 %v2408
        %vm2446 = vweird.f32 %v2439
        %vm2447 = vmor %vm2445, %vm2446
        %v2448 = vsel %vm2447, %v2439, %v2444
        %v2449 = vmul.f32 %v2385, %v2418
        %v2450 = vmul.f32 %v2386, %v2428
        %v2451 = vmul.f32 %v2387, %v2438
        %v2452 = vmul.f32 %v2388, %v2448
        %v2453 = vperm.slane %v1040, 4
        %v2454 = vmul.f32 %v2449, %v2453
        %v2455 = vmul.f32 %v2450, %v2453
        %v2456 = vmul.f32 %v2451, %v2453
        %v2457 = vmul.f32 %v2452, %v2453
        %v2458 = vperm.slane %v1040, 5
        %v2459 = vadd.f32 %v2454, %v2458
        %v2460 = vadd.f32 %v2455, %v2458
        %v2461 = vadd.f32 %v2456, %v2458
        %v2462 = vadd.f32 %v2457, %v2458
        %v2463 = vpack.c.bf16 %v2460, %v2459
        %v2464 = vpack.c.bf16 %v2462, %v2461
        %v2465 = vld [vmem:[%s511] sm:$0xff]
        %v2466 = vld [vmem:[%s511 + $0x8] sm:$0xff]
        %v2467 = vld [vmem:[%s511 + $0x10] sm:$0xff]
        %v2468 = vld [vmem:[%s511 + $0x18] sm:$0xff]
        %v2469 = vld [vmem:[%s511 + $0x20] sm:$0xff]
        %v2470 = vld [vmem:[%s511 + $0x28] sm:$0xff]
        %v2471 = vld [vmem:[%s511 + $0x30] sm:$0xff]
        %v2472 = vld [vmem:[%s511 + $0x38] sm:$0xff]
        %v2473 = vld [vmem:[%s511 + $0x40] sm:$0xff]
        %v2474 = vld [vmem:[%s511 + $0x48] sm:$0xff]
        %v2475 = vld [vmem:[%s511 + $0x50] sm:$0xff]
        %v2476 = vld [vmem:[%s511 + $0x58] sm:$0xff]
        %v2477 = vld [vmem:[%s511 + $0x60] sm:$0xff]
        %v2478 = vld [vmem:[%s511 + $0x68] sm:$0xff]
        %v2479 = vld [vmem:[%s511 + $0x70] sm:$0xff]
        %v2480 = vld [vmem:[%s511 + $0x78] sm:$0xff]
        %v2481 = vperm.slane %v1040, 6
        %v2482 = vperm.slane %v1041, 6
        %v2499 = vunpack.c.l.b16 %v2465
        %v2500 = vunpack.c.h.b16 %v2465
        %v2501 = vunpack.c.l.b16 %v2466
        %v2502 = vunpack.c.h.b16 %v2466
        %v2503 = vunpack.c.l.b16 %v2467
        %v2504 = vunpack.c.h.b16 %v2467
        %v2505 = vunpack.c.l.b16 %v2468
        %v2506 = vunpack.c.h.b16 %v2468
        %v2507 = vunpack.c.l.b16 %v2469
        %v2508 = vunpack.c.h.b16 %v2469
        %v2509 = vunpack.c.l.b16 %v2470
        %v2510 = vunpack.c.h.b16 %v2470
        %v2511 = vunpack.c.l.b16 %v2471
        %v2512 = vunpack.c.h.b16 %v2471
        %v2513 = vunpack.c.l.b16 %v2472
        %v2514 = vunpack.c.h.b16 %v2472
        %v2515 = vunpack.c.l.b16 %v2473
        %v2516 = vunpack.c.h.b16 %v2473
        %v2517 = vunpack.c.l.b16 %v2474
        %v2518 = vunpack.c.h.b16 %v2474
        %v2519 = vunpack.c.l.b16 %v2475
        %v2520 = vunpack.c.h.b16 %v2475
        %v2521 = vunpack.c.l.b16 %v2476
        %v2522 = vunpack.c.h.b16 %v2476
        %v2523 = vunpack.c.l.b16 %v2477
        %v2524 = vunpack.c.h.b16 %v2477
        %v2525 = vunpack.c.l.b16 %v2478
        %v2526 = vunpack.c.h.b16 %v2478
        %v2527 = vunpack.c.l.b16 %v2479
        %v2528 = vunpack.c.h.b16 %v2479
        %v2529 = vunpack.c.l.b16 %v2480
        %v2530 = vunpack.c.h.b16 %v2480
        %v2531 = vpack.c.b16 %v2501, %v2499
        %v2532 = vpack.c.b16 %v2502, %v2500
        %v2533 = vpack.c.b16 %v2505, %v2503
        %v2534 = vpack.c.b16 %v2506, %v2504
        %v2535 = vpack.c.b16 %v2509, %v2507
        %v2536 = vpack.c.b16 %v2510, %v2508
        %v2537 = vpack.c.b16 %v2513, %v2511
        %v2538 = vpack.c.b16 %v2514, %v2512
        %v2539 = vpack.c.b16 %v2517, %v2515
        %v2540 = vpack.c.b16 %v2518, %v2516
        %v2541 = vpack.c.b16 %v2521, %v2519
        %v2542 = vpack.c.b16 %v2522, %v2520
        %v2543 = vpack.c.b16 %v2525, %v2523
        %v2544 = vpack.c.b16 %v2526, %v2524
        %v2545 = vpack.c.b16 %v2529, %v2527
        %v2546 = vpack.c.b16 %v2530, %v2528
        %2563 = vmatpush.bf16.msra.mxu0 %v2545
        %2564 = vmatpush.bf16.msra.mxu0 %v2543
        %2565 = vmatpush.bf16.msra.mxu0 %v2541
        %2566 = vmatpush.bf16.msra.mxu0 %v2539
        %2567 = vmatpush.bf16.msra.mxu0 %v2537
        %2568 = vmatpush.bf16.msra.mxu0 %v2535
        %2569 = vmatpush.bf16.msra.mxu0 %v2533
        %2570 = vmatpush.bf16.msra.mxu0 %v2531
        %2571 = vmatmul.bf16.gmra.mxu0 %v2463
        %v2572 = vpop.f32.mrf.mxu0
        %v2573 = vadd.f32 %v2481, %v2572
        %v2574 = vpop.f32.mrf.mxu0
        %v2575 = vadd.f32 %v2481, %v2574
        %2576 = vmatmul.bf16.gmra.mxu0 %v2464
        %v2577 = vpop.f32.mrf.mxu0
        %v2578 = vadd.f32 %v2481, %v2577
        %v2579 = vpop.f32.mrf.mxu0
        %v2580 = vadd.f32 %v2481, %v2579
        %2581 = vdwg.mxu0
        %2582 = vmatpush.bf16.msra.mxu0 %v2546
        %2583 = vmatpush.bf16.msra.mxu0 %v2544
        %2584 = vmatpush.bf16.msra.mxu0 %v2542
        %2585 = vmatpush.bf16.msra.mxu0 %v2540
        %2586 = vmatpush.bf16.msra.mxu0 %v2538
        %2587 = vmatpush.bf16.msra.mxu0 %v2536
        %2588 = vmatpush.bf16.msra.mxu0 %v2534
        %2589 = vmatpush.bf16.msra.mxu0 %v2532
        %2590 = vmatmul.bf16.gmra.mxu0 %v2463
        %v2591 = vpop.f32.mrf.mxu0
        %v2592 = vadd.f32 %v2482, %v2591
        %v2593 = vpop.f32.mrf.mxu0
        %v2594 = vadd.f32 %v2482, %v2593
        %2595 = vmatmul.bf16.gmra.mxu0 %v2464
        %v2596 = vpop.f32.mrf.mxu0
        %v2597 = vadd.f32 %v2482, %v2596
        %v2598 = vpop.f32.mrf.mxu0
        %v2599 = vadd.f32 %v2482, %v2598
        %2600 = vdwg.mxu0
        %v2601 = vmul.f32 %v2573, %v2573
        %v2602 = vmul.f32 %v2592, %v2592
        %v2603 = vmul.f32 %v2575, %v2575
        %v2604 = vmul.f32 %v2594, %v2594
        %v2605 = vmul.f32 %v2578, %v2578
        %v2606 = vmul.f32 %v2597, %v2597
        %v2607 = vmul.f32 %v2580, %v2580
        %v2608 = vmul.f32 %v2599, %v2599
        %v2609 = vmul.f32 %v2573, %v2601
        %v2610 = vmul.f32 %v2592, %v2602
        %v2611 = vmul.f32 %v2575, %v2603
        %v2612 = vmul.f32 %v2594, %v2604
        %v2613 = vmul.f32 %v2578, %v2605
        %v2614 = vmul.f32 %v2597, %v2606
        %v2615 = vmul.f32 %v2580, %v2607
        %v2616 = vmul.f32 %v2599, %v2608
        %v2617 = vmul.f32 %v2609, 0.044715
        %v2618 = vmul.f32 %v2610, 0.044715
        %v2619 = vmul.f32 %v2611, 0.044715
        %v2620 = vmul.f32 %v2612, 0.044715
        %v2621 = vmul.f32 %v2613, 0.044715
        %v2622 = vmul.f32 %v2614, 0.044715
        %v2623 = vmul.f32 %v2615, 0.044715
        %v2624 = vmul.f32 %v2616, 0.044715
        %v2625 = vadd.f32 %v2573, %v2617
        %v2626 = vadd.f32 %v2592, %v2618
        %v2627 = vadd.f32 %v2575, %v2619
        %v2628 = vadd.f32 %v2594, %v2620
        %v2629 = vadd.f32 %v2578, %v2621
        %v2630 = vadd.f32 %v2597, %v2622
        %v2631 = vadd.f32 %v2580, %v2623
        %v2632 = vadd.f32 %v2599, %v2624
        %v2633 = vmul.f32 %v2625, 0.7978846
        %v2634 = vmul.f32 %v2626, 0.7978846
        %v2635 = vmul.f32 %v2627, 0.7978846
        %v2636 = vmul.f32 %v2628, 0.7978846
        %v2637 = vmul.f32 %v2629, 0.7978846
        %v2638 = vmul.f32 %v2630, 0.7978846
        %v2639 = vmul.f32 %v2631, 0.7978846
        %v2640 = vmul.f32 %v2632, 0.7978846
        %v2641 = vtanh.pop %v2633
        %v2642 = vtanh.pop %v2634
        %v2643 = vtanh.pop %v2635
        %v2644 = vtanh.pop %v2636
        %v2645 = vtanh.pop %v2637
        %v2646 = vtanh.pop %v2638
        %v2647 = vtanh.pop %v2639
        %v2648 = vtanh.pop %v2640
        %v2649 = vadd.f32 %v2641, 1.0
        %v2650 = vadd.f32 %v2642, 1.0
        %v2651 = vadd.f32 %v2643, 1.0
        %v2652 = vadd.f32 %v2644, 1.0
        %v2653 = vadd.f32 %v2645, 1.0
        %v2654 = vadd.f32 %v2646, 1.0
        %v2655 = vadd.f32 %v2647, 1.0
        %v2656 = vadd.f32 %v2648, 1.0
        %v2657 = vmul.f32 %v2649, 0.5
        %v2658 = vmul.f32 %v2650, 0.5
        %v2659 = vmul.f32 %v2651, 0.5
        %v2660 = vmul.f32 %v2652, 0.5
        %v2661 = vmul.f32 %v2653, 0.5
        %v2662 = vmul.f32 %v2654, 0.5
        %v2663 = vmul.f32 %v2655, 0.5
        %v2664 = vmul.f32 %v2656, 0.5
        %v2665 = vmul.f32 %v2573, %v2657
        %v2666 = vmul.f32 %v2592, %v2658
        %v2667 = vmul.f32 %v2575, %v2659
        %v2668 = vmul.f32 %v2594, %v2660
        %v2669 = vmul.f32 %v2578, %v2661
        %v2670 = vmul.f32 %v2597, %v2662
        %v2671 = vmul.f32 %v2580, %v2663
        %v2672 = vmul.f32 %v2599, %v2664
        %v2673 = vpack.c.bf16 %v2667, %v2665
        %v2674 = vpack.c.bf16 %v2668, %v2666
        %v2675 = vpack.c.bf16 %v2671, %v2669
        %v2676 = vpack.c.bf16 %v2672, %v2670
        %v2677 = vld [vmem:[%s516] sm:$0xf]
        %v2678 = vld [vmem:[%s516 + $0x4] sm:$0xf]
        %v2679 = vld [vmem:[%s516 + $0x8] sm:$0xf]
        %v2680 = vld [vmem:[%s516 + $0xc] sm:$0xf]
        %v2681 = vld [vmem:[%s516 + $0x10] sm:$0xf]
        %v2682 = vld [vmem:[%s516 + $0x14] sm:$0xf]
        %v2683 = vld [vmem:[%s516 + $0x18] sm:$0xf]
        %v2684 = vld [vmem:[%s516 + $0x1c] sm:$0xf]
        %v2685 = vld [vmem:[%s516 + $0x20] sm:$0xf]
        %v2686 = vld [vmem:[%s516 + $0x24] sm:$0xf]
        %v2687 = vld [vmem:[%s516 + $0x28] sm:$0xf]
        %v2688 = vld [vmem:[%s516 + $0x2c] sm:$0xf]
        %v2689 = vld [vmem:[%s516 + $0x30] sm:$0xf]
        %v2690 = vld [vmem:[%s516 + $0x34] sm:$0xf]
        %v2691 = vld [vmem:[%s516 + $0x38] sm:$0xf]
        %v2692 = vld [vmem:[%s516 + $0x3c] sm:$0xf]
        %v2693 = vld [vmem:[%s516 + $0x40] sm:$0xf]
        %v2694 = vld [vmem:[%s516 + $0x44] sm:$0xf]
        %v2695 = vld [vmem:[%s516 + $0x48] sm:$0xf]
        %v2696 = vld [vmem:[%s516 + $0x4c] sm:$0xf]
        %v2697 = vld [vmem:[%s516 + $0x50] sm:$0xf]
        %v2698 = vld [vmem:[%s516 + $0x54] sm:$0xf]
        %v2699 = vld [vmem:[%s516 + $0x58] sm:$0xf]
        %v2700 = vld [vmem:[%s516 + $0x5c] sm:$0xf]
        %v2701 = vld [vmem:[%s516 + $0x60] sm:$0xf]
        %v2702 = vld [vmem:[%s516 + $0x64] sm:$0xf]
        %v2703 = vld [vmem:[%s516 + $0x68] sm:$0xf]
        %v2704 = vld [vmem:[%s516 + $0x6c] sm:$0xf]
        %v2705 = vld [vmem:[%s516 + $0x70] sm:$0xf]
        %v2706 = vld [vmem:[%s516 + $0x74] sm:$0xf]
        %v2707 = vld [vmem:[%s516 + $0x78] sm:$0xf]
        %v2708 = vld [vmem:[%s516 + $0x7c] sm:$0xf]
        %v2709 = vperm.slane %v1040, 7
        %v2742 = vunpack.c.l.b16 %v2677
        %v2743 = vunpack.c.l.b16 %v2678
        %v2744 = vunpack.c.l.b16 %v2679
        %v2745 = vunpack.c.l.b16 %v2680
        %v2746 = vunpack.c.l.b16 %v2681
        %v2747 = vunpack.c.l.b16 %v2682
        %v2748 = vunpack.c.l.b16 %v2683
        %v2749 = vunpack.c.l.b16 %v2684
        %v2750 = vunpack.c.l.b16 %v2685
        %v2751 = vunpack.c.l.b16 %v2686
        %v2752 = vunpack.c.l.b16 %v2687
        %v2753 = vunpack.c.l.b16 %v2688
        %v2754 = vunpack.c.l.b16 %v2689
        %v2755 = vunpack.c.l.b16 %v2690
        %v2756 = vunpack.c.l.b16 %v2691
        %v2757 = vunpack.c.l.b16 %v2692
        %v2758 = vunpack.c.l.b16 %v2693
        %v2759 = vunpack.c.l.b16 %v2694
        %v2760 = vunpack.c.l.b16 %v2695
        %v2761 = vunpack.c.l.b16 %v2696
        %v2762 = vunpack.c.l.b16 %v2697
        %v2763 = vunpack.c.l.b16 %v2698
        %v2764 = vunpack.c.l.b16 %v2699
        %v2765 = vunpack.c.l.b16 %v2700
        %v2766 = vunpack.c.l.b16 %v2701
        %v2767 = vunpack.c.l.b16 %v2702
        %v2768 = vunpack.c.l.b16 %v2703
        %v2769 = vunpack.c.l.b16 %v2704
        %v2770 = vunpack.c.l.b16 %v2705
        %v2771 = vunpack.c.l.b16 %v2706
        %v2772 = vunpack.c.l.b16 %v2707
        %v2773 = vunpack.c.l.b16 %v2708
        %v2774 = vpack.c.b16 %v2743, %v2742
        %v2775 = vpack.c.b16 %v2745, %v2744
        %v2776 = vpack.c.b16 %v2747, %v2746
        %v2777 = vpack.c.b16 %v2749, %v2748
        %v2778 = vpack.c.b16 %v2751, %v2750
        %v2779 = vpack.c.b16 %v2753, %v2752
        %v2780 = vpack.c.b16 %v2755, %v2754
        %v2781 = vpack.c.b16 %v2757, %v2756
        %v2782 = vpack.c.b16 %v2759, %v2758
        %v2783 = vpack.c.b16 %v2761, %v2760
        %v2784 = vpack.c.b16 %v2763, %v2762
        %v2785 = vpack.c.b16 %v2765, %v2764
        %v2786 = vpack.c.b16 %v2767, %v2766
        %v2787 = vpack.c.b16 %v2769, %v2768
        %v2788 = vpack.c.b16 %v2771, %v2770
        %v2789 = vpack.c.b16 %v2773, %v2772
        %2806 = vmatpush.bf16.msra.mxu0 %v2781
        %2807 = vmatpush.bf16.msra.mxu0 %v2780
        %2808 = vmatpush.bf16.msra.mxu0 %v2779
        %2809 = vmatpush.bf16.msra.mxu0 %v2778
        %2810 = vmatpush.bf16.msra.mxu0 %v2777
        %2811 = vmatpush.bf16.msra.mxu0 %v2776
        %2812 = vmatpush.bf16.msra.mxu0 %v2775
        %2813 = vmatpush.bf16.msra.mxu0 %v2774
        %2814 = vmatmul.bf16.gmra.mxu0 %v2673
        %v2815 = vpop.f32.mrf.mxu0
        %v2816 = vadd.f32 %v2709, %v2815
        %v2817 = vpop.f32.mrf.mxu0
        %v2818 = vadd.f32 %v2709, %v2817
        %2819 = vmatmul.bf16.gmra.mxu0 %v2675
        %v2820 = vpop.f32.mrf.mxu0
        %v2821 = vadd.f32 %v2709, %v2820
        %v2822 = vpop.f32.mrf.mxu0
        %v2823 = vadd.f32 %v2709, %v2822
        %2824 = vdwg.mxu0
        %2825 = vmatpush.bf16.msra.mxu0 %v2789
        %2826 = vmatpush.bf16.msra.mxu0 %v2788
        %2827 = vmatpush.bf16.msra.mxu0 %v2787
        %2828 = vmatpush.bf16.msra.mxu0 %v2786
        %2829 = vmatpush.bf16.msra.mxu0 %v2785
        %2830 = vmatpush.bf16.msra.mxu0 %v2784
        %2831 = vmatpush.bf16.msra.mxu0 %v2783
        %2832 = vmatpush.bf16.msra.mxu0 %v2782
        %2833 = vmatmul.bf16.gmra.mxu0 %v2674
        %v2834 = vpop.f32.mrf.mxu0
        %v2835 = vadd.f32 %v2816, %v2834
        %v2836 = vpop.f32.mrf.mxu0
        %v2837 = vadd.f32 %v2818, %v2836
        %2838 = vmatmul.bf16.gmra.mxu0 %v2676
        %v2839 = vpop.f32.mrf.mxu0
        %v2840 = vadd.f32 %v2821, %v2839
        %v2841 = vpop.f32.mrf.mxu0
        %v2842 = vadd.f32 %v2823, %v2841
        %2843 = vdwg.mxu0
        %v2844 = vadd.f32 %v2369, %v2835
        %v2845 = vadd.f32 %v2370, %v2837
        %v2846 = vadd.f32 %v2371, %v2840
        %v2847 = vadd.f32 %v2372, %v2842
        %2848 = vst [vmem:[#allocation2] sm:$0xff] %v2844
        %2849 = vst [vmem:[#allocation2 + $0x8] sm:$0xff] %v2845
        %2850 = vst [vmem:[#allocation2 + $0x10] sm:$0xff] %v2846
        %2851 = vst [vmem:[#allocation2 + $0x18] sm:$0xff] %v2847
        %p2852 = scmp.eq.s32.totalorder %s29, 1
        // Predicated region
        $region73: #{vit_feature_wrapper_forward.1} parent=67 // pred_check
          %p2853 = pneg %p2852
        $region74: #{vit_feature_wrapper_forward.1} parent=67 // pred_check_branch
          %2855 = sbr.rel (%p2853) target = $region76
        $region75: #{vit_feature_wrapper_forward.1} parent=67 // pred_region
          %v2856 = vld [vmem:[%s8] sm:$0x1]
          %v2857 = vld [vmem:[%s9] sm:$0x1]
          %v2860 = vrot.slane %v2846, 7
          %vm2861 = vcmask 1041409
          %v2862 = vsel %vm2861, %v2860, %v2844
          %vm2864 = vcmask 1041408
          %v2865 = vsel %vm2864, %v2862, 0.0
          %2866 = vadd.xlane.f32.xlu0 %v2865
          %v2867 = vpop.xlane.xlu0 %2866
          %v2868 = vmul.f32 %v2867, %v1057
          %v2870 = vrot.slane %v2868, 1
          %v2873 = vsub.f32 %v2844, %v2868
          %v2874 = vsub.f32 %v2846, %v2870
          %v2875 = vmul.f32 %v2873, %v2873
          %v2876 = vmul.f32 %v2874, %v2874
          %v2879 = vrot.slane %v2876, 7
          %v2880 = vsel %vm2861, %v2879, %v2875
          %v2882 = vsel %vm2864, %v2880, 0.0
          %2883 = vadd.xlane.f32.xlu0 %v2882
          %v2884 = vpop.xlane.xlu0 %2883
          %v2885 = vmul.f32 %v2884, %v1057
          %v2886 = vadd.f32 %v2885, 1e-05
          %v2887 = vrsqrt.pop %v2886
          %v2888 = vmul.f32 %v2887, %v2886
          %v2889 = vmul.f32 %v2888, %v2887
          %v2890 = vmul.f32 0.5, %v2889
          %v2891 = vsub.f32 1.5, %v2890
          %v2892 = vmul.f32 %v2887, %v2891
          %vm2893 = vweird.f32 %v2886
          %vm2894 = vweird.f32 %v2887
          %vm2895 = vmor %vm2893, %vm2894
          %v2896 = vsel %vm2895, %v2887, %v2892
          %v2898 = vrot.slane %v2896, 1
          %v2901 = vmul.f32 %v2873, %v2896
          %v2902 = vmul.f32 %v2874, %v2898
          %v2904 = vperm.slane %v2856, 0
          %v2906 = vmul.f32 %v2901, %v2904
          %v2907 = vmul.f32 %v2902, %v2904
          %v2909 = vperm.slane %v2857, 0
          %v2911 = vadd.f32 %v2906, %v2909
          %v2912 = vadd.f32 %v2907, %v2909
          %v2913 = vpack.c.bf16 %v2911, %v2911
          %v2914 = vpack.c.bf16 %v2912, %v2912
          %v2915 = vld [vmem:[%s10] sm:$0xf]
          %v2916 = vld [vmem:[%s10 + $0x4] sm:$0xf]
          %v2917 = vld [vmem:[%s10 + $0x8] sm:$0xf]
          %v2918 = vld [vmem:[%s10 + $0xc] sm:$0xf]
          %v2919 = vld [vmem:[%s10 + $0x10] sm:$0xf]
          %v2920 = vld [vmem:[%s10 + $0x14] sm:$0xf]
          %v2921 = vld [vmem:[%s10 + $0x18] sm:$0xf]
          %v2922 = vld [vmem:[%s10 + $0x1c] sm:$0xf]
          %v2923 = vld [vmem:[%s10 + $0x20] sm:$0xf]
          %v2924 = vld [vmem:[%s10 + $0x24] sm:$0xf]
          %v2925 = vld [vmem:[%s10 + $0x28] sm:$0xf]
          %v2926 = vld [vmem:[%s10 + $0x2c] sm:$0xf]
          %v2927 = vld [vmem:[%s10 + $0x30] sm:$0xf]
          %v2928 = vld [vmem:[%s10 + $0x34] sm:$0xf]
          %v2929 = vld [vmem:[%s10 + $0x38] sm:$0xf]
          %v2930 = vld [vmem:[%s10 + $0x3c] sm:$0xf]
          %v2931 = vld [vmem:[%s11] sm:$0x1]
          %v2933 = vperm.slane %v2931, 0
          %v2937 = vunpack.c.l.b16 %v2913
          %v2938 = vunpack.c.l.b16 %v2914
          %v2939 = vrot.slane %v2938, 7
          %v2940 = vsel %vm2861, %v2939, %v2937
          %v2941 = vpack.c.b16 %v2940, %v2940
          %v2959 = vunpack.c.l.b16 %v2915
          %v2960 = vunpack.c.l.b16 %v2916
          %v2961 = vunpack.c.l.b16 %v2917
          %v2962 = vunpack.c.l.b16 %v2918
          %v2963 = vunpack.c.l.b16 %v2919
          %v2964 = vunpack.c.l.b16 %v2920
          %v2965 = vunpack.c.l.b16 %v2921
          %v2966 = vunpack.c.l.b16 %v2922
          %v2967 = vunpack.c.l.b16 %v2923
          %v2968 = vunpack.c.l.b16 %v2924
          %v2969 = vunpack.c.l.b16 %v2925
          %v2970 = vunpack.c.l.b16 %v2926
          %v2971 = vunpack.c.l.b16 %v2927
          %v2972 = vunpack.c.l.b16 %v2928
          %v2973 = vunpack.c.l.b16 %v2929
          %v2974 = vunpack.c.l.b16 %v2930
          %v2975 = vpack.c.b16 %v2960, %v2959
          %v2976 = vpack.c.b16 %v2962, %v2961
          %v2977 = vpack.c.b16 %v2964, %v2963
          %v2978 = vpack.c.b16 %v2966, %v2965
          %v2979 = vpack.c.b16 %v2968, %v2967
          %v2980 = vpack.c.b16 %v2970, %v2969
          %v2981 = vpack.c.b16 %v2972, %v2971
          %v2982 = vpack.c.b16 %v2974, %v2973
          %2991 = vmatpush.bf16.msra.mxu0 %v2982
          %2992 = vmatpush.bf16.msra.mxu0 %v2981
          %2993 = vmatpush.bf16.msra.mxu0 %v2980
          %2994 = vmatpush.bf16.msra.mxu0 %v2979
          %2995 = vmatpush.bf16.msra.mxu0 %v2978
          %2996 = vmatpush.bf16.msra.mxu0 %v2977
          %2997 = vmatpush.bf16.msra.mxu0 %v2976
          %2998 = vmatpush.bf16.msra.mxu0 %v2975
          %2999 = vmatmul.bf16.gmra.mxu0 %v2941
          %v3000 = vpop.f32.mrf.mxu0
          %v3001 = vadd.f32 %v2933, %v3000
          %v3002 = vpop.f32.mrf.mxu0
          %3003 = vdwg.mxu0
          %3004 = vst [vmem:[#allocation3] sm:$0x3] %v3001
        $region76: #{vit_feature_wrapper_forward.1} parent=67 // pred_fallthru
          _
        // Predicated region
        $region77: #{vit_feature_wrapper_forward.1} parent=67 // pred_check
          %p3005 = pneg %p336
        $region78: #{vit_feature_wrapper_forward.1} parent=67 // pred_check_branch
          %3007 = sbr.rel (%p3005) target = $region80
        $region79: #{vit_feature_wrapper_forward.1} parent=67 // pred_region
          %3009 = vsyncadd [#allocation4], 0
          %s3010 = smul.addr %s28, 2
          %s3011 = scalar_lea.hbm %s12, %s3010
          %s3013 = sshll.u32 [#allocation3], 4
          %s3014 = int_to_ptr.vmem [resolvable:$true] %s3013
          %s3015 = sshll.u32 %s3011, 4
          %s3016 = int_to_ptr.hbm [resolvable:$true] %s3015
          %3018 = dma.vmem_to_hbm [thread:$0]  %s3014, 32, %s3016, [#allocation4]
        $region80: #{vit_feature_wrapper_forward.1} parent=67 // pred_fallthru
          _
        // Predicated region
        $region81: #{vit_feature_wrapper_forward.1} parent=67 // pred_check
          %p3019 = pneg %p336
        $region82: #{vit_feature_wrapper_forward.1} parent=67 // pred_check_branch
          %3021 = sbr.rel (%p3019) target = $region84
        $region83: #{vit_feature_wrapper_forward.1} parent=67 // pred_region
          %3023 = dma.done [#allocation4], 32
        $region84: #{vit_feature_wrapper_forward.1} parent=67 // pred_fallthru
          _
      $region68: #{vit_feature_wrapper_forward.1} parent=5 // pred_fallthru
        _
      %p3024 = scmp.le.s32.totalorder 2, %s19
      // Predicated region
      $region85: #{vit_feature_wrapper_forward.1} parent=5 // pred_check
        %p3025 = pneg %p3024
      $region86: #{vit_feature_wrapper_forward.1} parent=5 // pred_check_branch
        %3027 = sbr.rel (%p3025) target = $region88
      $region87: #{vit_feature_wrapper_forward.1} parent=5 // pred_region
        %s3028 = ssub.s32 %s19, 2
      $region88: #{vit_feature_wrapper_forward.1} parent=5 // pred_fallthru
        _
    $region6: #{vit_feature_wrapper_forward.1} parent=1 // loop_footer
      %s23 = sadd.s32 1, %s19
    $region7: #{vit_feature_wrapper_forward.1} parent=1 // loop_footer_branch
      %18 = sbr.rel target = $region3
    $region8: #{vit_feature_wrapper_forward.1} parent=1 // loop_exit
      _
    %3029 = vsyncpa [#allocation4], 1
    %s3030 = scalar_lea.sflag [#allocation4], 1
    %3031 = vsyncpa %s3030, 1

</llo_original>
